<compile_context>
chip_gen: v7x
topology: tpu7x:2x2x1
jax: 0.10.0
libtpu: 0.0.40
codegen_flags: <defaults>
</compile_context>

<pallas_src>
import jax
import jax.numpy as jnp
from jax import lax
from jax.experimental import pallas as pl
from jax.experimental.pallas import tpu as pltpu


def _conv3x3_in(src_pad, w_bf16, H, W, C, eps=1e-5):
    """3x3 conv over a zero-padded (H+2, W+2, C) slab, then InstanceNorm.

    Conv = 9 shifted matmuls with bf16 operands, f32 accumulation (single-pass
    MXU).  InstanceNorm stats are computed in one fused pass in f32.
    Returns an (H, W, C) f32 array.
    """
    acc = jnp.zeros((H * W, C), jnp.float32)
    for dy in range(3):
        for dx in range(3):
            patch = src_pad[dy:dy + H, dx:dx + W, :].reshape(H * W, C)
            acc = acc + jnp.dot(
                patch.astype(jnp.bfloat16),
                w_bf16[dy, dx],
                preferred_element_type=jnp.float32,
            )
    y = acc.reshape(H, W, C)
    # Fused single-pass statistics (biased variance, like nn.InstanceNorm2d).
    m = jnp.mean(y, axis=(0, 1), keepdims=True)
    ms = jnp.mean(y * y, axis=(0, 1), keepdims=True)
    v = jnp.maximum(ms - m * m, 0.0)
    return (y - m) * lax.rsqrt(v + eps)


def _zero_border(pad_ref, H, W, C):
    """Zero only the 1-pixel border of an (H+2, W+2, C) scratch slab."""
    zrow = jnp.zeros((1, W + 2, C), jnp.float32)
    zcol = jnp.zeros((H + 2, 1, C), jnp.float32)
    pad_ref[0:1, :, :] = zrow
    pad_ref[H + 1:H + 2, :, :] = zrow
    pad_ref[:, 0:1, :] = zcol
    pad_ref[:, W + 1:W + 2, :] = zcol


def resnet_block_kernel(x_ref, w1_ref, w2_ref, out_ref, xpad_ref, ypad_ref):
    _, H, W, C = x_ref.shape

    # Only the border needs (re-)zeroing; the interiors are fully overwritten.
    _zero_border(xpad_ref, H, W, C)
    _zero_border(ypad_ref, H, W, C)

    x = x_ref[0].astype(jnp.float32)                       # (H, W, C)
    xpad_ref[1:1 + H, 1:1 + W, :] = x

    # conv1 -> InstanceNorm -> ReLU   (bias omitted: InstanceNorm cancels it)
    y = _conv3x3_in(xpad_ref[...], w1_ref[...], H, W, C)
    y = jnp.maximum(y, 0.0)

    ypad_ref[1:1 + H, 1:1 + W, :] = y

    # conv2 -> InstanceNorm
    y2 = _conv3x3_in(ypad_ref[...], w2_ref[...], H, W, C)

    # residual add in f32, cast back to output dtype
    out_ref[0] = (x + y2).astype(out_ref.dtype)


@jax.jit
def resnet_block(x_nchw, w1, b1, w2, b2):
    # Per-channel conv biases are exactly cancelled by the following
    # InstanceNorm (mean/var are shift invariant), so they are not shipped to
    # the kernel at all.
    del b1, b2

    x = jnp.transpose(x_nchw, (0, 2, 3, 1))                # NCHW -> NHWC
    N, H, W, C = x.shape
    w1b = w1.astype(jnp.bfloat16)
    w2b = w2.astype(jnp.bfloat16)

    out = pl.pallas_call(
        resnet_block_kernel,
        out_shape=jax.ShapeDtypeStruct((N, H, W, C), x.dtype),
        grid_spec=pltpu.PrefetchScalarGridSpec(
            num_scalar_prefetch=0,
            grid=(N,),                                     # one image per grid step
            in_specs=[
                pl.BlockSpec((1, H, W, C), lambda n: (n, 0, 0, 0)),
                pl.BlockSpec((3, 3, C, C), lambda n: (0, 0, 0, 0)),
                pl.BlockSpec((3, 3, C, C), lambda n: (0, 0, 0, 0)),
            ],
            out_specs=pl.BlockSpec((1, H, W, C), lambda n: (n, 0, 0, 0)),
            scratch_shapes=[
                pltpu.VMEM((H + 2, W + 2, C), jnp.float32),   # padded x slab
                pltpu.VMEM((H + 2, W + 2, C), jnp.float32),   # padded y slab
            ],
        ),
        compiler_params=pltpu.CompilerParams(
            dimension_semantics=("parallel",),
            # Explicit scoped-VMEM budget (default is 16/32 MiB); plenty of
            # headroom for whole-image blocks at realistic sizes, and safe on
            # v7x's 64 MiB physical VMEM.
            vmem_limit_bytes=64 * 1024 * 1024,
        ),
    )(x, w1b, w2b)

    return jnp.transpose(out, (0, 3, 1, 2))                # NHWC -> NCHW


def resnet_block_reference(x_nchw, w1, b1, w2, b2):
    """Pure-JAX f32 reference (with biases, HIGHEST precision) for checking."""
    x = jnp.transpose(x_nchw, (0, 2, 3, 1)).astype(jnp.float32)

    def conv(z, w, b):
        y = lax.conv_general_dilated(
            z, w.astype(jnp.float32), (1, 1), 'SAME',
            dimension_numbers=('NHWC', 'HWIO', 'NHWC'),
            precision=lax.Precision.HIGHEST)
        return y + b.astype(jnp.float32)

    def inorm(y, eps=1e-5):
        m = jnp.mean(y, axis=(1, 2), keepdims=True)
        v = jnp.mean((y - m) ** 2, axis=(1, 2), keepdims=True)
        return (y - m) * lax.rsqrt(v + eps)

    y = jnp.maximum(inorm(conv(x, w1, b1)), 0.0)
    y = inorm(conv(y, w2, b2))
    return jnp.transpose(x + y, (0, 3, 1, 2)).astype(x_nchw.dtype)


if __name__ == "__main__":
    key = jax.random.PRNGKey(0)
    kx, kw1, kb1, kw2, kb2 = jax.random.split(key, 5)

    N, C, H, W = 2, 4, 16, 16
    x = jax.random.normal(kx, (N, C, H, W), jnp.float32)
    # deterministic synthetic parameters (HWIO conv weights, per-channel biases)
    w1 = jax.random.normal(kw1, (3, 3, C, C), jnp.float32) * 0.1
    b1 = jax.random.normal(kb1, (C,), jnp.float32) * 0.1
    w2 = jax.random.normal(kw2, (3, 3, C, C), jnp.float32) * 0.1
    b2 = jax.random.normal(kb2, (C,), jnp.float32) * 0.1

    out = jax.block_until_ready(resnet_block(x, w1, b1, w2, b2))
    ref = jax.block_until_ready(resnet_block_reference(x, w1, b1, w2, b2))

    assert out.shape == (N, C, H, W), out.shape
    err = float(jnp.max(jnp.abs(out - ref)))
    # Kernel uses bf16 MXU operands (single-pass matmul) vs. the f32/HIGHEST
    # reference; expected max abs error is O(1e-2) on O(1) normalized values.
    assert err < 5e-2, err
    print("KERNEL_OK")
</pallas_src>

<mosaic_0001>
module attributes {stable_mosaic.version = 11 : i64} {
  func.func @resnet_block_kernel(%arg0: i32, %arg1: memref<1x16x16x4xf32, #tpu.memory_space<vmem>>, %arg2: memref<3x3x4x4xbf16, #tpu.memory_space<vmem>>, %arg3: memref<3x3x4x4xbf16, #tpu.memory_space<vmem>>, %arg4: memref<1x16x16x4xf32, #tpu.memory_space<vmem>>, %arg5: memref<18x18x4xf32, #tpu.memory_space<vmem>>, %arg6: memref<18x18x4xf32, #tpu.memory_space<vmem>>) attributes {dimension_semantics = [#tpu.dimension_semantics<parallel>], iteration_bounds = array<i64: 2>, scalar_prefetch = 0 : i64, scratch_operands = 2 : i64, tpu.core_type = #tpu.core_type<tc>, window_params = [{transform_indices = @transform_0, window_bounds = array<i64: 1, 16, 16, 4>}, {pipeline_mode = #tpu.pipeline_mode<synchronous>, transform_indices = @transform_1, window_bounds = array<i64: 3, 3, 4, 4>}, {pipeline_mode = #tpu.pipeline_mode<synchronous>, transform_indices = @transform_2, window_bounds = array<i64: 3, 3, 4, 4>}, {transform_indices = @transform_3, window_bounds = array<i64: 1, 16, 16, 4>}]} {
    %cst = arith.constant 0.000000e+00 : f32
    %0 = vector.broadcast %cst : f32 to vector<1x18x4xf32>
    %cst_0 = arith.constant 0.000000e+00 : f32
    %1 = vector.broadcast %cst_0 : f32 to vector<18x1x4xf32>
    %c0 = arith.constant 0 : index
    %c0_1 = arith.constant 0 : index
    %c0_2 = arith.constant 0 : index
    %2 = vector.load %arg5[%c0, %c0_1, %c0_2] : memref<18x18x4xf32, #tpu.memory_space<vmem>>, vector<1x18x4xf32>
    tpu.vector_store %arg5[%c0, %c0_1, %c0_2], %0 {strides = array<i32>} : memref<18x18x4xf32, #tpu.memory_space<vmem>>, vector<1x18x4xf32>,
    %c17 = arith.constant 17 : index
    %c0_3 = arith.constant 0 : index
    %c0_4 = arith.constant 0 : index
    %3 = vector.load %arg5[%c17, %c0_3, %c0_4] : memref<18x18x4xf32, #tpu.memory_space<vmem>>, vector<1x18x4xf32>
    tpu.vector_store %arg5[%c17, %c0_3, %c0_4], %0 {strides = array<i32>} : memref<18x18x4xf32, #tpu.memory_space<vmem>>, vector<1x18x4xf32>,
    %c0_5 = arith.constant 0 : index
    %c0_6 = arith.constant 0 : index
    %c0_7 = arith.constant 0 : index
    %4 = vector.load %arg5[%c0_5, %c0_6, %c0_7] : memref<18x18x4xf32, #tpu.memory_space<vmem>>, vector<18x1x4xf32>
    tpu.vector_store %arg5[%c0_5, %c0_6, %c0_7], %1 {strides = array<i32>} : memref<18x18x4xf32, #tpu.memory_space<vmem>>, vector<18x1x4xf32>,
    %c0_8 = arith.constant 0 : index
    %c17_9 = arith.constant 17 : index
    %c0_10 = arith.constant 0 : index
    %5 = vector.load %arg5[%c0_8, %c17_9, %c0_10] : memref<18x18x4xf32, #tpu.memory_space<vmem>>, vector<18x1x4xf32>
    tpu.vector_store %arg5[%c0_8, %c17_9, %c0_10], %1 {strides = array<i32>} : memref<18x18x4xf32, #tpu.memory_space<vmem>>, vector<18x1x4xf32>,
    %cst_11 = arith.constant 0.000000e+00 : f32
    %6 = vector.broadcast %cst_11 : f32 to vector<1x18x4xf32>
    %cst_12 = arith.constant 0.000000e+00 : f32
    %7 = vector.broadcast %cst_12 : f32 to vector<18x1x4xf32>
    %c0_13 = arith.constant 0 : index
    %c0_14 = arith.constant 0 : index
    %c0_15 = arith.constant 0 : index
    %8 = vector.load %arg6[%c0_13, %c0_14, %c0_15] : memref<18x18x4xf32, #tpu.memory_space<vmem>>, vector<1x18x4xf32>
    tpu.vector_store %arg6[%c0_13, %c0_14, %c0_15], %6 {strides = array<i32>} : memref<18x18x4xf32, #tpu.memory_space<vmem>>, vector<1x18x4xf32>,
    %c17_16 = arith.constant 17 : index
    %c0_17 = arith.constant 0 : index
    %c0_18 = arith.constant 0 : index
    %9 = vector.load %arg6[%c17_16, %c0_17, %c0_18] : memref<18x18x4xf32, #tpu.memory_space<vmem>>, vector<1x18x4xf32>
    tpu.vector_store %arg6[%c17_16, %c0_17, %c0_18], %6 {strides = array<i32>} : memref<18x18x4xf32, #tpu.memory_space<vmem>>, vector<1x18x4xf32>,
    %c0_19 = arith.constant 0 : index
    %c0_20 = arith.constant 0 : index
    %c0_21 = arith.constant 0 : index
    %10 = vector.load %arg6[%c0_19, %c0_20, %c0_21] : memref<18x18x4xf32, #tpu.memory_space<vmem>>, vector<18x1x4xf32>
    tpu.vector_store %arg6[%c0_19, %c0_20, %c0_21], %7 {strides = array<i32>} : memref<18x18x4xf32, #tpu.memory_space<vmem>>, vector<18x1x4xf32>,
    %c0_22 = arith.constant 0 : index
    %c17_23 = arith.constant 17 : index
    %c0_24 = arith.constant 0 : index
    %11 = vector.load %arg6[%c0_22, %c17_23, %c0_24] : memref<18x18x4xf32, #tpu.memory_space<vmem>>, vector<18x1x4xf32>
    tpu.vector_store %arg6[%c0_22, %c17_23, %c0_24], %7 {strides = array<i32>} : memref<18x18x4xf32, #tpu.memory_space<vmem>>, vector<18x1x4xf32>,
    %c0_25 = arith.constant 0 : index
    %c0_26 = arith.constant 0 : index
    %c0_27 = arith.constant 0 : index
    %c0_28 = arith.constant 0 : index
    %12 = vector.load %arg1[%c0_25, %c0_26, %c0_27, %c0_28] : memref<1x16x16x4xf32, #tpu.memory_space<vmem>>, vector<1x16x16x4xf32>
    %13 = vector.shape_cast %12 : vector<1x16x16x4xf32> to vector<16x16x4xf32>
    %c1 = arith.constant 1 : index
    %c1_29 = arith.constant 1 : index
    %c0_30 = arith.constant 0 : index
    %14 = vector.load %arg5[%c1, %c1_29, %c0_30] : memref<18x18x4xf32, #tpu.memory_space<vmem>>, vector<16x16x4xf32>
    tpu.vector_store %arg5[%c1, %c1_29, %c0_30], %13 {strides = array<i32>} : memref<18x18x4xf32, #tpu.memory_space<vmem>>, vector<16x16x4xf32>,
    %c0_31 = arith.constant 0 : index
    %c0_32 = arith.constant 0 : index
    %c0_33 = arith.constant 0 : index
    %15 = vector.load %arg5[%c0_31, %c0_32, %c0_33] : memref<18x18x4xf32, #tpu.memory_space<vmem>>, vector<18x18x4xf32>
    %c0_34 = arith.constant 0 : index
    %c0_35 = arith.constant 0 : index
    %c0_36 = arith.constant 0 : index
    %c0_37 = arith.constant 0 : index
    %16 = vector.load %arg2[%c0_34, %c0_35, %c0_36, %c0_37] : memref<3x3x4x4xbf16, #tpu.memory_space<vmem>>, vector<3x3x4x4xbf16>
    %cst_38 = arith.constant 0.000000e+00 : f32
    %17 = vector.broadcast %cst_38 : f32 to vector<256x4xf32>
    %18 = vector.extract_strided_slice %15 {offsets = [0, 0, 0], sizes = [16, 16, 4], strides = [1, 1, 1]} : vector<18x18x4xf32> to vector<16x16x4xf32>
    %19 = vector.shape_cast %18 : vector<16x16x4xf32> to vector<256x4xf32>
    %20 = arith.truncf %19 : vector<256x4xf32> to vector<256x4xbf16>
    %21 = vector.extract_strided_slice %16 {offsets = [0, 0, 0, 0], sizes = [1, 1, 4, 4], strides = [1, 1, 1, 1]} : vector<3x3x4x4xbf16> to vector<1x1x4x4xbf16>
    %22 = vector.shape_cast %21 : vector<1x1x4x4xbf16> to vector<4x4xbf16>
    %cst_39 = arith.constant dense<0.000000e+00> : vector<256x4xf32>
    %23 = tpu.matmul %20, %22, %cst_39 {dimension_numbers = #tpu.dot_dimension_numbers<[1], [0], [0], [1], [0, 0, 1, 1], [], []>} : vector<256x4xbf16>, vector<4x4xbf16>, vector<256x4xf32> -> vector<256x4xf32>
    %24 = arith.addf %17, %23 : vector<256x4xf32>
    %25 = vector.extract_strided_slice %15 {offsets = [0, 1, 0], sizes = [16, 16, 4], strides = [1, 1, 1]} : vector<18x18x4xf32> to vector<16x16x4xf32>
    %26 = vector.shape_cast %25 : vector<16x16x4xf32> to vector<256x4xf32>
    %27 = arith.truncf %26 : vector<256x4xf32> to vector<256x4xbf16>
    %28 = vector.extract_strided_slice %16 {offsets = [0, 1, 0, 0], sizes = [1, 1, 4, 4], strides = [1, 1, 1, 1]} : vector<3x3x4x4xbf16> to vector<1x1x4x4xbf16>
    %29 = vector.shape_cast %28 : vector<1x1x4x4xbf16> to vector<4x4xbf16>
    %cst_40 = arith.constant dense<0.000000e+00> : vector<256x4xf32>
    %30 = tpu.matmul %27, %29, %cst_40 {dimension_numbers = #tpu.dot_dimension_numbers<[1], [0], [0], [1], [0, 0, 1, 1], [], []>} : vector<256x4xbf16>, vector<4x4xbf16>, vector<256x4xf32> -> vector<256x4xf32>
    %31 = arith.addf %24, %30 : vector<256x4xf32>
    %32 = vector.extract_strided_slice %15 {offsets = [0, 2, 0], sizes = [16, 16, 4], strides = [1, 1, 1]} : vector<18x18x4xf32> to vector<16x16x4xf32>
    %33 = vector.shape_cast %32 : vector<16x16x4xf32> to vector<256x4xf32>
    %34 = arith.truncf %33 : vector<256x4xf32> to vector<256x4xbf16>
    %35 = vector.extract_strided_slice %16 {offsets = [0, 2, 0, 0], sizes = [1, 1, 4, 4], strides = [1, 1, 1, 1]} : vector<3x3x4x4xbf16> to vector<1x1x4x4xbf16>
    %36 = vector.shape_cast %35 : vector<1x1x4x4xbf16> to vector<4x4xbf16>
    %cst_41 = arith.constant dense<0.000000e+00> : vector<256x4xf32>
    %37 = tpu.matmul %34, %36, %cst_41 {dimension_numbers = #tpu.dot_dimension_numbers<[1], [0], [0], [1], [0, 0, 1, 1], [], []>} : vector<256x4xbf16>, vector<4x4xbf16>, vector<256x4xf32> -> vector<256x4xf32>
    %38 = arith.addf %31, %37 : vector<256x4xf32>
    %39 = vector.extract_strided_slice %15 {offsets = [1, 0, 0], sizes = [16, 16, 4], strides = [1, 1, 1]} : vector<18x18x4xf32> to vector<16x16x4xf32>
    %40 = vector.shape_cast %39 : vector<16x16x4xf32> to vector<256x4xf32>
    %41 = arith.truncf %40 : vector<256x4xf32> to vector<256x4xbf16>
    %42 = vector.extract_strided_slice %16 {offsets = [1, 0, 0, 0], sizes = [1, 1, 4, 4], strides = [1, 1, 1, 1]} : vector<3x3x4x4xbf16> to vector<1x1x4x4xbf16>
    %43 = vector.shape_cast %42 : vector<1x1x4x4xbf16> to vector<4x4xbf16>
    %cst_42 = arith.constant dense<0.000000e+00> : vector<256x4xf32>
    %44 = tpu.matmul %41, %43, %cst_42 {dimension_numbers = #tpu.dot_dimension_numbers<[1], [0], [0], [1], [0, 0, 1, 1], [], []>} : vector<256x4xbf16>, vector<4x4xbf16>, vector<256x4xf32> -> vector<256x4xf32>
    %45 = arith.addf %38, %44 : vector<256x4xf32>
    %46 = vector.extract_strided_slice %15 {offsets = [1, 1, 0], sizes = [16, 16, 4], strides = [1, 1, 1]} : vector<18x18x4xf32> to vector<16x16x4xf32>
    %47 = vector.shape_cast %46 : vector<16x16x4xf32> to vector<256x4xf32>
    %48 = arith.truncf %47 : vector<256x4xf32> to vector<256x4xbf16>
    %49 = vector.extract_strided_slice %16 {offsets = [1, 1, 0, 0], sizes = [1, 1, 4, 4], strides = [1, 1, 1, 1]} : vector<3x3x4x4xbf16> to vector<1x1x4x4xbf16>
    %50 = vector.shape_cast %49 : vector<1x1x4x4xbf16> to vector<4x4xbf16>
    %cst_43 = arith.constant dense<0.000000e+00> : vector<256x4xf32>
    %51 = tpu.matmul %48, %50, %cst_43 {dimension_numbers = #tpu.dot_dimension_numbers<[1], [0], [0], [1], [0, 0, 1, 1], [], []>} : vector<256x4xbf16>, vector<4x4xbf16>, vector<256x4xf32> -> vector<256x4xf32>
    %52 = arith.addf %45, %51 : vector<256x4xf32>
    %53 = vector.extract_strided_slice %15 {offsets = [1, 2, 0], sizes = [16, 16, 4], strides = [1, 1, 1]} : vector<18x18x4xf32> to vector<16x16x4xf32>
    %54 = vector.shape_cast %53 : vector<16x16x4xf32> to vector<256x4xf32>
    %55 = arith.truncf %54 : vector<256x4xf32> to vector<256x4xbf16>
    %56 = vector.extract_strided_slice %16 {offsets = [1, 2, 0, 0], sizes = [1, 1, 4, 4], strides = [1, 1, 1, 1]} : vector<3x3x4x4xbf16> to vector<1x1x4x4xbf16>
    %57 = vector.shape_cast %56 : vector<1x1x4x4xbf16> to vector<4x4xbf16>
    %cst_44 = arith.constant dense<0.000000e+00> : vector<256x4xf32>
    %58 = tpu.matmul %55, %57, %cst_44 {dimension_numbers = #tpu.dot_dimension_numbers<[1], [0], [0], [1], [0, 0, 1, 1], [], []>} : vector<256x4xbf16>, vector<4x4xbf16>, vector<256x4xf32> -> vector<256x4xf32>
    %59 = arith.addf %52, %58 : vector<256x4xf32>
    %60 = vector.extract_strided_slice %15 {offsets = [2, 0, 0], sizes = [16, 16, 4], strides = [1, 1, 1]} : vector<18x18x4xf32> to vector<16x16x4xf32>
    %61 = vector.shape_cast %60 : vector<16x16x4xf32> to vector<256x4xf32>
    %62 = arith.truncf %61 : vector<256x4xf32> to vector<256x4xbf16>
    %63 = vector.extract_strided_slice %16 {offsets = [2, 0, 0, 0], sizes = [1, 1, 4, 4], strides = [1, 1, 1, 1]} : vector<3x3x4x4xbf16> to vector<1x1x4x4xbf16>
    %64 = vector.shape_cast %63 : vector<1x1x4x4xbf16> to vector<4x4xbf16>
    %cst_45 = arith.constant dense<0.000000e+00> : vector<256x4xf32>
    %65 = tpu.matmul %62, %64, %cst_45 {dimension_numbers = #tpu.dot_dimension_numbers<[1], [0], [0], [1], [0, 0, 1, 1], [], []>} : vector<256x4xbf16>, vector<4x4xbf16>, vector<256x4xf32> -> vector<256x4xf32>
    %66 = arith.addf %59, %65 : vector<256x4xf32>
    %67 = vector.extract_strided_slice %15 {offsets = [2, 1, 0], sizes = [16, 16, 4], strides = [1, 1, 1]} : vector<18x18x4xf32> to vector<16x16x4xf32>
    %68 = vector.shape_cast %67 : vector<16x16x4xf32> to vector<256x4xf32>
    %69 = arith.truncf %68 : vector<256x4xf32> to vector<256x4xbf16>
    %70 = vector.extract_strided_slice %16 {offsets = [2, 1, 0, 0], sizes = [1, 1, 4, 4], strides = [1, 1, 1, 1]} : vector<3x3x4x4xbf16> to vector<1x1x4x4xbf16>
    %71 = vector.shape_cast %70 : vector<1x1x4x4xbf16> to vector<4x4xbf16>
    %cst_46 = arith.constant dense<0.000000e+00> : vector<256x4xf32>
    %72 = tpu.matmul %69, %71, %cst_46 {dimension_numbers = #tpu.dot_dimension_numbers<[1], [0], [0], [1], [0, 0, 1, 1], [], []>} : vector<256x4xbf16>, vector<4x4xbf16>, vector<256x4xf32> -> vector<256x4xf32>
    %73 = arith.addf %66, %72 : vector<256x4xf32>
    %74 = vector.extract_strided_slice %15 {offsets = [2, 2, 0], sizes = [16, 16, 4], strides = [1, 1, 1]} : vector<18x18x4xf32> to vector<16x16x4xf32>
    %75 = vector.shape_cast %74 : vector<16x16x4xf32> to vector<256x4xf32>
    %76 = arith.truncf %75 : vector<256x4xf32> to vector<256x4xbf16>
    %77 = vector.extract_strided_slice %16 {offsets = [2, 2, 0, 0], sizes = [1, 1, 4, 4], strides = [1, 1, 1, 1]} : vector<3x3x4x4xbf16> to vector<1x1x4x4xbf16>
    %78 = vector.shape_cast %77 : vector<1x1x4x4xbf16> to vector<4x4xbf16>
    %cst_47 = arith.constant dense<0.000000e+00> : vector<256x4xf32>
    %79 = tpu.matmul %76, %78, %cst_47 {dimension_numbers = #tpu.dot_dimension_numbers<[1], [0], [0], [1], [0, 0, 1, 1], [], []>} : vector<256x4xbf16>, vector<4x4xbf16>, vector<256x4xf32> -> vector<256x4xf32>
    %80 = arith.addf %73, %79 : vector<256x4xf32>
    %81 = vector.shape_cast %80 : vector<256x4xf32> to vector<16x16x4xf32>
    %cst_48 = arith.constant dense<0.000000e+00> : vector<4xf32>
    %82 = vector.multi_reduction <add>, %81, %cst_48 [0, 1] : vector<16x16x4xf32> to vector<4xf32>
    %83 = vector.shape_cast %82 : vector<4xf32> to vector<1x1x4xf32>
    %cst_49 = arith.constant 2.560000e+02 : f32
    %84 = vector.broadcast %cst_49 : f32 to vector<1x1x4xf32>
    %85 = arith.divf %83, %84 : vector<1x1x4xf32>
    %86 = arith.mulf %81, %81 : vector<16x16x4xf32>
    %cst_50 = arith.constant dense<0.000000e+00> : vector<4xf32>
    %87 = vector.multi_reduction <add>, %86, %cst_50 [0, 1] : vector<16x16x4xf32> to vector<4xf32>
    %88 = vector.shape_cast %87 : vector<4xf32> to vector<1x1x4xf32>
    %cst_51 = arith.constant 2.560000e+02 : f32
    %89 = vector.broadcast %cst_51 : f32 to vector<1x1x4xf32>
    %90 = arith.divf %88, %89 : vector<1x1x4xf32>
    %91 = arith.mulf %85, %85 : vector<1x1x4xf32>
    %92 = arith.subf %90, %91 : vector<1x1x4xf32>
    %cst_52 = arith.constant 0.000000e+00 : f32
    %93 = vector.broadcast %cst_52 : f32 to vector<1x1x4xf32>
    %94 = arith.maximumf %92, %93 : vector<1x1x4xf32>
    %95 = vector.broadcast %85 : vector<1x1x4xf32> to vector<16x16x4xf32>
    %96 = arith.subf %81, %95 : vector<16x16x4xf32>
    %cst_53 = arith.constant 9.99999974E-6 : f32
    %97 = vector.broadcast %cst_53 : f32 to vector<1x1x4xf32>
    %98 = arith.addf %94, %97 : vector<1x1x4xf32>
    %99 = math.rsqrt %98 : vector<1x1x4xf32>
    %100 = vector.broadcast %99 : vector<1x1x4xf32> to vector<16x16x4xf32>
    %101 = arith.mulf %96, %100 : vector<16x16x4xf32>
    %cst_54 = arith.constant 0.000000e+00 : f32
    %102 = vector.broadcast %cst_54 : f32 to vector<16x16x4xf32>
    %103 = arith.maximumf %101, %102 : vector<16x16x4xf32>
    %c1_55 = arith.constant 1 : index
    %c1_56 = arith.constant 1 : index
    %c0_57 = arith.constant 0 : index
    %104 = vector.load %arg6[%c1_55, %c1_56, %c0_57] : memref<18x18x4xf32, #tpu.memory_space<vmem>>, vector<16x16x4xf32>
    tpu.vector_store %arg6[%c1_55, %c1_56, %c0_57], %103 {strides = array<i32>} : memref<18x18x4xf32, #tpu.memory_space<vmem>>, vector<16x16x4xf32>,
    %c0_58 = arith.constant 0 : index
    %c0_59 = arith.constant 0 : index
    %c0_60 = arith.constant 0 : index
    %105 = vector.load %arg6[%c0_58, %c0_59, %c0_60] : memref<18x18x4xf32, #tpu.memory_space<vmem>>, vector<18x18x4xf32>
    %c0_61 = arith.constant 0 : index
    %c0_62 = arith.constant 0 : index
    %c0_63 = arith.constant 0 : index
    %c0_64 = arith.constant 0 : index
    %106 = vector.load %arg3[%c0_61, %c0_62, %c0_63, %c0_64] : memref<3x3x4x4xbf16, #tpu.memory_space<vmem>>, vector<3x3x4x4xbf16>
    %cst_65 = arith.constant 0.000000e+00 : f32
    %107 = vector.broadcast %cst_65 : f32 to vector<256x4xf32>
    %108 = vector.extract_strided_slice %105 {offsets = [0, 0, 0], sizes = [16, 16, 4], strides = [1, 1, 1]} : vector<18x18x4xf32> to vector<16x16x4xf32>
    %109 = vector.shape_cast %108 : vector<16x16x4xf32> to vector<256x4xf32>
    %110 = arith.truncf %109 : vector<256x4xf32> to vector<256x4xbf16>
    %111 = vector.extract_strided_slice %106 {offsets = [0, 0, 0, 0], sizes = [1, 1, 4, 4], strides = [1, 1, 1, 1]} : vector<3x3x4x4xbf16> to vector<1x1x4x4xbf16>
    %112 = vector.shape_cast %111 : vector<1x1x4x4xbf16> to vector<4x4xbf16>
    %cst_66 = arith.constant dense<0.000000e+00> : vector<256x4xf32>
    %113 = tpu.matmul %110, %112, %cst_66 {dimension_numbers = #tpu.dot_dimension_numbers<[1], [0], [0], [1], [0, 0, 1, 1], [], []>} : vector<256x4xbf16>, vector<4x4xbf16>, vector<256x4xf32> -> vector<256x4xf32>
    %114 = arith.addf %107, %113 : vector<256x4xf32>
    %115 = vector.extract_strided_slice %105 {offsets = [0, 1, 0], sizes = [16, 16, 4], strides = [1, 1, 1]} : vector<18x18x4xf32> to vector<16x16x4xf32>
    %116 = vector.shape_cast %115 : vector<16x16x4xf32> to vector<256x4xf32>
    %117 = arith.truncf %116 : vector<256x4xf32> to vector<256x4xbf16>
    %118 = vector.extract_strided_slice %106 {offsets = [0, 1, 0, 0], sizes = [1, 1, 4, 4], strides = [1, 1, 1, 1]} : vector<3x3x4x4xbf16> to vector<1x1x4x4xbf16>
    %119 = vector.shape_cast %118 : vector<1x1x4x4xbf16> to vector<4x4xbf16>
    %cst_67 = arith.constant dense<0.000000e+00> : vector<256x4xf32>
    %120 = tpu.matmul %117, %119, %cst_67 {dimension_numbers = #tpu.dot_dimension_numbers<[1], [0], [0], [1], [0, 0, 1, 1], [], []>} : vector<256x4xbf16>, vector<4x4xbf16>, vector<256x4xf32> -> vector<256x4xf32>
    %121 = arith.addf %114, %120 : vector<256x4xf32>
    %122 = vector.extract_strided_slice %105 {offsets = [0, 2, 0], sizes = [16, 16, 4], strides = [1, 1, 1]} : vector<18x18x4xf32> to vector<16x16x4xf32>
    %123 = vector.shape_cast %122 : vector<16x16x4xf32> to vector<256x4xf32>
    %124 = arith.truncf %123 : vector<256x4xf32> to vector<256x4xbf16>
    %125 = vector.extract_strided_slice %106 {offsets = [0, 2, 0, 0], sizes = [1, 1, 4, 4], strides = [1, 1, 1, 1]} : vector<3x3x4x4xbf16> to vector<1x1x4x4xbf16>
    %126 = vector.shape_cast %125 : vector<1x1x4x4xbf16> to vector<4x4xbf16>
    %cst_68 = arith.constant dense<0.000000e+00> : vector<256x4xf32>
    %127 = tpu.matmul %124, %126, %cst_68 {dimension_numbers = #tpu.dot_dimension_numbers<[1], [0], [0], [1], [0, 0, 1, 1], [], []>} : vector<256x4xbf16>, vector<4x4xbf16>, vector<256x4xf32> -> vector<256x4xf32>
    %128 = arith.addf %121, %127 : vector<256x4xf32>
    %129 = vector.extract_strided_slice %105 {offsets = [1, 0, 0], sizes = [16, 16, 4], strides = [1, 1, 1]} : vector<18x18x4xf32> to vector<16x16x4xf32>
    %130 = vector.shape_cast %129 : vector<16x16x4xf32> to vector<256x4xf32>
    %131 = arith.truncf %130 : vector<256x4xf32> to vector<256x4xbf16>
    %132 = vector.extract_strided_slice %106 {offsets = [1, 0, 0, 0], sizes = [1, 1, 4, 4], strides = [1, 1, 1, 1]} : vector<3x3x4x4xbf16> to vector<1x1x4x4xbf16>
    %133 = vector.shape_cast %132 : vector<1x1x4x4xbf16> to vector<4x4xbf16>
    %cst_69 = arith.constant dense<0.000000e+00> : vector<256x4xf32>
    %134 = tpu.matmul %131, %133, %cst_69 {dimension_numbers = #tpu.dot_dimension_numbers<[1], [0], [0], [1], [0, 0, 1, 1], [], []>} : vector<256x4xbf16>, vector<4x4xbf16>, vector<256x4xf32> -> vector<256x4xf32>
    %135 = arith.addf %128, %134 : vector<256x4xf32>
    %136 = vector.extract_strided_slice %105 {offsets = [1, 1, 0], sizes = [16, 16, 4], strides = [1, 1, 1]} : vector<18x18x4xf32> to vector<16x16x4xf32>
    %137 = vector.shape_cast %136 : vector<16x16x4xf32> to vector<256x4xf32>
    %138 = arith.truncf %137 : vector<256x4xf32> to vector<256x4xbf16>
    %139 = vector.extract_strided_slice %106 {offsets = [1, 1, 0, 0], sizes = [1, 1, 4, 4], strides = [1, 1, 1, 1]} : vector<3x3x4x4xbf16> to vector<1x1x4x4xbf16>
    %140 = vector.shape_cast %139 : vector<1x1x4x4xbf16> to vector<4x4xbf16>
    %cst_70 = arith.constant dense<0.000000e+00> : vector<256x4xf32>
    %141 = tpu.matmul %138, %140, %cst_70 {dimension_numbers = #tpu.dot_dimension_numbers<[1], [0], [0], [1], [0, 0, 1, 1], [], []>} : vector<256x4xbf16>, vector<4x4xbf16>, vector<256x4xf32> -> vector<256x4xf32>
    %142 = arith.addf %135, %141 : vector<256x4xf32>
    %143 = vector.extract_strided_slice %105 {offsets = [1, 2, 0], sizes = [16, 16, 4], strides = [1, 1, 1]} : vector<18x18x4xf32> to vector<16x16x4xf32>
    %144 = vector.shape_cast %143 : vector<16x16x4xf32> to vector<256x4xf32>
    %145 = arith.truncf %144 : vector<256x4xf32> to vector<256x4xbf16>
    %146 = vector.extract_strided_slice %106 {offsets = [1, 2, 0, 0], sizes = [1, 1, 4, 4], strides = [1, 1, 1, 1]} : vector<3x3x4x4xbf16> to vector<1x1x4x4xbf16>
    %147 = vector.shape_cast %146 : vector<1x1x4x4xbf16> to vector<4x4xbf16>
    %cst_71 = arith.constant dense<0.000000e+00> : vector<256x4xf32>
    %148 = tpu.matmul %145, %147, %cst_71 {dimension_numbers = #tpu.dot_dimension_numbers<[1], [0], [0], [1], [0, 0, 1, 1], [], []>} : vector<256x4xbf16>, vector<4x4xbf16>, vector<256x4xf32> -> vector<256x4xf32>
    %149 = arith.addf %142, %148 : vector<256x4xf32>
    %150 = vector.extract_strided_slice %105 {offsets = [2, 0, 0], sizes = [16, 16, 4], strides = [1, 1, 1]} : vector<18x18x4xf32> to vector<16x16x4xf32>
    %151 = vector.shape_cast %150 : vector<16x16x4xf32> to vector<256x4xf32>
    %152 = arith.truncf %151 : vector<256x4xf32> to vector<256x4xbf16>
    %153 = vector.extract_strided_slice %106 {offsets = [2, 0, 0, 0], sizes = [1, 1, 4, 4], strides = [1, 1, 1, 1]} : vector<3x3x4x4xbf16> to vector<1x1x4x4xbf16>
    %154 = vector.shape_cast %153 : vector<1x1x4x4xbf16> to vector<4x4xbf16>
    %cst_72 = arith.constant dense<0.000000e+00> : vector<256x4xf32>
    %155 = tpu.matmul %152, %154, %cst_72 {dimension_numbers = #tpu.dot_dimension_numbers<[1], [0], [0], [1], [0, 0, 1, 1], [], []>} : vector<256x4xbf16>, vector<4x4xbf16>, vector<256x4xf32> -> vector<256x4xf32>
    %156 = arith.addf %149, %155 : vector<256x4xf32>
    %157 = vector.extract_strided_slice %105 {offsets = [2, 1, 0], sizes = [16, 16, 4], strides = [1, 1, 1]} : vector<18x18x4xf32> to vector<16x16x4xf32>
    %158 = vector.shape_cast %157 : vector<16x16x4xf32> to vector<256x4xf32>
    %159 = arith.truncf %158 : vector<256x4xf32> to vector<256x4xbf16>
    %160 = vector.extract_strided_slice %106 {offsets = [2, 1, 0, 0], sizes = [1, 1, 4, 4], strides = [1, 1, 1, 1]} : vector<3x3x4x4xbf16> to vector<1x1x4x4xbf16>
    %161 = vector.shape_cast %160 : vector<1x1x4x4xbf16> to vector<4x4xbf16>
    %cst_73 = arith.constant dense<0.000000e+00> : vector<256x4xf32>
    %162 = tpu.matmul %159, %161, %cst_73 {dimension_numbers = #tpu.dot_dimension_numbers<[1], [0], [0], [1], [0, 0, 1, 1], [], []>} : vector<256x4xbf16>, vector<4x4xbf16>, vector<256x4xf32> -> vector<256x4xf32>
    %163 = arith.addf %156, %162 : vector<256x4xf32>
    %164 = vector.extract_strided_slice %105 {offsets = [2, 2, 0], sizes = [16, 16, 4], strides = [1, 1, 1]} : vector<18x18x4xf32> to vector<16x16x4xf32>
    %165 = vector.shape_cast %164 : vector<16x16x4xf32> to vector<256x4xf32>
    %166 = arith.truncf %165 : vector<256x4xf32> to vector<256x4xbf16>
    %167 = vector.extract_strided_slice %106 {offsets = [2, 2, 0, 0], sizes = [1, 1, 4, 4], strides = [1, 1, 1, 1]} : vector<3x3x4x4xbf16> to vector<1x1x4x4xbf16>
    %168 = vector.shape_cast %167 : vector<1x1x4x4xbf16> to vector<4x4xbf16>
    %cst_74 = arith.constant dense<0.000000e+00> : vector<256x4xf32>
    %169 = tpu.matmul %166, %168, %cst_74 {dimension_numbers = #tpu.dot_dimension_numbers<[1], [0], [0], [1], [0, 0, 1, 1], [], []>} : vector<256x4xbf16>, vector<4x4xbf16>, vector<256x4xf32> -> vector<256x4xf32>
    %170 = arith.addf %163, %169 : vector<256x4xf32>
    %171 = vector.shape_cast %170 : vector<256x4xf32> to vector<16x16x4xf32>
    %cst_75 = arith.constant dense<0.000000e+00> : vector<4xf32>
    %172 = vector.multi_reduction <add>, %171, %cst_75 [0, 1] : vector<16x16x4xf32> to vector<4xf32>
    %173 = vector.shape_cast %172 : vector<4xf32> to vector<1x1x4xf32>
    %cst_76 = arith.constant 2.560000e+02 : f32
    %174 = vector.broadcast %cst_76 : f32 to vector<1x1x4xf32>
    %175 = arith.divf %173, %174 : vector<1x1x4xf32>
    %176 = arith.mulf %171, %171 : vector<16x16x4xf32>
    %cst_77 = arith.constant dense<0.000000e+00> : vector<4xf32>
    %177 = vector.multi_reduction <add>, %176, %cst_77 [0, 1] : vector<16x16x4xf32> to vector<4xf32>
    %178 = vector.shape_cast %177 : vector<4xf32> to vector<1x1x4xf32>
    %cst_78 = arith.constant 2.560000e+02 : f32
    %179 = vector.broadcast %cst_78 : f32 to vector<1x1x4xf32>
    %180 = arith.divf %178, %179 : vector<1x1x4xf32>
    %181 = arith.mulf %175, %175 : vector<1x1x4xf32>
    %182 = arith.subf %180, %181 : vector<1x1x4xf32>
    %cst_79 = arith.constant 0.000000e+00 : f32
    %183 = vector.broadcast %cst_79 : f32 to vector<1x1x4xf32>
    %184 = arith.maximumf %182, %183 : vector<1x1x4xf32>
    %185 = vector.broadcast %175 : vector<1x1x4xf32> to vector<16x16x4xf32>
    %186 = arith.subf %171, %185 : vector<16x16x4xf32>
    %cst_80 = arith.constant 9.99999974E-6 : f32
    %187 = vector.broadcast %cst_80 : f32 to vector<1x1x4xf32>
    %188 = arith.addf %184, %187 : vector<1x1x4xf32>
    %189 = math.rsqrt %188 : vector<1x1x4xf32>
    %190 = vector.broadcast %189 : vector<1x1x4xf32> to vector<16x16x4xf32>
    %191 = arith.mulf %186, %190 : vector<16x16x4xf32>
    %192 = arith.addf %13, %191 : vector<16x16x4xf32>
    %c0_81 = arith.constant 0 : index
    %c0_82 = arith.constant 0 : index
    %c0_83 = arith.constant 0 : index
    %c0_84 = arith.constant 0 : index
    %193 = vector.load %arg4[%c0_81, %c0_82, %c0_83, %c0_84] : memref<1x16x16x4xf32, #tpu.memory_space<vmem>>, vector<1x16x16x4xf32>
    %194 = vector.shape_cast %193 : vector<1x16x16x4xf32> to vector<16x16x4xf32>
    %195 = vector.shape_cast %192 : vector<16x16x4xf32> to vector<1x16x16x4xf32>
    tpu.vector_store %arg4[%c0_81, %c0_82, %c0_83, %c0_84], %195 {strides = array<i32>} : memref<1x16x16x4xf32, #tpu.memory_space<vmem>>, vector<1x16x16x4xf32>,
    return
  }
  func.func @transform_0(%arg0: i32) -> (i32, i32, i32, i32) {
    %c0_i32 = arith.constant 0 : i32
    %c0_i32_0 = arith.constant 0 : i32
    %c0_i32_1 = arith.constant 0 : i32
    %c0_i32_2 = arith.constant 0 : i32
    return %arg0, %c0_i32, %c0_i32_0, %c0_i32_1 : i32, i32, i32, i32
  }
  func.func @transform_1(%arg0: i32) -> (i32, i32, i32, i32) {
    %c0_i32 = arith.constant 0 : i32
    %c0_i32_0 = arith.constant 0 : i32
    %c0_i32_1 = arith.constant 0 : i32
    %c0_i32_2 = arith.constant 0 : i32
    %c0_i32_3 = arith.constant 0 : i32
    return %c0_i32, %c0_i32_0, %c0_i32_1, %c0_i32_2 : i32, i32, i32, i32
  }
  func.func @transform_2(%arg0: i32) -> (i32, i32, i32, i32) {
    %c0_i32 = arith.constant 0 : i32
    %c0_i32_0 = arith.constant 0 : i32
    %c0_i32_1 = arith.constant 0 : i32
    %c0_i32_2 = arith.constant 0 : i32
    %c0_i32_3 = arith.constant 0 : i32
    return %c0_i32, %c0_i32_0, %c0_i32_1, %c0_i32_2 : i32, i32, i32, i32
  }
  func.func @transform_3(%arg0: i32) -> (i32, i32, i32, i32) {
    %c0_i32 = arith.constant 0 : i32
    %c0_i32_0 = arith.constant 0 : i32
    %c0_i32_1 = arith.constant 0 : i32
    %c0_i32_2 = arith.constant 0 : i32
    return %arg0, %c0_i32, %c0_i32_0, %c0_i32_1 : i32, i32, i32, i32
  }
}

</mosaic_0001>

<llo_original>
// kernel: resnet_block.1
$region0: #{resnet_block.1}
  #allocation0 [shape = 'u32[]', space=smem, size = 0x4, offset = 0x4, fixed_abs, tag = 'smem constant byte address 0x4 - core index']
  #allocation1 [shape = 'u32[144,128]{1,0:T(1,128)}', space=vmem, size = 0x12000, scoped, tag = 'internal scratch']
  #allocation2 [shape = 'f32[18,18,4]{2,1,0:T(8,128)}', space=vmem, size = 0x36000, scoped, tag = 'scratch operand']
  #allocation3 [shape = 'f32[18,18,4]{2,1,0:T(8,128)}', space=vmem, size = 0x36000, scoped, tag = 'scratch operand']
  %s0 = inlined_call_operand.hbm [shape: f32[2,16,16,4], index: 0, kind: input, shape index: {}]
  %s1 = inlined_call_operand.hbm [shape: bf16[3,3,4,4], index: 1, kind: input, shape index: {}]
  %s2 = inlined_call_operand.hbm [shape: bf16[3,3,4,4], index: 2, kind: input, shape index: {}]
  %s3 = inlined_call_operand.hbm [shape: f32[2,16,16,4], index: 3, kind: output, shape index: {}]
  %s4 = sld [smem:[#allocation0]]
  $region57: #{resnet_block.1} parent=0
    _
  %s6 = ssub.s32 1, %s4
  %s7 = scalar_select 0, %s6, %s4
  $region1: #{resnet_block.1} parent=0
    #allocation4 [shape = 'u8[262144]{0}', space=vmem, size = 0x40000, scoped, tag = 'input window, operand 0']
    #allocation5 [shape = 's32[2]{0}', space=sflag, size = 0x8, scoped, tag = 'scoped memory for resnet_block.1']
    #allocation6 [shape = 's32[2]{0}', space=sflag, size = 0x8, scoped, tag = 'scoped memory for resnet_block.1']
    #allocation7 [shape = 'u8[9216]{0}', space=vmem, size = 0x2400, scoped, tag = 'input window, operand 1, single buffered']
    #allocation8 [shape = 's32[1]{0}', space=sflag, size = 0x4, scoped, tag = 'scoped memory for resnet_block.1']
    #allocation9 [shape = 'u8[9216]{0}', space=vmem, size = 0x2400, scoped, tag = 'input window, operand 2, single buffered']
    #allocation10 [shape = 'u8[262144]{0}', space=vmem, size = 0x40000, scoped, tag = 'output window, operand 0']
    %8 = vsyncpa [#allocation5], 0
    %s9 = scalar_lea.sflag [#allocation5], 1
    %10 = vsyncpa %s9, 0
    %11 = vsyncpa [#allocation8], 0
    %12 = vsyncpa [#allocation6], 0
    %s13 = scalar_lea.sflag [#allocation6], 1
    %14 = vsyncpa %s13, 0
    loop: start=0, step=1, limit=4
    $region2: #{resnet_block.1} parent=1 // loop_pre_header
      _
    $region3: #{resnet_block.1} parent=1 // loop_header
      %s16 = sphi 0, %s20
      %p17 = scmp.ge.s32.totalorder %s16, 4
      %s26 = sphi 0, %s28
      %s29 = sphi 0, %s26
      %s30 = sphi 0, %s29
      %s46 = sphi 0, %s30
      %s50 = sphi 0, %s50
      %s52 = sphi 0, %s50
      %s53 = sphi 0, %s52
      %s67 = sphi 0, %s53
      %s71 = sphi 0, %s71
      %s73 = sphi 0, %s71
      %s74 = sphi 0, %s73
      %s88 = sphi 0, %s74
      %s94 = sphi 0, %s96
      %s97 = sphi 0, %s94
      %s98 = sphi 0, %s97
      %s114 = sphi 0, %s98
    $region4: #{resnet_block.1} parent=1 // loop_header_branch
      %19 = sbr.rel (%p17) target = $region8
    $region5: #{resnet_block.1} parent=1 // loop_body
      %s21 = ssub.s32 %s16, 1
      %s22 = ssub.s32 %s16, 2
      %s23 = sadd.s32 %s16, 1
      %s24 = ssub.s32 %s16, %s23
      %p25 = scmp.eq.s32.totalorder %s24, 0
      %s27 = sadd.s32 %s26, 1
      %s28 = scalar_select %p25, %s26, %s27
      %p31 = pneg %p25
      %p32 = scmp.eq.s32.totalorder %s16, 1
      %p33 = por %p31, %p32
      %p34 = scmp.ne.s32.totalorder %s26, %s29
      %p35 = scmp.eq.s32.totalorder %s16, 0
      %p36 = por %p34, %p35
      %p37 = scmp.ne.s32.totalorder %s26, %s29
      %p38 = scmp.eq.s32.totalorder %s21, 1
      %p39 = por %p37, %p38
      %p40 = scmp.ne.s32.totalorder %s29, %s30
      %p41 = scmp.eq.s32.totalorder %s21, 0
      %p42 = por %p40, %p41
      %p43 = scmp.ne.s32.totalorder %s29, %s30
      %p44 = scmp.eq.s32.totalorder %s22, 1
      %p45 = por %p43, %p44
      %p47 = scmp.ne.s32.totalorder %s30, %s46
      %p48 = scmp.eq.s32.totalorder %s22, 0
      %p49 = por %p47, %p48
      %s51 = sadd.s32 %s50, 1
      %p54 = scmp.eq.s32.totalorder %s16, 1
      %p55 = scmp.ne.s32.totalorder %s50, %s52
      %p56 = scmp.eq.s32.totalorder %s16, 0
      %p57 = por %p55, %p56
      %p58 = scmp.ne.s32.totalorder %s50, %s52
      %p59 = scmp.eq.s32.totalorder %s21, 1
      %p60 = por %p58, %p59
      %p61 = scmp.ne.s32.totalorder %s52, %s53
      %p62 = scmp.eq.s32.totalorder %s21, 0
      %p63 = por %p61, %p62
      %p64 = scmp.ne.s32.totalorder %s52, %s53
      %p65 = scmp.eq.s32.totalorder %s22, 1
      %p66 = por %p64, %p65
      %p68 = scmp.ne.s32.totalorder %s53, %s67
      %p69 = scmp.eq.s32.totalorder %s22, 0
      %p70 = por %p68, %p69
      %s72 = sadd.s32 %s71, 1
      %p75 = scmp.eq.s32.totalorder %s16, 1
      %p76 = scmp.ne.s32.totalorder %s71, %s73
      %p77 = scmp.eq.s32.totalorder %s16, 0
      %p78 = por %p76, %p77
      %p79 = scmp.ne.s32.totalorder %s71, %s73
      %p80 = scmp.eq.s32.totalorder %s21, 1
      %p81 = por %p79, %p80
      %p82 = scmp.ne.s32.totalorder %s73, %s74
      %p83 = scmp.eq.s32.totalorder %s21, 0
      %p84 = por %p82, %p83
      %p85 = scmp.ne.s32.totalorder %s73, %s74
      %p86 = scmp.eq.s32.totalorder %s22, 1
      %p87 = por %p85, %p86
      %p89 = scmp.ne.s32.totalorder %s74, %s88
      %p90 = scmp.eq.s32.totalorder %s22, 0
      %p91 = por %p89, %p90
      %s92 = ssub.s32 %s16, %s23
      %p93 = scmp.eq.s32.totalorder %s92, 0
      %s95 = sadd.s32 %s94, 1
      %s96 = scalar_select %p93, %s94, %s95
      %p99 = pneg %p93
      %p100 = scmp.eq.s32.totalorder %s16, 1
      %p101 = por %p99, %p100
      %p102 = scmp.ne.s32.totalorder %s94, %s97
      %p103 = scmp.eq.s32.totalorder %s16, 0
      %p104 = por %p102, %p103
      %p105 = scmp.ne.s32.totalorder %s94, %s97
      %p106 = scmp.eq.s32.totalorder %s21, 1
      %p107 = por %p105, %p106
      %p108 = scmp.ne.s32.totalorder %s97, %s98
      %p109 = scmp.eq.s32.totalorder %s21, 0
      %p110 = por %p108, %p109
      %p111 = scmp.ne.s32.totalorder %s97, %s98
      %p112 = scmp.eq.s32.totalorder %s22, 1
      %p113 = por %p111, %p112
      %p115 = scmp.ne.s32.totalorder %s98, %s114
      %p116 = scmp.eq.s32.totalorder %s22, 0
      %p117 = por %p115, %p116
      %p118 = scmp.le.s32.totalorder 1, %s16
      %p119 = scmp.lt.s32.totalorder %s16, 3
      %p120 = pnand %p118, %p119
      %p121 = pneg %p120
      // Predicated region
      $region9: #{resnet_block.1} parent=5 // pred_check
        _
      $region10: #{resnet_block.1} parent=5 // pred_check_branch
        %123 = sbr.rel (%p120) target = $region12
      $region11: #{resnet_block.1} parent=5 // pred_region
        %s124 = ssub.s32 %s16, 1
        // Predicated region
        $region13: #{resnet_block.1} parent=11 // pred_check
          %p125 = pneg %p63
        $region14: #{resnet_block.1} parent=11 // pred_check_branch
          %127 = sbr.rel (%p125) target = $region16
        $region15: #{resnet_block.1} parent=11 // pred_region
          %s129 = ssub.s32 288, 288
          %130 = vsyncadd [#allocation8], %s129
          %s131 = sshll.u32 [#allocation7], 4
          %s132 = int_to_ptr.vmem [resolvable:$true] %s131
          %137 = dma.hbm_to_vmem [thread:$0]  %s1, 288, %s132, [#allocation8], 32, 32, 2
        $region16: #{resnet_block.1} parent=11 // pred_fallthru
          _
        // Predicated region
        $region17: #{resnet_block.1} parent=11 // pred_check
          %p138 = pneg %p84
        $region18: #{resnet_block.1} parent=11 // pred_check_branch
          %140 = sbr.rel (%p138) target = $region20
        $region19: #{resnet_block.1} parent=11 // pred_region
          %s142 = ssub.s32 288, 288
          %143 = vsyncadd [#allocation8], %s142
          %s144 = sshll.u32 [#allocation9], 4
          %s145 = int_to_ptr.vmem [resolvable:$true] %s144
          %150 = dma.hbm_to_vmem [thread:$0]  %s2, 288, %s145, [#allocation8], 32, 32, 2
        $region20: #{resnet_block.1} parent=11 // pred_fallthru
          _
      $region12: #{resnet_block.1} parent=5 // pred_fallthru
        _
      %p151 = scmp.lt.s32.totalorder %s16, 2
      // Predicated region
      $region21: #{resnet_block.1} parent=5 // pred_check
        %p152 = pneg %p151
      $region22: #{resnet_block.1} parent=5 // pred_check_branch
        %154 = sbr.rel (%p152) target = $region24
      $region23: #{resnet_block.1} parent=5 // pred_region
        // Predicated region
        $region25: #{resnet_block.1} parent=23 // pred_check
          %p155 = pneg %p36
        $region26: #{resnet_block.1} parent=23 // pred_check_branch
          %157 = sbr.rel (%p155) target = $region28
        $region27: #{resnet_block.1} parent=23 // pred_region
          %s158 = sand.u32 %s26, 1
          %s159 = scalar_lea.sflag [#allocation5], %s158
          %s160 = sand.u32 %s26, 1
          %s161 = smul.addr %s160, 256
          %s162 = scalar_lea.vmem [#allocation4], %s161
          %s164 = ssub.s32 4096, 4096
          %165 = vsyncadd %s159, %s164
          %s166 = smul.addr %s16, 32
          %s167 = smul.addr %s166, 128
          %s168 = scalar_lea.hbm %s0, %s167
          %s169 = sshll.u32 %s162, 4
          %s170 = int_to_ptr.vmem [resolvable:$true] %s169
          %175 = dma.hbm_to_vmem [thread:$0]  %s168, 4096, %s170, %s159, 128, 128, 8
        $region28: #{resnet_block.1} parent=23 // pred_fallthru
          _
      $region24: #{resnet_block.1} parent=5 // pred_fallthru
        _
      %p176 = scmp.le.s32.totalorder 1, %s16
      %p177 = scmp.lt.s32.totalorder %s16, 3
      %p178 = pnand %p176, %p177
      %p179 = pneg %p178
      // Predicated region
      $region29: #{resnet_block.1} parent=5 // pred_check
        _
      $region30: #{resnet_block.1} parent=5 // pred_check_branch
        %181 = sbr.rel (%p178) target = $region32
      $region31: #{resnet_block.1} parent=5 // pred_region
        %s182 = ssub.s32 %s16, 1
        %s183 = sand.u32 %s29, 1
        %s184 = scalar_lea.sflag [#allocation5], %s183
        %s185 = sand.u32 %s29, 1
        %s186 = smul.addr %s185, 256
        %s187 = scalar_lea.vmem [#allocation4], %s186
        // Predicated region
        $region33: #{resnet_block.1} parent=31 // pred_check
          %p188 = pneg %p42
        $region34: #{resnet_block.1} parent=31 // pred_check_branch
          %190 = sbr.rel (%p188) target = $region36
        $region35: #{resnet_block.1} parent=31 // pred_region
          %191 = dma.done %s184, 4096
        $region36: #{resnet_block.1} parent=31 // pred_fallthru
          _
        // Predicated region
        $region37: #{resnet_block.1} parent=31 // pred_check
          %p192 = pneg %p63
        $region38: #{resnet_block.1} parent=31 // pred_check_branch
          %194 = sbr.rel (%p192) target = $region40
        $region39: #{resnet_block.1} parent=31 // pred_region
          %195 = dma.done [#allocation8], 288
        $region40: #{resnet_block.1} parent=31 // pred_fallthru
          _
        // Predicated region
        $region41: #{resnet_block.1} parent=31 // pred_check
          %p196 = pneg %p84
        $region42: #{resnet_block.1} parent=31 // pred_check_branch
          %198 = sbr.rel (%p196) target = $region44
        $region43: #{resnet_block.1} parent=31 // pred_region
          %199 = dma.done [#allocation8], 288
        $region44: #{resnet_block.1} parent=31 // pred_fallthru
          _
        %s200 = sand.u32 %s29, 1
        %s201 = scalar_lea.sflag [#allocation5], %s200
        %s202 = sand.u32 %s29, 1
        %s203 = smul.addr %s202, 256
        %s204 = scalar_lea.vmem [#allocation4], %s203
        %p205 = pneg %p42
        %p206 = pneg %p39
        %p207 = pneg %p63
        %p208 = pneg %p60
        %p209 = pneg %p84
        %p210 = pneg %p81
        %p211 = pneg %p110
        %p212 = pneg %p107
        %s213 = sand.u32 %s97, 1
        %s214 = scalar_lea.sflag [#allocation6], %s213
        %s215 = sand.u32 %s97, 1
        %s216 = smul.addr %s215, 256
        %s217 = scalar_lea.vmem [#allocation10], %s216
        %vm219 = vcmask 31744
        %220 = vst.msk [vmem:[#allocation2] sm:$0xff] %vm219, 0.0
        %221 = vst.msk [vmem:[#allocation2 + $0x8] sm:$0xff] %vm219, 0.0
        %vm222 = vcmask 25600
        %223 = vst.msk [vmem:[#allocation2 + $0x10] sm:$0x3] %vm222, 0.0
        %s224 = scalar_lea.vmem [#allocation2], 408
        %225 = vst.msk [vmem:[%s224] sm:$0xff] %vm219, 0.0
        %226 = vst.msk [vmem:[%s224 + $0x8] sm:$0xff] %vm219, 0.0
        %227 = vst.msk [vmem:[%s224 + $0x10] sm:$0x3] %vm222, 0.0
        %vm228 = vcmask 24576
        %229 = vst.msk [vmem:[#allocation2] sm:$0x1] %vm228, 0.0
        %230 = vst.msk [vmem:[#allocation2 + $0x18] sm:$0x1] %vm228, 0.0
        %231 = vst.msk [vmem:[#allocation2 + $0x30] sm:$0x1] %vm228, 0.0
        %232 = vst.msk [vmem:[#allocation2 + $0x48] sm:$0x1] %vm228, 0.0
        %233 = vst.msk [vmem:[#allocation2 + $0x60] sm:$0x1] %vm228, 0.0
        %234 = vst.msk [vmem:[#allocation2 + $0x78] sm:$0x1] %vm228, 0.0
        %235 = vst.msk [vmem:[#allocation2 + $0x90] sm:$0x1] %vm228, 0.0
        %236 = vst.msk [vmem:[#allocation2 + $0xa8] sm:$0x1] %vm228, 0.0
        %237 = vst.msk [vmem:[#allocation2 + $0xc0] sm:$0x1] %vm228, 0.0
        %238 = vst.msk [vmem:[#allocation2 + $0xd8] sm:$0x1] %vm228, 0.0
        %239 = vst.msk [vmem:[#allocation2 + $0xf0] sm:$0x1] %vm228, 0.0
        %240 = vst.msk [vmem:[#allocation2 + $0x108] sm:$0x1] %vm228, 0.0
        %241 = vst.msk [vmem:[#allocation2 + $0x120] sm:$0x1] %vm228, 0.0
        %242 = vst.msk [vmem:[#allocation2 + $0x138] sm:$0x1] %vm228, 0.0
        %243 = vst.msk [vmem:[#allocation2 + $0x150] sm:$0x1] %vm228, 0.0
        %244 = vst.msk [vmem:[#allocation2 + $0x168] sm:$0x1] %vm228, 0.0
        %245 = vst.msk [vmem:[#allocation2 + $0x180] sm:$0x1] %vm228, 0.0
        %246 = vst.msk [vmem:[#allocation2 + $0x198] sm:$0x1] %vm228, 0.0
        %247 = vst.msk [vmem:[#allocation2 + $0x11] sm:$0x1] %vm228, 0.0
        %248 = vst.msk [vmem:[#allocation2 + $0x29] sm:$0x1] %vm228, 0.0
        %249 = vst.msk [vmem:[#allocation2 + $0x41] sm:$0x1] %vm228, 0.0
        %250 = vst.msk [vmem:[#allocation2 + $0x59] sm:$0x1] %vm228, 0.0
        %251 = vst.msk [vmem:[#allocation2 + $0x71] sm:$0x1] %vm228, 0.0
        %252 = vst.msk [vmem:[#allocation2 + $0x89] sm:$0x1] %vm228, 0.0
        %253 = vst.msk [vmem:[#allocation2 + $0xa1] sm:$0x1] %vm228, 0.0
        %254 = vst.msk [vmem:[#allocation2 + $0xb9] sm:$0x1] %vm228, 0.0
        %255 = vst.msk [vmem:[#allocation2 + $0xd1] sm:$0x1] %vm228, 0.0
        %256 = vst.msk [vmem:[#allocation2 + $0xe9] sm:$0x1] %vm228, 0.0
        %257 = vst.msk [vmem:[#allocation2 + $0x101] sm:$0x1] %vm228, 0.0
        %258 = vst.msk [vmem:[#allocation2 + $0x119] sm:$0x1] %vm228, 0.0
        %259 = vst.msk [vmem:[#allocation2 + $0x131] sm:$0x1] %vm228, 0.0
        %260 = vst.msk [vmem:[#allocation2 + $0x149] sm:$0x1] %vm228, 0.0
        %261 = vst.msk [vmem:[#allocation2 + $0x161] sm:$0x1] %vm228, 0.0
        %262 = vst.msk [vmem:[#allocation2 + $0x179] sm:$0x1] %vm228, 0.0
        %263 = vst.msk [vmem:[#allocation2 + $0x191] sm:$0x1] %vm228, 0.0
        %264 = vst.msk [vmem:[#allocation2 + $0x1a9] sm:$0x1] %vm228, 0.0
        %265 = vst.msk [vmem:[#allocation3] sm:$0xff] %vm219, 0.0
        %266 = vst.msk [vmem:[#allocation3 + $0x8] sm:$0xff] %vm219, 0.0
        %267 = vst.msk [vmem:[#allocation3 + $0x10] sm:$0x3] %vm222, 0.0
        %s268 = scalar_lea.vmem [#allocation3], 408
        %269 = vst.msk [vmem:[%s268] sm:$0xff] %vm219, 0.0
        %270 = vst.msk [vmem:[%s268 + $0x8] sm:$0xff] %vm219, 0.0
        %271 = vst.msk [vmem:[%s268 + $0x10] sm:$0x3] %vm222, 0.0
        %272 = vst.msk [vmem:[#allocation3] sm:$0x1] %vm228, 0.0
        %273 = vst.msk [vmem:[#allocation3 + $0x18] sm:$0x1] %vm228, 0.0
        %274 = vst.msk [vmem:[#allocation3 + $0x30] sm:$0x1] %vm228, 0.0
        %275 = vst.msk [vmem:[#allocation3 + $0x48] sm:$0x1] %vm228, 0.0
        %276 = vst.msk [vmem:[#allocation3 + $0x60] sm:$0x1] %vm228, 0.0
        %277 = vst.msk [vmem:[#allocation3 + $0x78] sm:$0x1] %vm228, 0.0
        %278 = vst.msk [vmem:[#allocation3 + $0x90] sm:$0x1] %vm228, 0.0
        %279 = vst.msk [vmem:[#allocation3 + $0xa8] sm:$0x1] %vm228, 0.0
        %280 = vst.msk [vmem:[#allocation3 + $0xc0] sm:$0x1] %vm228, 0.0
        %281 = vst.msk [vmem:[#allocation3 + $0xd8] sm:$0x1] %vm228, 0.0
        %282 = vst.msk [vmem:[#allocation3 + $0xf0] sm:$0x1] %vm228, 0.0
        %283 = vst.msk [vmem:[#allocation3 + $0x108] sm:$0x1] %vm228, 0.0
        %284 = vst.msk [vmem:[#allocation3 + $0x120] sm:$0x1] %vm228, 0.0
        %285 = vst.msk [vmem:[#allocation3 + $0x138] sm:$0x1] %vm228, 0.0
        %286 = vst.msk [vmem:[#allocation3 + $0x150] sm:$0x1] %vm228, 0.0
        %287 = vst.msk [vmem:[#allocation3 + $0x168] sm:$0x1] %vm228, 0.0
        %288 = vst.msk [vmem:[#allocation3 + $0x180] sm:$0x1] %vm228, 0.0
        %289 = vst.msk [vmem:[#allocation3 + $0x198] sm:$0x1] %vm228, 0.0
        %290 = vst.msk [vmem:[#allocation3 + $0x11] sm:$0x1] %vm228, 0.0
        %291 = vst.msk [vmem:[#allocation3 + $0x29] sm:$0x1] %vm228, 0.0
        %292 = vst.msk [vmem:[#allocation3 + $0x41] sm:$0x1] %vm228, 0.0
        %293 = vst.msk [vmem:[#allocation3 + $0x59] sm:$0x1] %vm228, 0.0
        %294 = vst.msk [vmem:[#allocation3 + $0x71] sm:$0x1] %vm228, 0.0
        %295 = vst.msk [vmem:[#allocation3 + $0x89] sm:$0x1] %vm228, 0.0
        %296 = vst.msk [vmem:[#allocation3 + $0xa1] sm:$0x1] %vm228, 0.0
        %297 = vst.msk [vmem:[#allocation3 + $0xb9] sm:$0x1] %vm228, 0.0
        %298 = vst.msk [vmem:[#allocation3 + $0xd1] sm:$0x1] %vm228, 0.0
        %299 = vst.msk [vmem:[#allocation3 + $0xe9] sm:$0x1] %vm228, 0.0
        %300 = vst.msk [vmem:[#allocation3 + $0x101] sm:$0x1] %vm228, 0.0
        %301 = vst.msk [vmem:[#allocation3 + $0x119] sm:$0x1] %vm228, 0.0
        %302 = vst.msk [vmem:[#allocation3 + $0x131] sm:$0x1] %vm228, 0.0
        %303 = vst.msk [vmem:[#allocation3 + $0x149] sm:$0x1] %vm228, 0.0
        %304 = vst.msk [vmem:[#allocation3 + $0x161] sm:$0x1] %vm228, 0.0
        %305 = vst.msk [vmem:[#allocation3 + $0x179] sm:$0x1] %vm228, 0.0
        %306 = vst.msk [vmem:[#allocation3 + $0x191] sm:$0x1] %vm228, 0.0
        %307 = vst.msk [vmem:[#allocation3 + $0x1a9] sm:$0x1] %vm228, 0.0
        %v308 = vld [vmem:[%s187] sm:$0xff]
        %v309 = vld [vmem:[%s187 + $0x8] sm:$0xff]
        %v310 = vld [vmem:[%s187 + $0x10] sm:$0xff]
        %v311 = vld [vmem:[%s187 + $0x18] sm:$0xff]
        %v312 = vld [vmem:[%s187 + $0x20] sm:$0xff]
        %v313 = vld [vmem:[%s187 + $0x28] sm:$0xff]
        %v314 = vld [vmem:[%s187 + $0x30] sm:$0xff]
        %v315 = vld [vmem:[%s187 + $0x38] sm:$0xff]
        %v316 = vld [vmem:[%s187 + $0x40] sm:$0xff]
        %v317 = vld [vmem:[%s187 + $0x48] sm:$0xff]
        %v318 = vld [vmem:[%s187 + $0x50] sm:$0xff]
        %v319 = vld [vmem:[%s187 + $0x58] sm:$0xff]
        %v320 = vld [vmem:[%s187 + $0x60] sm:$0xff]
        %v321 = vld [vmem:[%s187 + $0x68] sm:$0xff]
        %v322 = vld [vmem:[%s187 + $0x70] sm:$0xff]
        %v323 = vld [vmem:[%s187 + $0x78] sm:$0xff]
        %v324 = vld [vmem:[%s187 + $0x80] sm:$0xff]
        %v325 = vld [vmem:[%s187 + $0x88] sm:$0xff]
        %v326 = vld [vmem:[%s187 + $0x90] sm:$0xff]
        %v327 = vld [vmem:[%s187 + $0x98] sm:$0xff]
        %v328 = vld [vmem:[%s187 + $0xa0] sm:$0xff]
        %v329 = vld [vmem:[%s187 + $0xa8] sm:$0xff]
        %v330 = vld [vmem:[%s187 + $0xb0] sm:$0xff]
        %v331 = vld [vmem:[%s187 + $0xb8] sm:$0xff]
        %v332 = vld [vmem:[%s187 + $0xc0] sm:$0xff]
        %v333 = vld [vmem:[%s187 + $0xc8] sm:$0xff]
        %v334 = vld [vmem:[%s187 + $0xd0] sm:$0xff]
        %v335 = vld [vmem:[%s187 + $0xd8] sm:$0xff]
        %v336 = vld [vmem:[%s187 + $0xe0] sm:$0xff]
        %v337 = vld [vmem:[%s187 + $0xe8] sm:$0xff]
        %v338 = vld [vmem:[%s187 + $0xf0] sm:$0xff]
        %v339 = vld [vmem:[%s187 + $0xf8] sm:$0xff]
        %s340 = scalar_lea.vmem [#allocation2], 24
        %341 = vst.msk [vmem:[%s340 + $0x1] sm:$0xff] %vm219, %v308
        %342 = vst.msk [vmem:[%s340 + $0x9] sm:$0xff] %vm219, %v309
        %343 = vst.msk [vmem:[%s340 + $0x19] sm:$0xff] %vm219, %v310
        %344 = vst.msk [vmem:[%s340 + $0x21] sm:$0xff] %vm219, %v311
        %345 = vst.msk [vmem:[%s340 + $0x31] sm:$0xff] %vm219, %v312
        %346 = vst.msk [vmem:[%s340 + $0x39] sm:$0xff] %vm219, %v313
        %347 = vst.msk [vmem:[%s340 + $0x49] sm:$0xff] %vm219, %v314
        %348 = vst.msk [vmem:[%s340 + $0x51] sm:$0xff] %vm219, %v315
        %349 = vst.msk [vmem:[%s340 + $0x61] sm:$0xff] %vm219, %v316
        %350 = vst.msk [vmem:[%s340 + $0x69] sm:$0xff] %vm219, %v317
        %351 = vst.msk [vmem:[%s340 + $0x79] sm:$0xff] %vm219, %v318
        %352 = vst.msk [vmem:[%s340 + $0x81] sm:$0xff] %vm219, %v319
        %353 = vst.msk [vmem:[%s340 + $0x91] sm:$0xff] %vm219, %v320
        %354 = vst.msk [vmem:[%s340 + $0x99] sm:$0xff] %vm219, %v321
        %355 = vst.msk [vmem:[%s340 + $0xa9] sm:$0xff] %vm219, %v322
        %356 = vst.msk [vmem:[%s340 + $0xb1] sm:$0xff] %vm219, %v323
        %357 = vst.msk [vmem:[%s340 + $0xc1] sm:$0xff] %vm219, %v324
        %358 = vst.msk [vmem:[%s340 + $0xc9] sm:$0xff] %vm219, %v325
        %359 = vst.msk [vmem:[%s340 + $0xd9] sm:$0xff] %vm219, %v326
        %360 = vst.msk [vmem:[%s340 + $0xe1] sm:$0xff] %vm219, %v327
        %361 = vst.msk [vmem:[%s340 + $0xf1] sm:$0xff] %vm219, %v328
        %362 = vst.msk [vmem:[%s340 + $0xf9] sm:$0xff] %vm219, %v329
        %363 = vst.msk [vmem:[%s340 + $0x109] sm:$0xff] %vm219, %v330
        %364 = vst.msk [vmem:[%s340 + $0x111] sm:$0xff] %vm219, %v331
        %365 = vst.msk [vmem:[%s340 + $0x121] sm:$0xff] %vm219, %v332
        %366 = vst.msk [vmem:[%s340 + $0x129] sm:$0xff] %vm219, %v333
        %367 = vst.msk [vmem:[%s340 + $0x139] sm:$0xff] %vm219, %v334
        %368 = vst.msk [vmem:[%s340 + $0x141] sm:$0xff] %vm219, %v335
        %369 = vst.msk [vmem:[%s340 + $0x151] sm:$0xff] %vm219, %v336
        %370 = vst.msk [vmem:[%s340 + $0x159] sm:$0xff] %vm219, %v337
        %371 = vst.msk [vmem:[%s340 + $0x169] sm:$0xff] %vm219, %v338
        %372 = vst.msk [vmem:[%s340 + $0x171] sm:$0xff] %vm219, %v339
        %v373 = vld [vmem:[#allocation2] sm:$0xff]
        %v374 = vld [vmem:[#allocation2 + $0x8] sm:$0xff]
        %v375 = vld [vmem:[#allocation2 + $0x10] sm:$0x3]
        %v376 = vld [vmem:[#allocation2 + $0x18] sm:$0xff]
        %v377 = vld [vmem:[#allocation2 + $0x20] sm:$0xff]
        %v378 = vld [vmem:[#allocation2 + $0x28] sm:$0x3]
        %v379 = vld [vmem:[#allocation2 + $0x30] sm:$0xff]
        %v380 = vld [vmem:[#allocation2 + $0x38] sm:$0xff]
        %v381 = vld [vmem:[#allocation2 + $0x40] sm:$0x3]
        %v382 = vld [vmem:[#allocation2 + $0x48] sm:$0xff]
        %v383 = vld [vmem:[#allocation2 + $0x50] sm:$0xff]
        %v384 = vld [vmem:[#allocation2 + $0x58] sm:$0x3]
        %v385 = vld [vmem:[#allocation2 + $0x60] sm:$0xff]
        %v386 = vld [vmem:[#allocation2 + $0x68] sm:$0xff]
        %v387 = vld [vmem:[#allocation2 + $0x70] sm:$0x3]
        %v388 = vld [vmem:[#allocation2 + $0x78] sm:$0xff]
        %v389 = vld [vmem:[#allocation2 + $0x80] sm:$0xff]
        %v390 = vld [vmem:[#allocation2 + $0x88] sm:$0x3]
        %v391 = vld [vmem:[#allocation2 + $0x90] sm:$0xff]
        %v392 = vld [vmem:[#allocation2 + $0x98] sm:$0xff]
        %v393 = vld [vmem:[#allocation2 + $0xa0] sm:$0x3]
        %v394 = vld [vmem:[#allocation2 + $0xa8] sm:$0xff]
        %v395 = vld [vmem:[#allocation2 + $0xb0] sm:$0xff]
        %v396 = vld [vmem:[#allocation2 + $0xb8] sm:$0x3]
        %v397 = vld [vmem:[#allocation2 + $0xc0] sm:$0xff]
        %v398 = vld [vmem:[#allocation2 + $0xc8] sm:$0xff]
        %v399 = vld [vmem:[#allocation2 + $0xd0] sm:$0x3]
        %v400 = vld [vmem:[#allocation2 + $0xd8] sm:$0xff]
        %v401 = vld [vmem:[#allocation2 + $0xe0] sm:$0xff]
        %v402 = vld [vmem:[#allocation2 + $0xe8] sm:$0x3]
        %v403 = vld [vmem:[#allocation2 + $0xf0] sm:$0xff]
        %v404 = vld [vmem:[#allocation2 + $0xf8] sm:$0xff]
        %v405 = vld [vmem:[#allocation2 + $0x100] sm:$0x3]
        %v406 = vld [vmem:[#allocation2 + $0x108] sm:$0xff]
        %v407 = vld [vmem:[#allocation2 + $0x110] sm:$0xff]
        %v408 = vld [vmem:[#allocation2 + $0x118] sm:$0x3]
        %v409 = vld [vmem:[#allocation2 + $0x120] sm:$0xff]
        %v410 = vld [vmem:[#allocation2 + $0x128] sm:$0xff]
        %v411 = vld [vmem:[#allocation2 + $0x130] sm:$0x3]
        %v412 = vld [vmem:[#allocation2 + $0x138] sm:$0xff]
        %v413 = vld [vmem:[#allocation2 + $0x140] sm:$0xff]
        %v414 = vld [vmem:[#allocation2 + $0x148] sm:$0x3]
        %v415 = vld [vmem:[#allocation2 + $0x150] sm:$0xff]
        %v416 = vld [vmem:[#allocation2 + $0x158] sm:$0xff]
        %v417 = vld [vmem:[#allocation2 + $0x160] sm:$0x3]
        %v418 = vld [vmem:[#allocation2 + $0x168] sm:$0xff]
        %v419 = vld [vmem:[#allocation2 + $0x170] sm:$0xff]
        %v420 = vld [vmem:[#allocation2 + $0x178] sm:$0x3]
        %v421 = vld [vmem:[#allocation2 + $0x180] sm:$0xff]
        %v422 = vld [vmem:[#allocation2 + $0x188] sm:$0xff]
        %v423 = vld [vmem:[#allocation2 + $0x190] sm:$0x3]
        %v424 = vld [vmem:[#allocation2 + $0x198] sm:$0xff]
        %v425 = vld [vmem:[#allocation2 + $0x1a0] sm:$0xff]
        %v426 = vld [vmem:[#allocation2 + $0x1a8] sm:$0x3]
        %v427 = vld [vmem:[#allocation7] sm:$0x3]
        %v428 = vld [vmem:[#allocation7 + $0x2] sm:$0x3]
        %v429 = vld [vmem:[#allocation7 + $0x4] sm:$0x3]
        %v430 = vld [vmem:[#allocation7 + $0x6] sm:$0x3]
        %v431 = vld [vmem:[#allocation7 + $0x8] sm:$0x3]
        %v432 = vld [vmem:[#allocation7 + $0xa] sm:$0x3]
        %v433 = vld [vmem:[#allocation7 + $0xc] sm:$0x3]
        %v434 = vld [vmem:[#allocation7 + $0xe] sm:$0x3]
        %v435 = vld [vmem:[#allocation7 + $0x10] sm:$0x3]
        %v436 = vpack.c.bf16 %v374, %v373
        %v437 = vpack.c.bf16 %v377, %v376
        %v438 = vpack.c.bf16 %v380, %v379
        %v439 = vpack.c.bf16 %v383, %v382
        %v440 = vpack.c.bf16 %v386, %v385
        %v441 = vpack.c.bf16 %v389, %v388
        %v442 = vpack.c.bf16 %v392, %v391
        %v443 = vpack.c.bf16 %v395, %v394
        %v444 = vpack.c.bf16 %v398, %v397
        %v445 = vpack.c.bf16 %v401, %v400
        %v446 = vpack.c.bf16 %v404, %v403
        %v447 = vpack.c.bf16 %v407, %v406
        %v448 = vpack.c.bf16 %v410, %v409
        %v449 = vpack.c.bf16 %v413, %v412
        %v450 = vpack.c.bf16 %v416, %v415
        %v451 = vpack.c.bf16 %v419, %v418
        %vm500 = vcmask 1046528
        %v501 = vrot.slane %v373, 1
        %v502 = vrot.slane %v374, 1
        %v503 = vsel %vm500, %v501, %v502
        %v504 = vrot.slane %v375, 1
        %v505 = vsel %vm500, %v502, %v504
        %v506 = vrot.slane %v376, 1
        %v507 = vrot.slane %v377, 1
        %v508 = vsel %vm500, %v506, %v507
        %v509 = vrot.slane %v378, 1
        %v510 = vsel %vm500, %v507, %v509
        %v511 = vrot.slane %v379, 1
        %v512 = vrot.slane %v380, 1
        %v513 = vsel %vm500, %v511, %v512
        %v514 = vrot.slane %v381, 1
        %v515 = vsel %vm500, %v512, %v514
        %v516 = vrot.slane %v382, 1
        %v517 = vrot.slane %v383, 1
        %v518 = vsel %vm500, %v516, %v517
        %v519 = vrot.slane %v384, 1
        %v520 = vsel %vm500, %v517, %v519
        %v521 = vrot.slane %v385, 1
        %v522 = vrot.slane %v386, 1
        %v523 = vsel %vm500, %v521, %v522
        %v524 = vrot.slane %v387, 1
        %v525 = vsel %vm500, %v522, %v524
        %v526 = vrot.slane %v388, 1
        %v527 = vrot.slane %v389, 1
        %v528 = vsel %vm500, %v526, %v527
        %v529 = vrot.slane %v390, 1
        %v530 = vsel %vm500, %v527, %v529
        %v531 = vrot.slane %v391, 1
        %v532 = vrot.slane %v392, 1
        %v533 = vsel %vm500, %v531, %v532
        %v534 = vrot.slane %v393, 1
        %v535 = vsel %vm500, %v532, %v534
        %v536 = vrot.slane %v394, 1
        %v537 = vrot.slane %v395, 1
        %v538 = vsel %vm500, %v536, %v537
        %v539 = vrot.slane %v396, 1
        %v540 = vsel %vm500, %v537, %v539
        %v541 = vrot.slane %v397, 1
        %v542 = vrot.slane %v398, 1
        %v543 = vsel %vm500, %v541, %v542
        %v544 = vrot.slane %v399, 1
        %v545 = vsel %vm500, %v542, %v544
        %v546 = vrot.slane %v400, 1
        %v547 = vrot.slane %v401, 1
        %v548 = vsel %vm500, %v546, %v547
        %v549 = vrot.slane %v402, 1
        %v550 = vsel %vm500, %v547, %v549
        %v551 = vrot.slane %v403, 1
        %v552 = vrot.slane %v404, 1
        %v553 = vsel %vm500, %v551, %v552
        %v554 = vrot.slane %v405, 1
        %v555 = vsel %vm500, %v552, %v554
        %v556 = vrot.slane %v406, 1
        %v557 = vrot.slane %v407, 1
        %v558 = vsel %vm500, %v556, %v557
        %v559 = vrot.slane %v408, 1
        %v560 = vsel %vm500, %v557, %v559
        %v561 = vrot.slane %v409, 1
        %v562 = vrot.slane %v410, 1
        %v563 = vsel %vm500, %v561, %v562
        %v564 = vrot.slane %v411, 1
        %v565 = vsel %vm500, %v562, %v564
        %v566 = vrot.slane %v412, 1
        %v567 = vrot.slane %v413, 1
        %v568 = vsel %vm500, %v566, %v567
        %v569 = vrot.slane %v414, 1
        %v570 = vsel %vm500, %v567, %v569
        %v571 = vrot.slane %v415, 1
        %v572 = vrot.slane %v416, 1
        %v573 = vsel %vm500, %v571, %v572
        %v574 = vrot.slane %v417, 1
        %v575 = vsel %vm500, %v572, %v574
        %v576 = vrot.slane %v418, 1
        %v577 = vrot.slane %v419, 1
        %v578 = vsel %vm500, %v576, %v577
        %v579 = vrot.slane %v420, 1
        %v580 = vsel %vm500, %v577, %v579
        %v613 = vpack.c.bf16 %v505, %v503
        %v614 = vpack.c.bf16 %v510, %v508
        %v615 = vpack.c.bf16 %v515, %v513
        %v616 = vpack.c.bf16 %v520, %v518
        %v617 = vpack.c.bf16 %v525, %v523
        %v618 = vpack.c.bf16 %v530, %v528
        %v619 = vpack.c.bf16 %v535, %v533
        %v620 = vpack.c.bf16 %v540, %v538
        %v621 = vpack.c.bf16 %v545, %v543
        %v622 = vpack.c.bf16 %v550, %v548
        %v623 = vpack.c.bf16 %v555, %v553
        %v624 = vpack.c.bf16 %v560, %v558
        %v625 = vpack.c.bf16 %v565, %v563
        %v626 = vpack.c.bf16 %v570, %v568
        %v627 = vpack.c.bf16 %v575, %v573
        %v628 = vpack.c.bf16 %v580, %v578
        %v630 = vsel %vm219, %v613, 0
        %v633 = vsel %vm219, %v614, 0
        %v636 = vsel %vm219, %v615, 0
        %v639 = vsel %vm219, %v616, 0
        %v642 = vsel %vm219, %v617, 0
        %v645 = vsel %vm219, %v618, 0
        %v648 = vsel %vm219, %v619, 0
        %v651 = vsel %vm219, %v620, 0
        %v654 = vsel %vm219, %v621, 0
        %v657 = vsel %vm219, %v622, 0
        %v660 = vsel %vm219, %v623, 0
        %v663 = vsel %vm219, %v624, 0
        %v666 = vsel %vm219, %v625, 0
        %v669 = vsel %vm219, %v626, 0
        %v672 = vsel %vm219, %v627, 0
        %v675 = vsel %vm219, %v628, 0
        %vm677 = vcmask 1041408
        %v679 = vsel %vm677, %v428, 0
        %681 = vmatprep.subr.bf16.mxu0 0
        %682 = vmatpush1.bf16.msra.mxu0 %v679
        %683 = vmatprep.subr.bf16.mxu0 0
        %684 = vmatpush1.bf16.msra.mxu0 0
        %685 = vmatprep.subr.bf16.mxu0 0
        %686 = vmatpush1.bf16.msra.mxu0 0
        %687 = vmatprep.subr.bf16.mxu0 0
        %688 = vmatpush1.bf16.msra.mxu0 0
        %689 = vmatprep.subr.bf16.mxu0 0
        %690 = vmatpush1.bf16.msra.mxu0 0
        %691 = vmatprep.subr.bf16.mxu0 0
        %692 = vmatpush1.bf16.msra.mxu0 0
        %693 = vmatprep.subr.bf16.mxu0 0
        %694 = vmatpush1.bf16.msra.mxu0 0
        %695 = vmatprep.subr.bf16.mxu0 0
        %696 = vmatpush1.bf16.msra.mxu0 0
        %697 = vmatprep.subr.bf16.mxu0 0
        %698 = vmatpush1.bf16.msra.mxu0 0
        %699 = vmatprep.subr.bf16.mxu0 0
        %700 = vmatpush1.bf16.msra.mxu0 0
        %701 = vmatprep.subr.bf16.mxu0 0
        %702 = vmatpush1.bf16.msra.mxu0 0
        %703 = vmatprep.subr.bf16.mxu0 0
        %704 = vmatpush1.bf16.msra.mxu0 0
        %705 = vmatprep.subr.bf16.mxu0 0
        %706 = vmatpush1.bf16.msra.mxu0 0
        %707 = vmatprep.subr.bf16.mxu0 0
        %708 = vmatpush1.bf16.msra.mxu0 0
        %709 = vmatprep.subr.bf16.mxu0 0
        %710 = vmatpush1.bf16.msra.mxu0 0
        %711 = vmatprep.subr.bf16.mxu0 0
        %712 = vmatpush1.bf16.msra.mxu0 0
        %713 = vmatprep.mubr.bf16.mxu0 0
        %714 = vmatmul.mubr.bf16.gmra.mrb[0].mxu0 %v630
        %v715 = vpop.f32.mrb[0].mxu0
        %v716 = vadd.f32 0.0, %v715
        %v717 = vpop.f32.mrb[0].mxu0
        %v718 = vpop.f32.mrb[0].mxu0
        %v719 = vadd.f32 0.0, %v718
        %v720 = vpop.f32.mrb[0].mxu0
        %721 = vmatprep.mubr.bf16.mxu0 0
        %722 = vmatmul.mubr.bf16.gmra.mrb[0].mxu0 %v633
        %v723 = vpop.f32.mrb[0].mxu0
        %v724 = vadd.f32 0.0, %v723
        %v725 = vpop.f32.mrb[0].mxu0
        %v726 = vpop.f32.mrb[0].mxu0
        %v727 = vadd.f32 0.0, %v726
        %v728 = vpop.f32.mrb[0].mxu0
        %729 = vmatprep.mubr.bf16.mxu0 0
        %730 = vmatmul.mubr.bf16.gmra.mrb[0].mxu0 %v636
        %v731 = vpop.f32.mrb[0].mxu0
        %v732 = vadd.f32 0.0, %v731
        %v733 = vpop.f32.mrb[0].mxu0
        %v734 = vpop.f32.mrb[0].mxu0
        %v735 = vadd.f32 0.0, %v734
        %v736 = vpop.f32.mrb[0].mxu0
        %737 = vmatprep.mubr.bf16.mxu0 0
        %738 = vmatmul.mubr.bf16.gmra.mrb[0].mxu0 %v639
        %v739 = vpop.f32.mrb[0].mxu0
        %v740 = vadd.f32 0.0, %v739
        %v741 = vpop.f32.mrb[0].mxu0
        %v742 = vpop.f32.mrb[0].mxu0
        %v743 = vadd.f32 0.0, %v742
        %v744 = vpop.f32.mrb[0].mxu0
        %745 = vmatprep.mubr.bf16.mxu0 0
        %746 = vmatmul.mubr.bf16.gmra.mrb[0].mxu0 %v642
        %v747 = vpop.f32.mrb[0].mxu0
        %v748 = vadd.f32 0.0, %v747
        %v749 = vpop.f32.mrb[0].mxu0
        %v750 = vpop.f32.mrb[0].mxu0
        %v751 = vadd.f32 0.0, %v750
        %v752 = vpop.f32.mrb[0].mxu0
        %753 = vmatprep.mubr.bf16.mxu0 0
        %754 = vmatmul.mubr.bf16.gmra.mrb[0].mxu0 %v645
        %v755 = vpop.f32.mrb[0].mxu0
        %v756 = vadd.f32 0.0, %v755
        %v757 = vpop.f32.mrb[0].mxu0
        %v758 = vpop.f32.mrb[0].mxu0
        %v759 = vadd.f32 0.0, %v758
        %v760 = vpop.f32.mrb[0].mxu0
        %761 = vmatprep.mubr.bf16.mxu0 0
        %762 = vmatmul.mubr.bf16.gmra.mrb[0].mxu0 %v648
        %v763 = vpop.f32.mrb[0].mxu0
        %v764 = vadd.f32 0.0, %v763
        %v765 = vpop.f32.mrb[0].mxu0
        %v766 = vpop.f32.mrb[0].mxu0
        %v767 = vadd.f32 0.0, %v766
        %v768 = vpop.f32.mrb[0].mxu0
        %769 = vmatprep.mubr.bf16.mxu0 0
        %770 = vmatmul.mubr.bf16.gmra.mrb[0].mxu0 %v651
        %v771 = vpop.f32.mrb[0].mxu0
        %v772 = vadd.f32 0.0, %v771
        %v773 = vpop.f32.mrb[0].mxu0
        %v774 = vpop.f32.mrb[0].mxu0
        %v775 = vadd.f32 0.0, %v774
        %v776 = vpop.f32.mrb[0].mxu0
        %777 = vmatprep.mubr.bf16.mxu0 0
        %778 = vmatmul.mubr.bf16.gmra.mrb[0].mxu0 %v654
        %v779 = vpop.f32.mrb[0].mxu0
        %v780 = vadd.f32 0.0, %v779
        %v781 = vpop.f32.mrb[0].mxu0
        %v782 = vpop.f32.mrb[0].mxu0
        %v783 = vadd.f32 0.0, %v782
        %v784 = vpop.f32.mrb[0].mxu0
        %785 = vmatprep.mubr.bf16.mxu0 0
        %786 = vmatmul.mubr.bf16.gmra.mrb[0].mxu0 %v657
        %v787 = vpop.f32.mrb[0].mxu0
        %v788 = vadd.f32 0.0, %v787
        %v789 = vpop.f32.mrb[0].mxu0
        %v790 = vpop.f32.mrb[0].mxu0
        %v791 = vadd.f32 0.0, %v790
        %v792 = vpop.f32.mrb[0].mxu0
        %793 = vmatprep.mubr.bf16.mxu0 0
        %794 = vmatmul.mubr.bf16.gmra.mrb[0].mxu0 %v660
        %v795 = vpop.f32.mrb[0].mxu0
        %v796 = vadd.f32 0.0, %v795
        %v797 = vpop.f32.mrb[0].mxu0
        %v798 = vpop.f32.mrb[0].mxu0
        %v799 = vadd.f32 0.0, %v798
        %v800 = vpop.f32.mrb[0].mxu0
        %801 = vmatprep.mubr.bf16.mxu0 0
        %802 = vmatmul.mubr.bf16.gmra.mrb[0].mxu0 %v663
        %v803 = vpop.f32.mrb[0].mxu0
        %v804 = vadd.f32 0.0, %v803
        %v805 = vpop.f32.mrb[0].mxu0
        %v806 = vpop.f32.mrb[0].mxu0
        %v807 = vadd.f32 0.0, %v806
        %v808 = vpop.f32.mrb[0].mxu0
        %809 = vmatprep.mubr.bf16.mxu0 0
        %810 = vmatmul.mubr.bf16.gmra.mrb[0].mxu0 %v666
        %v811 = vpop.f32.mrb[0].mxu0
        %v812 = vadd.f32 0.0, %v811
        %v813 = vpop.f32.mrb[0].mxu0
        %v814 = vpop.f32.mrb[0].mxu0
        %v815 = vadd.f32 0.0, %v814
        %v816 = vpop.f32.mrb[0].mxu0
        %817 = vmatprep.mubr.bf16.mxu0 0
        %818 = vmatmul.mubr.bf16.gmra.mrb[0].mxu0 %v669
        %v819 = vpop.f32.mrb[0].mxu0
        %v820 = vadd.f32 0.0, %v819
        %v821 = vpop.f32.mrb[0].mxu0
        %v822 = vpop.f32.mrb[0].mxu0
        %v823 = vadd.f32 0.0, %v822
        %v824 = vpop.f32.mrb[0].mxu0
        %825 = vmatprep.mubr.bf16.mxu0 0
        %826 = vmatmul.mubr.bf16.gmra.mrb[0].mxu0 %v672
        %v827 = vpop.f32.mrb[0].mxu0
        %v828 = vadd.f32 0.0, %v827
        %v829 = vpop.f32.mrb[0].mxu0
        %v830 = vpop.f32.mrb[0].mxu0
        %v831 = vadd.f32 0.0, %v830
        %v832 = vpop.f32.mrb[0].mxu0
        %833 = vmatprep.mubr.bf16.mxu0 0
        %834 = vmatmul.mubr.bf16.gmra.mrb[0].mxu0 %v675
        %v835 = vpop.f32.mrb[0].mxu0
        %v836 = vadd.f32 0.0, %v835
        %v837 = vpop.f32.mrb[0].mxu0
        %v838 = vpop.f32.mrb[0].mxu0
        %v839 = vadd.f32 0.0, %v838
        %v840 = vpop.f32.mrb[0].mxu0
        %841 = vdwg.mxu0
        %v843 = vsel %vm219, %v436, 0
        %v846 = vsel %vm219, %v437, 0
        %v849 = vsel %vm219, %v438, 0
        %v852 = vsel %vm219, %v439, 0
        %v855 = vsel %vm219, %v440, 0
        %v858 = vsel %vm219, %v441, 0
        %v861 = vsel %vm219, %v442, 0
        %v864 = vsel %vm219, %v443, 0
        %v867 = vsel %vm219, %v444, 0
        %v870 = vsel %vm219, %v445, 0
        %v873 = vsel %vm219, %v446, 0
        %v876 = vsel %vm219, %v447, 0
        %v879 = vsel %vm219, %v448, 0
        %v882 = vsel %vm219, %v449, 0
        %v885 = vsel %vm219, %v450, 0
        %v888 = vsel %vm219, %v451, 0
        %v891 = vsel %vm677, %v427, 0
        %893 = vmatprep.subr.bf16.mxu0 0
        %894 = vmatpush1.bf16.msra.mxu0 %v891
        %895 = vmatprep.subr.bf16.mxu0 0
        %896 = vmatpush1.bf16.msra.mxu0 0
        %897 = vmatprep.subr.bf16.mxu0 0
        %898 = vmatpush1.bf16.msra.mxu0 0
        %899 = vmatprep.subr.bf16.mxu0 0
        %900 = vmatpush1.bf16.msra.mxu0 0
        %901 = vmatprep.subr.bf16.mxu0 0
        %902 = vmatpush1.bf16.msra.mxu0 0
        %903 = vmatprep.subr.bf16.mxu0 0
        %904 = vmatpush1.bf16.msra.mxu0 0
        %905 = vmatprep.subr.bf16.mxu0 0
        %906 = vmatpush1.bf16.msra.mxu0 0
        %907 = vmatprep.subr.bf16.mxu0 0
        %908 = vmatpush1.bf16.msra.mxu0 0
        %909 = vmatprep.subr.bf16.mxu0 0
        %910 = vmatpush1.bf16.msra.mxu0 0
        %911 = vmatprep.subr.bf16.mxu0 0
        %912 = vmatpush1.bf16.msra.mxu0 0
        %913 = vmatprep.subr.bf16.mxu0 0
        %914 = vmatpush1.bf16.msra.mxu0 0
        %915 = vmatprep.subr.bf16.mxu0 0
        %916 = vmatpush1.bf16.msra.mxu0 0
        %917 = vmatprep.subr.bf16.mxu0 0
        %918 = vmatpush1.bf16.msra.mxu0 0
        %919 = vmatprep.subr.bf16.mxu0 0
        %920 = vmatpush1.bf16.msra.mxu0 0
        %921 = vmatprep.subr.bf16.mxu0 0
        %922 = vmatpush1.bf16.msra.mxu0 0
        %923 = vmatprep.subr.bf16.mxu0 0
        %924 = vmatpush1.bf16.msra.mxu0 0
        %925 = vmatprep.mubr.bf16.mxu0 0
        %926 = vmatmul.mubr.bf16.gmra.mrb[0].mxu0 %v843
        %v927 = vpop.f32.mrb[0].mxu0
        %v928 = vadd.f32 %v716, %v927
        %v929 = vpop.f32.mrb[0].mxu0
        %v930 = vpop.f32.mrb[0].mxu0
        %v931 = vadd.f32 %v719, %v930
        %v932 = vpop.f32.mrb[0].mxu0
        %933 = vmatprep.mubr.bf16.mxu0 0
        %934 = vmatmul.mubr.bf16.gmra.mrb[0].mxu0 %v846
        %v935 = vpop.f32.mrb[0].mxu0
        %v936 = vadd.f32 %v724, %v935
        %v937 = vpop.f32.mrb[0].mxu0
        %v938 = vpop.f32.mrb[0].mxu0
        %v939 = vadd.f32 %v727, %v938
        %v940 = vpop.f32.mrb[0].mxu0
        %941 = vmatprep.mubr.bf16.mxu0 0
        %942 = vmatmul.mubr.bf16.gmra.mrb[0].mxu0 %v849
        %v943 = vpop.f32.mrb[0].mxu0
        %v944 = vadd.f32 %v732, %v943
        %v945 = vpop.f32.mrb[0].mxu0
        %v946 = vpop.f32.mrb[0].mxu0
        %v947 = vadd.f32 %v735, %v946
        %v948 = vpop.f32.mrb[0].mxu0
        %949 = vmatprep.mubr.bf16.mxu0 0
        %950 = vmatmul.mubr.bf16.gmra.mrb[0].mxu0 %v852
        %v951 = vpop.f32.mrb[0].mxu0
        %v952 = vadd.f32 %v740, %v951
        %v953 = vpop.f32.mrb[0].mxu0
        %v954 = vpop.f32.mrb[0].mxu0
        %v955 = vadd.f32 %v743, %v954
        %v956 = vpop.f32.mrb[0].mxu0
        %957 = vmatprep.mubr.bf16.mxu0 0
        %958 = vmatmul.mubr.bf16.gmra.mrb[0].mxu0 %v855
        %v959 = vpop.f32.mrb[0].mxu0
        %v960 = vadd.f32 %v748, %v959
        %v961 = vpop.f32.mrb[0].mxu0
        %v962 = vpop.f32.mrb[0].mxu0
        %v963 = vadd.f32 %v751, %v962
        %v964 = vpop.f32.mrb[0].mxu0
        %965 = vmatprep.mubr.bf16.mxu0 0
        %966 = vmatmul.mubr.bf16.gmra.mrb[0].mxu0 %v858
        %v967 = vpop.f32.mrb[0].mxu0
        %v968 = vadd.f32 %v756, %v967
        %v969 = vpop.f32.mrb[0].mxu0
        %v970 = vpop.f32.mrb[0].mxu0
        %v971 = vadd.f32 %v759, %v970
        %v972 = vpop.f32.mrb[0].mxu0
        %973 = vmatprep.mubr.bf16.mxu0 0
        %974 = vmatmul.mubr.bf16.gmra.mrb[0].mxu0 %v861
        %v975 = vpop.f32.mrb[0].mxu0
        %v976 = vadd.f32 %v764, %v975
        %v977 = vpop.f32.mrb[0].mxu0
        %v978 = vpop.f32.mrb[0].mxu0
        %v979 = vadd.f32 %v767, %v978
        %v980 = vpop.f32.mrb[0].mxu0
        %981 = vmatprep.mubr.bf16.mxu0 0
        %982 = vmatmul.mubr.bf16.gmra.mrb[0].mxu0 %v864
        %v983 = vpop.f32.mrb[0].mxu0
        %v984 = vadd.f32 %v772, %v983
        %v985 = vpop.f32.mrb[0].mxu0
        %v986 = vpop.f32.mrb[0].mxu0
        %v987 = vadd.f32 %v775, %v986
        %v988 = vpop.f32.mrb[0].mxu0
        %989 = vmatprep.mubr.bf16.mxu0 0
        %990 = vmatmul.mubr.bf16.gmra.mrb[0].mxu0 %v867
        %v991 = vpop.f32.mrb[0].mxu0
        %v992 = vadd.f32 %v780, %v991
        %v993 = vpop.f32.mrb[0].mxu0
        %v994 = vpop.f32.mrb[0].mxu0
        %v995 = vadd.f32 %v783, %v994
        %v996 = vpop.f32.mrb[0].mxu0
        %997 = vmatprep.mubr.bf16.mxu0 0
        %998 = vmatmul.mubr.bf16.gmra.mrb[0].mxu0 %v870
        %v999 = vpop.f32.mrb[0].mxu0
        %v1000 = vadd.f32 %v788, %v999
        %v1001 = vpop.f32.mrb[0].mxu0
        %v1002 = vpop.f32.mrb[0].mxu0
        %v1003 = vadd.f32 %v791, %v1002
        %v1004 = vpop.f32.mrb[0].mxu0
        %1005 = vmatprep.mubr.bf16.mxu0 0
        %1006 = vmatmul.mubr.bf16.gmra.mrb[0].mxu0 %v873
        %v1007 = vpop.f32.mrb[0].mxu0
        %v1008 = vadd.f32 %v796, %v1007
        %v1009 = vpop.f32.mrb[0].mxu0
        %v1010 = vpop.f32.mrb[0].mxu0
        %v1011 = vadd.f32 %v799, %v1010
        %v1012 = vpop.f32.mrb[0].mxu0
        %1013 = vmatprep.mubr.bf16.mxu0 0
        %1014 = vmatmul.mubr.bf16.gmra.mrb[0].mxu0 %v876
        %v1015 = vpop.f32.mrb[0].mxu0
        %v1016 = vadd.f32 %v804, %v1015
        %v1017 = vpop.f32.mrb[0].mxu0
        %v1018 = vpop.f32.mrb[0].mxu0
        %v1019 = vadd.f32 %v807, %v1018
        %v1020 = vpop.f32.mrb[0].mxu0
        %1021 = vmatprep.mubr.bf16.mxu0 0
        %1022 = vmatmul.mubr.bf16.gmra.mrb[0].mxu0 %v879
        %v1023 = vpop.f32.mrb[0].mxu0
        %v1024 = vadd.f32 %v812, %v1023
        %v1025 = vpop.f32.mrb[0].mxu0
        %v1026 = vpop.f32.mrb[0].mxu0
        %v1027 = vadd.f32 %v815, %v1026
        %v1028 = vpop.f32.mrb[0].mxu0
        %1029 = vmatprep.mubr.bf16.mxu0 0
        %1030 = vmatmul.mubr.bf16.gmra.mrb[0].mxu0 %v882
        %v1031 = vpop.f32.mrb[0].mxu0
        %v1032 = vadd.f32 %v820, %v1031
        %v1033 = vpop.f32.mrb[0].mxu0
        %v1034 = vpop.f32.mrb[0].mxu0
        %v1035 = vadd.f32 %v823, %v1034
        %v1036 = vpop.f32.mrb[0].mxu0
        %1037 = vmatprep.mubr.bf16.mxu0 0
        %1038 = vmatmul.mubr.bf16.gmra.mrb[0].mxu0 %v885
        %v1039 = vpop.f32.mrb[0].mxu0
        %v1040 = vadd.f32 %v828, %v1039
        %v1041 = vpop.f32.mrb[0].mxu0
        %v1042 = vpop.f32.mrb[0].mxu0
        %v1043 = vadd.f32 %v831, %v1042
        %v1044 = vpop.f32.mrb[0].mxu0
        %1045 = vmatprep.mubr.bf16.mxu0 0
        %1046 = vmatmul.mubr.bf16.gmra.mrb[0].mxu0 %v888
        %v1047 = vpop.f32.mrb[0].mxu0
        %v1048 = vadd.f32 %v836, %v1047
        %v1049 = vpop.f32.mrb[0].mxu0
        %v1050 = vpop.f32.mrb[0].mxu0
        %v1051 = vadd.f32 %v839, %v1050
        %v1052 = vpop.f32.mrb[0].mxu0
        %1053 = vdwg.mxu0
        %vm1054 = vcmask 1045504
        %v1055 = vrot.slane %v373, 2
        %v1056 = vrot.slane %v374, 2
        %v1057 = vsel %vm1054, %v1055, %v1056
        %v1058 = vrot.slane %v375, 2
        %v1059 = vsel %vm1054, %v1056, %v1058
        %v1060 = vrot.slane %v376, 2
        %v1061 = vrot.slane %v377, 2
        %v1062 = vsel %vm1054, %v1060, %v1061
        %v1063 = vrot.slane %v378, 2
        %v1064 = vsel %vm1054, %v1061, %v1063
        %v1065 = vrot.slane %v379, 2
        %v1066 = vrot.slane %v380, 2
        %v1067 = vsel %vm1054, %v1065, %v1066
        %v1068 = vrot.slane %v381, 2
        %v1069 = vsel %vm1054, %v1066, %v1068
        %v1070 = vrot.slane %v382, 2
        %v1071 = vrot.slane %v383, 2
        %v1072 = vsel %vm1054, %v1070, %v1071
        %v1073 = vrot.slane %v384, 2
        %v1074 = vsel %vm1054, %v1071, %v1073
        %v1075 = vrot.slane %v385, 2
        %v1076 = vrot.slane %v386, 2
        %v1077 = vsel %vm1054, %v1075, %v1076
        %v1078 = vrot.slane %v387, 2
        %v1079 = vsel %vm1054, %v1076, %v1078
        %v1080 = vrot.slane %v388, 2
        %v1081 = vrot.slane %v389, 2
        %v1082 = vsel %vm1054, %v1080, %v1081
        %v1083 = vrot.slane %v390, 2
        %v1084 = vsel %vm1054, %v1081, %v1083
        %v1085 = vrot.slane %v391, 2
        %v1086 = vrot.slane %v392, 2
        %v1087 = vsel %vm1054, %v1085, %v1086
        %v1088 = vrot.slane %v393, 2
        %v1089 = vsel %vm1054, %v1086, %v1088
        %v1090 = vrot.slane %v394, 2
        %v1091 = vrot.slane %v395, 2
        %v1092 = vsel %vm1054, %v1090, %v1091
        %v1093 = vrot.slane %v396, 2
        %v1094 = vsel %vm1054, %v1091, %v1093
        %v1095 = vrot.slane %v397, 2
        %v1096 = vrot.slane %v398, 2
        %v1097 = vsel %vm1054, %v1095, %v1096
        %v1098 = vrot.slane %v399, 2
        %v1099 = vsel %vm1054, %v1096, %v1098
        %v1100 = vrot.slane %v400, 2
        %v1101 = vrot.slane %v401, 2
        %v1102 = vsel %vm1054, %v1100, %v1101
        %v1103 = vrot.slane %v402, 2
        %v1104 = vsel %vm1054, %v1101, %v1103
        %v1105 = vrot.slane %v403, 2
        %v1106 = vrot.slane %v404, 2
        %v1107 = vsel %vm1054, %v1105, %v1106
        %v1108 = vrot.slane %v405, 2
        %v1109 = vsel %vm1054, %v1106, %v1108
        %v1110 = vrot.slane %v406, 2
        %v1111 = vrot.slane %v407, 2
        %v1112 = vsel %vm1054, %v1110, %v1111
        %v1113 = vrot.slane %v408, 2
        %v1114 = vsel %vm1054, %v1111, %v1113
        %v1115 = vrot.slane %v409, 2
        %v1116 = vrot.slane %v410, 2
        %v1117 = vsel %vm1054, %v1115, %v1116
        %v1118 = vrot.slane %v411, 2
        %v1119 = vsel %vm1054, %v1116, %v1118
        %v1120 = vrot.slane %v412, 2
        %v1121 = vrot.slane %v413, 2
        %v1122 = vsel %vm1054, %v1120, %v1121
        %v1123 = vrot.slane %v414, 2
        %v1124 = vsel %vm1054, %v1121, %v1123
        %v1125 = vrot.slane %v415, 2
        %v1126 = vrot.slane %v416, 2
        %v1127 = vsel %vm1054, %v1125, %v1126
        %v1128 = vrot.slane %v417, 2
        %v1129 = vsel %vm1054, %v1126, %v1128
        %v1130 = vrot.slane %v418, 2
        %v1131 = vrot.slane %v419, 2
        %v1132 = vsel %vm1054, %v1130, %v1131
        %v1133 = vrot.slane %v420, 2
        %v1134 = vsel %vm1054, %v1131, %v1133
        %v1167 = vpack.c.bf16 %v1059, %v1057
        %v1168 = vpack.c.bf16 %v1064, %v1062
        %v1169 = vpack.c.bf16 %v1069, %v1067
        %v1170 = vpack.c.bf16 %v1074, %v1072
        %v1171 = vpack.c.bf16 %v1079, %v1077
        %v1172 = vpack.c.bf16 %v1084, %v1082
        %v1173 = vpack.c.bf16 %v1089, %v1087
        %v1174 = vpack.c.bf16 %v1094, %v1092
        %v1175 = vpack.c.bf16 %v1099, %v1097
        %v1176 = vpack.c.bf16 %v1104, %v1102
        %v1177 = vpack.c.bf16 %v1109, %v1107
        %v1178 = vpack.c.bf16 %v1114, %v1112
        %v1179 = vpack.c.bf16 %v1119, %v1117
        %v1180 = vpack.c.bf16 %v1124, %v1122
        %v1181 = vpack.c.bf16 %v1129, %v1127
        %v1182 = vpack.c.bf16 %v1134, %v1132
        %v1184 = vsel %vm219, %v1167, 0
        %v1187 = vsel %vm219, %v1168, 0
        %v1190 = vsel %vm219, %v1169, 0
        %v1193 = vsel %vm219, %v1170, 0
        %v1196 = vsel %vm219, %v1171, 0
        %v1199 = vsel %vm219, %v1172, 0
        %v1202 = vsel %vm219, %v1173, 0
        %v1205 = vsel %vm219, %v1174, 0
        %v1208 = vsel %vm219, %v1175, 0
        %v1211 = vsel %vm219, %v1176, 0
        %v1214 = vsel %vm219, %v1177, 0
        %v1217 = vsel %vm219, %v1178, 0
        %v1220 = vsel %vm219, %v1179, 0
        %v1223 = vsel %vm219, %v1180, 0
        %v1226 = vsel %vm219, %v1181, 0
        %v1229 = vsel %vm219, %v1182, 0
        %v1232 = vsel %vm677, %v429, 0
        %1234 = vmatprep.subr.bf16.mxu0 0
        %1235 = vmatpush1.bf16.msra.mxu0 %v1232
        %1236 = vmatprep.subr.bf16.mxu0 0
        %1237 = vmatpush1.bf16.msra.mxu0 0
        %1238 = vmatprep.subr.bf16.mxu0 0
        %1239 = vmatpush1.bf16.msra.mxu0 0
        %1240 = vmatprep.subr.bf16.mxu0 0
        %1241 = vmatpush1.bf16.msra.mxu0 0
        %1242 = vmatprep.subr.bf16.mxu0 0
        %1243 = vmatpush1.bf16.msra.mxu0 0
        %1244 = vmatprep.subr.bf16.mxu0 0
        %1245 = vmatpush1.bf16.msra.mxu0 0
        %1246 = vmatprep.subr.bf16.mxu0 0
        %1247 = vmatpush1.bf16.msra.mxu0 0
        %1248 = vmatprep.subr.bf16.mxu0 0
        %1249 = vmatpush1.bf16.msra.mxu0 0
        %1250 = vmatprep.subr.bf16.mxu0 0
        %1251 = vmatpush1.bf16.msra.mxu0 0
        %1252 = vmatprep.subr.bf16.mxu0 0
        %1253 = vmatpush1.bf16.msra.mxu0 0
        %1254 = vmatprep.subr.bf16.mxu0 0
        %1255 = vmatpush1.bf16.msra.mxu0 0
        %1256 = vmatprep.subr.bf16.mxu0 0
        %1257 = vmatpush1.bf16.msra.mxu0 0
        %1258 = vmatprep.subr.bf16.mxu0 0
        %1259 = vmatpush1.bf16.msra.mxu0 0
        %1260 = vmatprep.subr.bf16.mxu0 0
        %1261 = vmatpush1.bf16.msra.mxu0 0
        %1262 = vmatprep.subr.bf16.mxu0 0
        %1263 = vmatpush1.bf16.msra.mxu0 0
        %1264 = vmatprep.subr.bf16.mxu0 0
        %1265 = vmatpush1.bf16.msra.mxu0 0
        %1266 = vmatprep.mubr.bf16.mxu0 0
        %1267 = vmatmul.mubr.bf16.gmra.mrb[0].mxu0 %v1184
        %v1268 = vpop.f32.mrb[0].mxu0
        %v1269 = vadd.f32 0.0, %v1268
        %v1270 = vpop.f32.mrb[0].mxu0
        %v1271 = vpop.f32.mrb[0].mxu0
        %v1272 = vadd.f32 0.0, %v1271
        %v1273 = vpop.f32.mrb[0].mxu0
        %1274 = vmatprep.mubr.bf16.mxu0 0
        %1275 = vmatmul.mubr.bf16.gmra.mrb[0].mxu0 %v1187
        %v1276 = vpop.f32.mrb[0].mxu0
        %v1277 = vadd.f32 0.0, %v1276
        %v1278 = vpop.f32.mrb[0].mxu0
        %v1279 = vpop.f32.mrb[0].mxu0
        %v1280 = vadd.f32 0.0, %v1279
        %v1281 = vpop.f32.mrb[0].mxu0
        %1282 = vmatprep.mubr.bf16.mxu0 0
        %1283 = vmatmul.mubr.bf16.gmra.mrb[0].mxu0 %v1190
        %v1284 = vpop.f32.mrb[0].mxu0
        %v1285 = vadd.f32 0.0, %v1284
        %v1286 = vpop.f32.mrb[0].mxu0
        %v1287 = vpop.f32.mrb[0].mxu0
        %v1288 = vadd.f32 0.0, %v1287
        %v1289 = vpop.f32.mrb[0].mxu0
        %1290 = vmatprep.mubr.bf16.mxu0 0
        %1291 = vmatmul.mubr.bf16.gmra.mrb[0].mxu0 %v1193
        %v1292 = vpop.f32.mrb[0].mxu0
        %v1293 = vadd.f32 0.0, %v1292
        %v1294 = vpop.f32.mrb[0].mxu0
        %v1295 = vpop.f32.mrb[0].mxu0
        %v1296 = vadd.f32 0.0, %v1295
        %v1297 = vpop.f32.mrb[0].mxu0
        %1298 = vmatprep.mubr.bf16.mxu0 0
        %1299 = vmatmul.mubr.bf16.gmra.mrb[0].mxu0 %v1196
        %v1300 = vpop.f32.mrb[0].mxu0
        %v1301 = vadd.f32 0.0, %v1300
        %v1302 = vpop.f32.mrb[0].mxu0
        %v1303 = vpop.f32.mrb[0].mxu0
        %v1304 = vadd.f32 0.0, %v1303
        %v1305 = vpop.f32.mrb[0].mxu0
        %1306 = vmatprep.mubr.bf16.mxu0 0
        %1307 = vmatmul.mubr.bf16.gmra.mrb[0].mxu0 %v1199
        %v1308 = vpop.f32.mrb[0].mxu0
        %v1309 = vadd.f32 0.0, %v1308
        %v1310 = vpop.f32.mrb[0].mxu0
        %v1311 = vpop.f32.mrb[0].mxu0
        %v1312 = vadd.f32 0.0, %v1311
        %v1313 = vpop.f32.mrb[0].mxu0
        %1314 = vmatprep.mubr.bf16.mxu0 0
        %1315 = vmatmul.mubr.bf16.gmra.mrb[0].mxu0 %v1202
        %v1316 = vpop.f32.mrb[0].mxu0
        %v1317 = vadd.f32 0.0, %v1316
        %v1318 = vpop.f32.mrb[0].mxu0
        %v1319 = vpop.f32.mrb[0].mxu0
        %v1320 = vadd.f32 0.0, %v1319
        %v1321 = vpop.f32.mrb[0].mxu0
        %1322 = vmatprep.mubr.bf16.mxu0 0
        %1323 = vmatmul.mubr.bf16.gmra.mrb[0].mxu0 %v1205
        %v1324 = vpop.f32.mrb[0].mxu0
        %v1325 = vadd.f32 0.0, %v1324
        %v1326 = vpop.f32.mrb[0].mxu0
        %v1327 = vpop.f32.mrb[0].mxu0
        %v1328 = vadd.f32 0.0, %v1327
        %v1329 = vpop.f32.mrb[0].mxu0
        %1330 = vmatprep.mubr.bf16.mxu0 0
        %1331 = vmatmul.mubr.bf16.gmra.mrb[0].mxu0 %v1208
        %v1332 = vpop.f32.mrb[0].mxu0
        %v1333 = vadd.f32 0.0, %v1332
        %v1334 = vpop.f32.mrb[0].mxu0
        %v1335 = vpop.f32.mrb[0].mxu0
        %v1336 = vadd.f32 0.0, %v1335
        %v1337 = vpop.f32.mrb[0].mxu0
        %1338 = vmatprep.mubr.bf16.mxu0 0
        %1339 = vmatmul.mubr.bf16.gmra.mrb[0].mxu0 %v1211
        %v1340 = vpop.f32.mrb[0].mxu0
        %v1341 = vadd.f32 0.0, %v1340
        %v1342 = vpop.f32.mrb[0].mxu0
        %v1343 = vpop.f32.mrb[0].mxu0
        %v1344 = vadd.f32 0.0, %v1343
        %v1345 = vpop.f32.mrb[0].mxu0
        %1346 = vmatprep.mubr.bf16.mxu0 0
        %1347 = vmatmul.mubr.bf16.gmra.mrb[0].mxu0 %v1214
        %v1348 = vpop.f32.mrb[0].mxu0
        %v1349 = vadd.f32 0.0, %v1348
        %v1350 = vpop.f32.mrb[0].mxu0
        %v1351 = vpop.f32.mrb[0].mxu0
        %v1352 = vadd.f32 0.0, %v1351
        %v1353 = vpop.f32.mrb[0].mxu0
        %1354 = vmatprep.mubr.bf16.mxu0 0
        %1355 = vmatmul.mubr.bf16.gmra.mrb[0].mxu0 %v1217
        %v1356 = vpop.f32.mrb[0].mxu0
        %v1357 = vadd.f32 0.0, %v1356
        %v1358 = vpop.f32.mrb[0].mxu0
        %v1359 = vpop.f32.mrb[0].mxu0
        %v1360 = vadd.f32 0.0, %v1359
        %v1361 = vpop.f32.mrb[0].mxu0
        %1362 = vmatprep.mubr.bf16.mxu0 0
        %1363 = vmatmul.mubr.bf16.gmra.mrb[0].mxu0 %v1220
        %v1364 = vpop.f32.mrb[0].mxu0
        %v1365 = vadd.f32 0.0, %v1364
        %v1366 = vpop.f32.mrb[0].mxu0
        %v1367 = vpop.f32.mrb[0].mxu0
        %v1368 = vadd.f32 0.0, %v1367
        %v1369 = vpop.f32.mrb[0].mxu0
        %1370 = vmatprep.mubr.bf16.mxu0 0
        %1371 = vmatmul.mubr.bf16.gmra.mrb[0].mxu0 %v1223
        %v1372 = vpop.f32.mrb[0].mxu0
        %v1373 = vadd.f32 0.0, %v1372
        %v1374 = vpop.f32.mrb[0].mxu0
        %v1375 = vpop.f32.mrb[0].mxu0
        %v1376 = vadd.f32 0.0, %v1375
        %v1377 = vpop.f32.mrb[0].mxu0
        %1378 = vmatprep.mubr.bf16.mxu0 0
        %1379 = vmatmul.mubr.bf16.gmra.mrb[0].mxu0 %v1226
        %v1380 = vpop.f32.mrb[0].mxu0
        %v1381 = vadd.f32 0.0, %v1380
        %v1382 = vpop.f32.mrb[0].mxu0
        %v1383 = vpop.f32.mrb[0].mxu0
        %v1384 = vadd.f32 0.0, %v1383
        %v1385 = vpop.f32.mrb[0].mxu0
        %1386 = vmatprep.mubr.bf16.mxu0 0
        %1387 = vmatmul.mubr.bf16.gmra.mrb[0].mxu0 %v1229
        %v1388 = vpop.f32.mrb[0].mxu0
        %v1389 = vadd.f32 0.0, %v1388
        %v1390 = vpop.f32.mrb[0].mxu0
        %v1391 = vpop.f32.mrb[0].mxu0
        %v1392 = vadd.f32 0.0, %v1391
        %v1393 = vpop.f32.mrb[0].mxu0
        %1394 = vdwg.mxu0
        %v1395 = vadd.f32 %v928, %v1269
        %v1396 = vadd.f32 %v931, %v1272
        %v1397 = vadd.f32 %v936, %v1277
        %v1398 = vadd.f32 %v939, %v1280
        %v1399 = vadd.f32 %v944, %v1285
        %v1400 = vadd.f32 %v947, %v1288
        %v1401 = vadd.f32 %v952, %v1293
        %v1402 = vadd.f32 %v955, %v1296
        %v1403 = vadd.f32 %v960, %v1301
        %v1404 = vadd.f32 %v963, %v1304
        %v1405 = vadd.f32 %v968, %v1309
        %v1406 = vadd.f32 %v971, %v1312
        %v1407 = vadd.f32 %v976, %v1317
        %v1408 = vadd.f32 %v979, %v1320
        %v1409 = vadd.f32 %v984, %v1325
        %v1410 = vadd.f32 %v987, %v1328
        %v1411 = vadd.f32 %v992, %v1333
        %v1412 = vadd.f32 %v995, %v1336
        %v1413 = vadd.f32 %v1000, %v1341
        %v1414 = vadd.f32 %v1003, %v1344
        %v1415 = vadd.f32 %v1008, %v1349
        %v1416 = vadd.f32 %v1011, %v1352
        %v1417 = vadd.f32 %v1016, %v1357
        %v1418 = vadd.f32 %v1019, %v1360
        %v1419 = vadd.f32 %v1024, %v1365
        %v1420 = vadd.f32 %v1027, %v1368
        %v1421 = vadd.f32 %v1032, %v1373
        %v1422 = vadd.f32 %v1035, %v1376
        %v1423 = vadd.f32 %v1040, %v1381
        %v1424 = vadd.f32 %v1043, %v1384
        %v1425 = vadd.f32 %v1048, %v1389
        %v1426 = vadd.f32 %v1051, %v1392
        %v1427 = vpack.c.bf16 %v422, %v421
        %v1429 = vsel %vm219, %v1427, 0
        %v1432 = vsel %vm677, %v430, 0
        %1434 = vmatprep.subr.bf16.mxu0 0
        %1435 = vmatpush1.bf16.msra.mxu0 %v1432
        %1436 = vmatprep.subr.bf16.mxu0 0
        %1437 = vmatpush1.bf16.msra.mxu0 0
        %1438 = vmatprep.subr.bf16.mxu0 0
        %1439 = vmatpush1.bf16.msra.mxu0 0
        %1440 = vmatprep.subr.bf16.mxu0 0
        %1441 = vmatpush1.bf16.msra.mxu0 0
        %1442 = vmatprep.subr.bf16.mxu0 0
        %1443 = vmatpush1.bf16.msra.mxu0 0
        %1444 = vmatprep.subr.bf16.mxu0 0
        %1445 = vmatpush1.bf16.msra.mxu0 0
        %1446 = vmatprep.subr.bf16.mxu0 0
        %1447 = vmatpush1.bf16.msra.mxu0 0
        %1448 = vmatprep.subr.bf16.mxu0 0
        %1449 = vmatpush1.bf16.msra.mxu0 0
        %1450 = vmatprep.subr.bf16.mxu0 0
        %1451 = vmatpush1.bf16.msra.mxu0 0
        %1452 = vmatprep.subr.bf16.mxu0 0
        %1453 = vmatpush1.bf16.msra.mxu0 0
        %1454 = vmatprep.subr.bf16.mxu0 0
        %1455 = vmatpush1.bf16.msra.mxu0 0
        %1456 = vmatprep.subr.bf16.mxu0 0
        %1457 = vmatpush1.bf16.msra.mxu0 0
        %1458 = vmatprep.subr.bf16.mxu0 0
        %1459 = vmatpush1.bf16.msra.mxu0 0
        %1460 = vmatprep.subr.bf16.mxu0 0
        %1461 = vmatpush1.bf16.msra.mxu0 0
        %1462 = vmatprep.subr.bf16.mxu0 0
        %1463 = vmatpush1.bf16.msra.mxu0 0
        %1464 = vmatprep.subr.bf16.mxu0 0
        %1465 = vmatpush1.bf16.msra.mxu0 0
        %1466 = vmatprep.mubr.bf16.mxu0 0
        %1467 = vmatmul.mubr.bf16.gmra.mrb[0].mxu0 %v846
        %v1468 = vpop.f32.mrb[0].mxu0
        %v1469 = vadd.f32 0.0, %v1468
        %v1470 = vpop.f32.mrb[0].mxu0
        %v1471 = vpop.f32.mrb[0].mxu0
        %v1472 = vadd.f32 0.0, %v1471
        %v1473 = vpop.f32.mrb[0].mxu0
        %1474 = vmatprep.mubr.bf16.mxu0 0
        %1475 = vmatmul.mubr.bf16.gmra.mrb[0].mxu0 %v849
        %v1476 = vpop.f32.mrb[0].mxu0
        %v1477 = vadd.f32 0.0, %v1476
        %v1478 = vpop.f32.mrb[0].mxu0
        %v1479 = vpop.f32.mrb[0].mxu0
        %v1480 = vadd.f32 0.0, %v1479
        %v1481 = vpop.f32.mrb[0].mxu0
        %1482 = vmatprep.mubr.bf16.mxu0 0
        %1483 = vmatmul.mubr.bf16.gmra.mrb[0].mxu0 %v852
        %v1484 = vpop.f32.mrb[0].mxu0
        %v1485 = vadd.f32 0.0, %v1484
        %v1486 = vpop.f32.mrb[0].mxu0
        %v1487 = vpop.f32.mrb[0].mxu0
        %v1488 = vadd.f32 0.0, %v1487
        %v1489 = vpop.f32.mrb[0].mxu0
        %1490 = vmatprep.mubr.bf16.mxu0 0
        %1491 = vmatmul.mubr.bf16.gmra.mrb[0].mxu0 %v855
        %v1492 = vpop.f32.mrb[0].mxu0
        %v1493 = vadd.f32 0.0, %v1492
        %v1494 = vpop.f32.mrb[0].mxu0
        %v1495 = vpop.f32.mrb[0].mxu0
        %v1496 = vadd.f32 0.0, %v1495
        %v1497 = vpop.f32.mrb[0].mxu0
        %1498 = vmatprep.mubr.bf16.mxu0 0
        %1499 = vmatmul.mubr.bf16.gmra.mrb[0].mxu0 %v858
        %v1500 = vpop.f32.mrb[0].mxu0
        %v1501 = vadd.f32 0.0, %v1500
        %v1502 = vpop.f32.mrb[0].mxu0
        %v1503 = vpop.f32.mrb[0].mxu0
        %v1504 = vadd.f32 0.0, %v1503
        %v1505 = vpop.f32.mrb[0].mxu0
        %1506 = vmatprep.mubr.bf16.mxu0 0
        %1507 = vmatmul.mubr.bf16.gmra.mrb[0].mxu0 %v861
        %v1508 = vpop.f32.mrb[0].mxu0
        %v1509 = vadd.f32 0.0, %v1508
        %v1510 = vpop.f32.mrb[0].mxu0
        %v1511 = vpop.f32.mrb[0].mxu0
        %v1512 = vadd.f32 0.0, %v1511
        %v1513 = vpop.f32.mrb[0].mxu0
        %1514 = vmatprep.mubr.bf16.mxu0 0
        %1515 = vmatmul.mubr.bf16.gmra.mrb[0].mxu0 %v864
        %v1516 = vpop.f32.mrb[0].mxu0
        %v1517 = vadd.f32 0.0, %v1516
        %v1518 = vpop.f32.mrb[0].mxu0
        %v1519 = vpop.f32.mrb[0].mxu0
        %v1520 = vadd.f32 0.0, %v1519
        %v1521 = vpop.f32.mrb[0].mxu0
        %1522 = vmatprep.mubr.bf16.mxu0 0
        %1523 = vmatmul.mubr.bf16.gmra.mrb[0].mxu0 %v867
        %v1524 = vpop.f32.mrb[0].mxu0
        %v1525 = vadd.f32 0.0, %v1524
        %v1526 = vpop.f32.mrb[0].mxu0
        %v1527 = vpop.f32.mrb[0].mxu0
        %v1528 = vadd.f32 0.0, %v1527
        %v1529 = vpop.f32.mrb[0].mxu0
        %1530 = vmatprep.mubr.bf16.mxu0 0
        %1531 = vmatmul.mubr.bf16.gmra.mrb[0].mxu0 %v870
        %v1532 = vpop.f32.mrb[0].mxu0
        %v1533 = vadd.f32 0.0, %v1532
        %v1534 = vpop.f32.mrb[0].mxu0
        %v1535 = vpop.f32.mrb[0].mxu0
        %v1536 = vadd.f32 0.0, %v1535
        %v1537 = vpop.f32.mrb[0].mxu0
        %1538 = vmatprep.mubr.bf16.mxu0 0
        %1539 = vmatmul.mubr.bf16.gmra.mrb[0].mxu0 %v873
        %v1540 = vpop.f32.mrb[0].mxu0
        %v1541 = vadd.f32 0.0, %v1540
        %v1542 = vpop.f32.mrb[0].mxu0
        %v1543 = vpop.f32.mrb[0].mxu0
        %v1544 = vadd.f32 0.0, %v1543
        %v1545 = vpop.f32.mrb[0].mxu0
        %1546 = vmatprep.mubr.bf16.mxu0 0
        %1547 = vmatmul.mubr.bf16.gmra.mrb[0].mxu0 %v876
        %v1548 = vpop.f32.mrb[0].mxu0
        %v1549 = vadd.f32 0.0, %v1548
        %v1550 = vpop.f32.mrb[0].mxu0
        %v1551 = vpop.f32.mrb[0].mxu0
        %v1552 = vadd.f32 0.0, %v1551
        %v1553 = vpop.f32.mrb[0].mxu0
        %1554 = vmatprep.mubr.bf16.mxu0 0
        %1555 = vmatmul.mubr.bf16.gmra.mrb[0].mxu0 %v879
        %v1556 = vpop.f32.mrb[0].mxu0
        %v1557 = vadd.f32 0.0, %v1556
        %v1558 = vpop.f32.mrb[0].mxu0
        %v1559 = vpop.f32.mrb[0].mxu0
        %v1560 = vadd.f32 0.0, %v1559
        %v1561 = vpop.f32.mrb[0].mxu0
        %1562 = vmatprep.mubr.bf16.mxu0 0
        %1563 = vmatmul.mubr.bf16.gmra.mrb[0].mxu0 %v882
        %v1564 = vpop.f32.mrb[0].mxu0
        %v1565 = vadd.f32 0.0, %v1564
        %v1566 = vpop.f32.mrb[0].mxu0
        %v1567 = vpop.f32.mrb[0].mxu0
        %v1568 = vadd.f32 0.0, %v1567
        %v1569 = vpop.f32.mrb[0].mxu0
        %1570 = vmatprep.mubr.bf16.mxu0 0
        %1571 = vmatmul.mubr.bf16.gmra.mrb[0].mxu0 %v885
        %v1572 = vpop.f32.mrb[0].mxu0
        %v1573 = vadd.f32 0.0, %v1572
        %v1574 = vpop.f32.mrb[0].mxu0
        %v1575 = vpop.f32.mrb[0].mxu0
        %v1576 = vadd.f32 0.0, %v1575
        %v1577 = vpop.f32.mrb[0].mxu0
        %1578 = vmatprep.mubr.bf16.mxu0 0
        %1579 = vmatmul.mubr.bf16.gmra.mrb[0].mxu0 %v888
        %v1580 = vpop.f32.mrb[0].mxu0
        %v1581 = vadd.f32 0.0, %v1580
        %v1582 = vpop.f32.mrb[0].mxu0
        %v1583 = vpop.f32.mrb[0].mxu0
        %v1584 = vadd.f32 0.0, %v1583
        %v1585 = vpop.f32.mrb[0].mxu0
        %1586 = vmatprep.mubr.bf16.mxu0 0
        %1587 = vmatmul.mubr.bf16.gmra.mrb[0].mxu0 %v1429
        %v1588 = vpop.f32.mrb[0].mxu0
        %v1589 = vadd.f32 0.0, %v1588
        %v1590 = vpop.f32.mrb[0].mxu0
        %v1591 = vpop.f32.mrb[0].mxu0
        %v1592 = vadd.f32 0.0, %v1591
        %v1593 = vpop.f32.mrb[0].mxu0
        %1594 = vdwg.mxu0
        %v1595 = vadd.f32 %v1395, %v1469
        %v1596 = vadd.f32 %v1396, %v1472
        %v1597 = vadd.f32 %v1397, %v1477
        %v1598 = vadd.f32 %v1398, %v1480
        %v1599 = vadd.f32 %v1399, %v1485
        %v1600 = vadd.f32 %v1400, %v1488
        %v1601 = vadd.f32 %v1401, %v1493
        %v1602 = vadd.f32 %v1402, %v1496
        %v1603 = vadd.f32 %v1403, %v1501
        %v1604 = vadd.f32 %v1404, %v1504
        %v1605 = vadd.f32 %v1405, %v1509
        %v1606 = vadd.f32 %v1406, %v1512
        %v1607 = vadd.f32 %v1407, %v1517
        %v1608 = vadd.f32 %v1408, %v1520
        %v1609 = vadd.f32 %v1409, %v1525
        %v1610 = vadd.f32 %v1410, %v1528
        %v1611 = vadd.f32 %v1411, %v1533
        %v1612 = vadd.f32 %v1412, %v1536
        %v1613 = vadd.f32 %v1413, %v1541
        %v1614 = vadd.f32 %v1414, %v1544
        %v1615 = vadd.f32 %v1415, %v1549
        %v1616 = vadd.f32 %v1416, %v1552
        %v1617 = vadd.f32 %v1417, %v1557
        %v1618 = vadd.f32 %v1418, %v1560
        %v1619 = vadd.f32 %v1419, %v1565
        %v1620 = vadd.f32 %v1420, %v1568
        %v1621 = vadd.f32 %v1421, %v1573
        %v1622 = vadd.f32 %v1422, %v1576
        %v1623 = vadd.f32 %v1423, %v1581
        %v1624 = vadd.f32 %v1424, %v1584
        %v1625 = vadd.f32 %v1425, %v1589
        %v1626 = vadd.f32 %v1426, %v1592
        %v1630 = vrot.slane %v421, 1
        %v1631 = vrot.slane %v422, 1
        %v1632 = vsel %vm500, %v1630, %v1631
        %v1633 = vrot.slane %v423, 1
        %v1634 = vsel %vm500, %v1631, %v1633
        %v1637 = vpack.c.bf16 %v1634, %v1632
        %v1639 = vsel %vm219, %v1637, 0
        %v1642 = vsel %vm677, %v431, 0
        %1644 = vmatprep.subr.bf16.mxu0 0
        %1645 = vmatpush1.bf16.msra.mxu0 %v1642
        %1646 = vmatprep.subr.bf16.mxu0 0
        %1647 = vmatpush1.bf16.msra.mxu0 0
        %1648 = vmatprep.subr.bf16.mxu0 0
        %1649 = vmatpush1.bf16.msra.mxu0 0
        %1650 = vmatprep.subr.bf16.mxu0 0
        %1651 = vmatpush1.bf16.msra.mxu0 0
        %1652 = vmatprep.subr.bf16.mxu0 0
        %1653 = vmatpush1.bf16.msra.mxu0 0
        %1654 = vmatprep.subr.bf16.mxu0 0
        %1655 = vmatpush1.bf16.msra.mxu0 0
        %1656 = vmatprep.subr.bf16.mxu0 0
        %1657 = vmatpush1.bf16.msra.mxu0 0
        %1658 = vmatprep.subr.bf16.mxu0 0
        %1659 = vmatpush1.bf16.msra.mxu0 0
        %1660 = vmatprep.subr.bf16.mxu0 0
        %1661 = vmatpush1.bf16.msra.mxu0 0
        %1662 = vmatprep.subr.bf16.mxu0 0
        %1663 = vmatpush1.bf16.msra.mxu0 0
        %1664 = vmatprep.subr.bf16.mxu0 0
        %1665 = vmatpush1.bf16.msra.mxu0 0
        %1666 = vmatprep.subr.bf16.mxu0 0
        %1667 = vmatpush1.bf16.msra.mxu0 0
        %1668 = vmatprep.subr.bf16.mxu0 0
        %1669 = vmatpush1.bf16.msra.mxu0 0
        %1670 = vmatprep.subr.bf16.mxu0 0
        %1671 = vmatpush1.bf16.msra.mxu0 0
        %1672 = vmatprep.subr.bf16.mxu0 0
        %1673 = vmatpush1.bf16.msra.mxu0 0
        %1674 = vmatprep.subr.bf16.mxu0 0
        %1675 = vmatpush1.bf16.msra.mxu0 0
        %1676 = vmatprep.mubr.bf16.mxu0 0
        %1677 = vmatmul.mubr.bf16.gmra.mrb[0].mxu0 %v633
        %v1678 = vpop.f32.mrb[0].mxu0
        %v1679 = vadd.f32 0.0, %v1678
        %v1680 = vpop.f32.mrb[0].mxu0
        %v1681 = vpop.f32.mrb[0].mxu0
        %v1682 = vadd.f32 0.0, %v1681
        %v1683 = vpop.f32.mrb[0].mxu0
        %1684 = vmatprep.mubr.bf16.mxu0 0
        %1685 = vmatmul.mubr.bf16.gmra.mrb[0].mxu0 %v636
        %v1686 = vpop.f32.mrb[0].mxu0
        %v1687 = vadd.f32 0.0, %v1686
        %v1688 = vpop.f32.mrb[0].mxu0
        %v1689 = vpop.f32.mrb[0].mxu0
        %v1690 = vadd.f32 0.0, %v1689
        %v1691 = vpop.f32.mrb[0].mxu0
        %1692 = vmatprep.mubr.bf16.mxu0 0
        %1693 = vmatmul.mubr.bf16.gmra.mrb[0].mxu0 %v639
        %v1694 = vpop.f32.mrb[0].mxu0
        %v1695 = vadd.f32 0.0, %v1694
        %v1696 = vpop.f32.mrb[0].mxu0
        %v1697 = vpop.f32.mrb[0].mxu0
        %v1698 = vadd.f32 0.0, %v1697
        %v1699 = vpop.f32.mrb[0].mxu0
        %1700 = vmatprep.mubr.bf16.mxu0 0
        %1701 = vmatmul.mubr.bf16.gmra.mrb[0].mxu0 %v642
        %v1702 = vpop.f32.mrb[0].mxu0
        %v1703 = vadd.f32 0.0, %v1702
        %v1704 = vpop.f32.mrb[0].mxu0
        %v1705 = vpop.f32.mrb[0].mxu0
        %v1706 = vadd.f32 0.0, %v1705
        %v1707 = vpop.f32.mrb[0].mxu0
        %1708 = vmatprep.mubr.bf16.mxu0 0
        %1709 = vmatmul.mubr.bf16.gmra.mrb[0].mxu0 %v645
        %v1710 = vpop.f32.mrb[0].mxu0
        %v1711 = vadd.f32 0.0, %v1710
        %v1712 = vpop.f32.mrb[0].mxu0
        %v1713 = vpop.f32.mrb[0].mxu0
        %v1714 = vadd.f32 0.0, %v1713
        %v1715 = vpop.f32.mrb[0].mxu0
        %1716 = vmatprep.mubr.bf16.mxu0 0
        %1717 = vmatmul.mubr.bf16.gmra.mrb[0].mxu0 %v648
        %v1718 = vpop.f32.mrb[0].mxu0
        %v1719 = vadd.f32 0.0, %v1718
        %v1720 = vpop.f32.mrb[0].mxu0
        %v1721 = vpop.f32.mrb[0].mxu0
        %v1722 = vadd.f32 0.0, %v1721
        %v1723 = vpop.f32.mrb[0].mxu0
        %1724 = vmatprep.mubr.bf16.mxu0 0
        %1725 = vmatmul.mubr.bf16.gmra.mrb[0].mxu0 %v651
        %v1726 = vpop.f32.mrb[0].mxu0
        %v1727 = vadd.f32 0.0, %v1726
        %v1728 = vpop.f32.mrb[0].mxu0
        %v1729 = vpop.f32.mrb[0].mxu0
        %v1730 = vadd.f32 0.0, %v1729
        %v1731 = vpop.f32.mrb[0].mxu0
        %1732 = vmatprep.mubr.bf16.mxu0 0
        %1733 = vmatmul.mubr.bf16.gmra.mrb[0].mxu0 %v654
        %v1734 = vpop.f32.mrb[0].mxu0
        %v1735 = vadd.f32 0.0, %v1734
        %v1736 = vpop.f32.mrb[0].mxu0
        %v1737 = vpop.f32.mrb[0].mxu0
        %v1738 = vadd.f32 0.0, %v1737
        %v1739 = vpop.f32.mrb[0].mxu0
        %1740 = vmatprep.mubr.bf16.mxu0 0
        %1741 = vmatmul.mubr.bf16.gmra.mrb[0].mxu0 %v657
        %v1742 = vpop.f32.mrb[0].mxu0
        %v1743 = vadd.f32 0.0, %v1742
        %v1744 = vpop.f32.mrb[0].mxu0
        %v1745 = vpop.f32.mrb[0].mxu0
        %v1746 = vadd.f32 0.0, %v1745
        %v1747 = vpop.f32.mrb[0].mxu0
        %1748 = vmatprep.mubr.bf16.mxu0 0
        %1749 = vmatmul.mubr.bf16.gmra.mrb[0].mxu0 %v660
        %v1750 = vpop.f32.mrb[0].mxu0
        %v1751 = vadd.f32 0.0, %v1750
        %v1752 = vpop.f32.mrb[0].mxu0
        %v1753 = vpop.f32.mrb[0].mxu0
        %v1754 = vadd.f32 0.0, %v1753
        %v1755 = vpop.f32.mrb[0].mxu0
        %1756 = vmatprep.mubr.bf16.mxu0 0
        %1757 = vmatmul.mubr.bf16.gmra.mrb[0].mxu0 %v663
        %v1758 = vpop.f32.mrb[0].mxu0
        %v1759 = vadd.f32 0.0, %v1758
        %v1760 = vpop.f32.mrb[0].mxu0
        %v1761 = vpop.f32.mrb[0].mxu0
        %v1762 = vadd.f32 0.0, %v1761
        %v1763 = vpop.f32.mrb[0].mxu0
        %1764 = vmatprep.mubr.bf16.mxu0 0
        %1765 = vmatmul.mubr.bf16.gmra.mrb[0].mxu0 %v666
        %v1766 = vpop.f32.mrb[0].mxu0
        %v1767 = vadd.f32 0.0, %v1766
        %v1768 = vpop.f32.mrb[0].mxu0
        %v1769 = vpop.f32.mrb[0].mxu0
        %v1770 = vadd.f32 0.0, %v1769
        %v1771 = vpop.f32.mrb[0].mxu0
        %1772 = vmatprep.mubr.bf16.mxu0 0
        %1773 = vmatmul.mubr.bf16.gmra.mrb[0].mxu0 %v669
        %v1774 = vpop.f32.mrb[0].mxu0
        %v1775 = vadd.f32 0.0, %v1774
        %v1776 = vpop.f32.mrb[0].mxu0
        %v1777 = vpop.f32.mrb[0].mxu0
        %v1778 = vadd.f32 0.0, %v1777
        %v1779 = vpop.f32.mrb[0].mxu0
        %1780 = vmatprep.mubr.bf16.mxu0 0
        %1781 = vmatmul.mubr.bf16.gmra.mrb[0].mxu0 %v672
        %v1782 = vpop.f32.mrb[0].mxu0
        %v1783 = vadd.f32 0.0, %v1782
        %v1784 = vpop.f32.mrb[0].mxu0
        %v1785 = vpop.f32.mrb[0].mxu0
        %v1786 = vadd.f32 0.0, %v1785
        %v1787 = vpop.f32.mrb[0].mxu0
        %1788 = vmatprep.mubr.bf16.mxu0 0
        %1789 = vmatmul.mubr.bf16.gmra.mrb[0].mxu0 %v675
        %v1790 = vpop.f32.mrb[0].mxu0
        %v1791 = vadd.f32 0.0, %v1790
        %v1792 = vpop.f32.mrb[0].mxu0
        %v1793 = vpop.f32.mrb[0].mxu0
        %v1794 = vadd.f32 0.0, %v1793
        %v1795 = vpop.f32.mrb[0].mxu0
        %1796 = vmatprep.mubr.bf16.mxu0 0
        %1797 = vmatmul.mubr.bf16.gmra.mrb[0].mxu0 %v1639
        %v1798 = vpop.f32.mrb[0].mxu0
        %v1799 = vadd.f32 0.0, %v1798
        %v1800 = vpop.f32.mrb[0].mxu0
        %v1801 = vpop.f32.mrb[0].mxu0
        %v1802 = vadd.f32 0.0, %v1801
        %v1803 = vpop.f32.mrb[0].mxu0
        %1804 = vdwg.mxu0
        %v1805 = vadd.f32 %v1595, %v1679
        %v1806 = vadd.f32 %v1596, %v1682
        %v1807 = vadd.f32 %v1597, %v1687
        %v1808 = vadd.f32 %v1598, %v1690
        %v1809 = vadd.f32 %v1599, %v1695
        %v1810 = vadd.f32 %v1600, %v1698
        %v1811 = vadd.f32 %v1601, %v1703
        %v1812 = vadd.f32 %v1602, %v1706
        %v1813 = vadd.f32 %v1603, %v1711
        %v1814 = vadd.f32 %v1604, %v1714
        %v1815 = vadd.f32 %v1605, %v1719
        %v1816 = vadd.f32 %v1606, %v1722
        %v1817 = vadd.f32 %v1607, %v1727
        %v1818 = vadd.f32 %v1608, %v1730
        %v1819 = vadd.f32 %v1609, %v1735
        %v1820 = vadd.f32 %v1610, %v1738
        %v1821 = vadd.f32 %v1611, %v1743
        %v1822 = vadd.f32 %v1612, %v1746
        %v1823 = vadd.f32 %v1613, %v1751
        %v1824 = vadd.f32 %v1614, %v1754
        %v1825 = vadd.f32 %v1615, %v1759
        %v1826 = vadd.f32 %v1616, %v1762
        %v1827 = vadd.f32 %v1617, %v1767
        %v1828 = vadd.f32 %v1618, %v1770
        %v1829 = vadd.f32 %v1619, %v1775
        %v1830 = vadd.f32 %v1620, %v1778
        %v1831 = vadd.f32 %v1621, %v1783
        %v1832 = vadd.f32 %v1622, %v1786
        %v1833 = vadd.f32 %v1623, %v1791
        %v1834 = vadd.f32 %v1624, %v1794
        %v1835 = vadd.f32 %v1625, %v1799
        %v1836 = vadd.f32 %v1626, %v1802
        %v1837 = vrot.slane %v421, 2
        %v1838 = vrot.slane %v422, 2
        %v1839 = vsel %vm1054, %v1837, %v1838
        %v1840 = vrot.slane %v423, 2
        %v1841 = vsel %vm1054, %v1838, %v1840
        %v1844 = vpack.c.bf16 %v1841, %v1839
        %v1846 = vsel %vm219, %v1844, 0
        %v1849 = vsel %vm677, %v432, 0
        %1851 = vmatprep.subr.bf16.mxu0 0
        %1852 = vmatpush1.bf16.msra.mxu0 %v1849
        %1853 = vmatprep.subr.bf16.mxu0 0
        %1854 = vmatpush1.bf16.msra.mxu0 0
        %1855 = vmatprep.subr.bf16.mxu0 0
        %1856 = vmatpush1.bf16.msra.mxu0 0
        %1857 = vmatprep.subr.bf16.mxu0 0
        %1858 = vmatpush1.bf16.msra.mxu0 0
        %1859 = vmatprep.subr.bf16.mxu0 0
        %1860 = vmatpush1.bf16.msra.mxu0 0
        %1861 = vmatprep.subr.bf16.mxu0 0
        %1862 = vmatpush1.bf16.msra.mxu0 0
        %1863 = vmatprep.subr.bf16.mxu0 0
        %1864 = vmatpush1.bf16.msra.mxu0 0
        %1865 = vmatprep.subr.bf16.mxu0 0
        %1866 = vmatpush1.bf16.msra.mxu0 0
        %1867 = vmatprep.subr.bf16.mxu0 0
        %1868 = vmatpush1.bf16.msra.mxu0 0
        %1869 = vmatprep.subr.bf16.mxu0 0
        %1870 = vmatpush1.bf16.msra.mxu0 0
        %1871 = vmatprep.subr.bf16.mxu0 0
        %1872 = vmatpush1.bf16.msra.mxu0 0
        %1873 = vmatprep.subr.bf16.mxu0 0
        %1874 = vmatpush1.bf16.msra.mxu0 0
        %1875 = vmatprep.subr.bf16.mxu0 0
        %1876 = vmatpush1.bf16.msra.mxu0 0
        %1877 = vmatprep.subr.bf16.mxu0 0
        %1878 = vmatpush1.bf16.msra.mxu0 0
        %1879 = vmatprep.subr.bf16.mxu0 0
        %1880 = vmatpush1.bf16.msra.mxu0 0
        %1881 = vmatprep.subr.bf16.mxu0 0
        %1882 = vmatpush1.bf16.msra.mxu0 0
        %1883 = vmatprep.mubr.bf16.mxu0 0
        %1884 = vmatmul.mubr.bf16.gmra.mrb[0].mxu0 %v1187
        %v1885 = vpop.f32.mrb[0].mxu0
        %v1886 = vadd.f32 0.0, %v1885
        %v1887 = vpop.f32.mrb[0].mxu0
        %v1888 = vpop.f32.mrb[0].mxu0
        %v1889 = vadd.f32 0.0, %v1888
        %v1890 = vpop.f32.mrb[0].mxu0
        %1891 = vmatprep.mubr.bf16.mxu0 0
        %1892 = vmatmul.mubr.bf16.gmra.mrb[0].mxu0 %v1190
        %v1893 = vpop.f32.mrb[0].mxu0
        %v1894 = vadd.f32 0.0, %v1893
        %v1895 = vpop.f32.mrb[0].mxu0
        %v1896 = vpop.f32.mrb[0].mxu0
        %v1897 = vadd.f32 0.0, %v1896
        %v1898 = vpop.f32.mrb[0].mxu0
        %1899 = vmatprep.mubr.bf16.mxu0 0
        %1900 = vmatmul.mubr.bf16.gmra.mrb[0].mxu0 %v1193
        %v1901 = vpop.f32.mrb[0].mxu0
        %v1902 = vadd.f32 0.0, %v1901
        %v1903 = vpop.f32.mrb[0].mxu0
        %v1904 = vpop.f32.mrb[0].mxu0
        %v1905 = vadd.f32 0.0, %v1904
        %v1906 = vpop.f32.mrb[0].mxu0
        %1907 = vmatprep.mubr.bf16.mxu0 0
        %1908 = vmatmul.mubr.bf16.gmra.mrb[0].mxu0 %v1196
        %v1909 = vpop.f32.mrb[0].mxu0
        %v1910 = vadd.f32 0.0, %v1909
        %v1911 = vpop.f32.mrb[0].mxu0
        %v1912 = vpop.f32.mrb[0].mxu0
        %v1913 = vadd.f32 0.0, %v1912
        %v1914 = vpop.f32.mrb[0].mxu0
        %1915 = vmatprep.mubr.bf16.mxu0 0
        %1916 = vmatmul.mubr.bf16.gmra.mrb[0].mxu0 %v1199
        %v1917 = vpop.f32.mrb[0].mxu0
        %v1918 = vadd.f32 0.0, %v1917
        %v1919 = vpop.f32.mrb[0].mxu0
        %v1920 = vpop.f32.mrb[0].mxu0
        %v1921 = vadd.f32 0.0, %v1920
        %v1922 = vpop.f32.mrb[0].mxu0
        %1923 = vmatprep.mubr.bf16.mxu0 0
        %1924 = vmatmul.mubr.bf16.gmra.mrb[0].mxu0 %v1202
        %v1925 = vpop.f32.mrb[0].mxu0
        %v1926 = vadd.f32 0.0, %v1925
        %v1927 = vpop.f32.mrb[0].mxu0
        %v1928 = vpop.f32.mrb[0].mxu0
        %v1929 = vadd.f32 0.0, %v1928
        %v1930 = vpop.f32.mrb[0].mxu0
        %1931 = vmatprep.mubr.bf16.mxu0 0
        %1932 = vmatmul.mubr.bf16.gmra.mrb[0].mxu0 %v1205
        %v1933 = vpop.f32.mrb[0].mxu0
        %v1934 = vadd.f32 0.0, %v1933
        %v1935 = vpop.f32.mrb[0].mxu0
        %v1936 = vpop.f32.mrb[0].mxu0
        %v1937 = vadd.f32 0.0, %v1936
        %v1938 = vpop.f32.mrb[0].mxu0
        %1939 = vmatprep.mubr.bf16.mxu0 0
        %1940 = vmatmul.mubr.bf16.gmra.mrb[0].mxu0 %v1208
        %v1941 = vpop.f32.mrb[0].mxu0
        %v1942 = vadd.f32 0.0, %v1941
        %v1943 = vpop.f32.mrb[0].mxu0
        %v1944 = vpop.f32.mrb[0].mxu0
        %v1945 = vadd.f32 0.0, %v1944
        %v1946 = vpop.f32.mrb[0].mxu0
        %1947 = vmatprep.mubr.bf16.mxu0 0
        %1948 = vmatmul.mubr.bf16.gmra.mrb[0].mxu0 %v1211
        %v1949 = vpop.f32.mrb[0].mxu0
        %v1950 = vadd.f32 0.0, %v1949
        %v1951 = vpop.f32.mrb[0].mxu0
        %v1952 = vpop.f32.mrb[0].mxu0
        %v1953 = vadd.f32 0.0, %v1952
        %v1954 = vpop.f32.mrb[0].mxu0
        %1955 = vmatprep.mubr.bf16.mxu0 0
        %1956 = vmatmul.mubr.bf16.gmra.mrb[0].mxu0 %v1214
        %v1957 = vpop.f32.mrb[0].mxu0
        %v1958 = vadd.f32 0.0, %v1957
        %v1959 = vpop.f32.mrb[0].mxu0
        %v1960 = vpop.f32.mrb[0].mxu0
        %v1961 = vadd.f32 0.0, %v1960
        %v1962 = vpop.f32.mrb[0].mxu0
        %1963 = vmatprep.mubr.bf16.mxu0 0
        %1964 = vmatmul.mubr.bf16.gmra.mrb[0].mxu0 %v1217
        %v1965 = vpop.f32.mrb[0].mxu0
        %v1966 = vadd.f32 0.0, %v1965
        %v1967 = vpop.f32.mrb[0].mxu0
        %v1968 = vpop.f32.mrb[0].mxu0
        %v1969 = vadd.f32 0.0, %v1968
        %v1970 = vpop.f32.mrb[0].mxu0
        %1971 = vmatprep.mubr.bf16.mxu0 0
        %1972 = vmatmul.mubr.bf16.gmra.mrb[0].mxu0 %v1220
        %v1973 = vpop.f32.mrb[0].mxu0
        %v1974 = vadd.f32 0.0, %v1973
        %v1975 = vpop.f32.mrb[0].mxu0
        %v1976 = vpop.f32.mrb[0].mxu0
        %v1977 = vadd.f32 0.0, %v1976
        %v1978 = vpop.f32.mrb[0].mxu0
        %1979 = vmatprep.mubr.bf16.mxu0 0
        %1980 = vmatmul.mubr.bf16.gmra.mrb[0].mxu0 %v1223
        %v1981 = vpop.f32.mrb[0].mxu0
        %v1982 = vadd.f32 0.0, %v1981
        %v1983 = vpop.f32.mrb[0].mxu0
        %v1984 = vpop.f32.mrb[0].mxu0
        %v1985 = vadd.f32 0.0, %v1984
        %v1986 = vpop.f32.mrb[0].mxu0
        %1987 = vmatprep.mubr.bf16.mxu0 0
        %1988 = vmatmul.mubr.bf16.gmra.mrb[0].mxu0 %v1226
        %v1989 = vpop.f32.mrb[0].mxu0
        %v1990 = vadd.f32 0.0, %v1989
        %v1991 = vpop.f32.mrb[0].mxu0
        %v1992 = vpop.f32.mrb[0].mxu0
        %v1993 = vadd.f32 0.0, %v1992
        %v1994 = vpop.f32.mrb[0].mxu0
        %1995 = vmatprep.mubr.bf16.mxu0 0
        %1996 = vmatmul.mubr.bf16.gmra.mrb[0].mxu0 %v1229
        %v1997 = vpop.f32.mrb[0].mxu0
        %v1998 = vadd.f32 0.0, %v1997
        %v1999 = vpop.f32.mrb[0].mxu0
        %v2000 = vpop.f32.mrb[0].mxu0
        %v2001 = vadd.f32 0.0, %v2000
        %v2002 = vpop.f32.mrb[0].mxu0
        %2003 = vmatprep.mubr.bf16.mxu0 0
        %2004 = vmatmul.mubr.bf16.gmra.mrb[0].mxu0 %v1846
        %v2005 = vpop.f32.mrb[0].mxu0
        %v2006 = vadd.f32 0.0, %v2005
        %v2007 = vpop.f32.mrb[0].mxu0
        %v2008 = vpop.f32.mrb[0].mxu0
        %v2009 = vadd.f32 0.0, %v2008
        %v2010 = vpop.f32.mrb[0].mxu0
        %2011 = vdwg.mxu0
        %v2012 = vadd.f32 %v1805, %v1886
        %v2013 = vadd.f32 %v1806, %v1889
        %v2014 = vadd.f32 %v1807, %v1894
        %v2015 = vadd.f32 %v1808, %v1897
        %v2016 = vadd.f32 %v1809, %v1902
        %v2017 = vadd.f32 %v1810, %v1905
        %v2018 = vadd.f32 %v1811, %v1910
        %v2019 = vadd.f32 %v1812, %v1913
        %v2020 = vadd.f32 %v1813, %v1918
        %v2021 = vadd.f32 %v1814, %v1921
        %v2022 = vadd.f32 %v1815, %v1926
        %v2023 = vadd.f32 %v1816, %v1929
        %v2024 = vadd.f32 %v1817, %v1934
        %v2025 = vadd.f32 %v1818, %v1937
        %v2026 = vadd.f32 %v1819, %v1942
        %v2027 = vadd.f32 %v1820, %v1945
        %v2028 = vadd.f32 %v1821, %v1950
        %v2029 = vadd.f32 %v1822, %v1953
        %v2030 = vadd.f32 %v1823, %v1958
        %v2031 = vadd.f32 %v1824, %v1961
        %v2032 = vadd.f32 %v1825, %v1966
        %v2033 = vadd.f32 %v1826, %v1969
        %v2034 = vadd.f32 %v1827, %v1974
        %v2035 = vadd.f32 %v1828, %v1977
        %v2036 = vadd.f32 %v1829, %v1982
        %v2037 = vadd.f32 %v1830, %v1985
        %v2038 = vadd.f32 %v1831, %v1990
        %v2039 = vadd.f32 %v1832, %v1993
        %v2040 = vadd.f32 %v1833, %v1998
        %v2041 = vadd.f32 %v1834, %v2001
        %v2042 = vadd.f32 %v1835, %v2006
        %v2043 = vadd.f32 %v1836, %v2009
        %v2044 = vpack.c.bf16 %v425, %v424
        %v2046 = vsel %vm219, %v2044, 0
        %v2049 = vsel %vm677, %v433, 0
        %2051 = vmatprep.subr.bf16.mxu0 0
        %2052 = vmatpush1.bf16.msra.mxu0 %v2049
        %2053 = vmatprep.subr.bf16.mxu0 0
        %2054 = vmatpush1.bf16.msra.mxu0 0
        %2055 = vmatprep.subr.bf16.mxu0 0
        %2056 = vmatpush1.bf16.msra.mxu0 0
        %2057 = vmatprep.subr.bf16.mxu0 0
        %2058 = vmatpush1.bf16.msra.mxu0 0
        %2059 = vmatprep.subr.bf16.mxu0 0
        %2060 = vmatpush1.bf16.msra.mxu0 0
        %2061 = vmatprep.subr.bf16.mxu0 0
        %2062 = vmatpush1.bf16.msra.mxu0 0
        %2063 = vmatprep.subr.bf16.mxu0 0
        %2064 = vmatpush1.bf16.msra.mxu0 0
        %2065 = vmatprep.subr.bf16.mxu0 0
        %2066 = vmatpush1.bf16.msra.mxu0 0
        %2067 = vmatprep.subr.bf16.mxu0 0
        %2068 = vmatpush1.bf16.msra.mxu0 0
        %2069 = vmatprep.subr.bf16.mxu0 0
        %2070 = vmatpush1.bf16.msra.mxu0 0
        %2071 = vmatprep.subr.bf16.mxu0 0
        %2072 = vmatpush1.bf16.msra.mxu0 0
        %2073 = vmatprep.subr.bf16.mxu0 0
        %2074 = vmatpush1.bf16.msra.mxu0 0
        %2075 = vmatprep.subr.bf16.mxu0 0
        %2076 = vmatpush1.bf16.msra.mxu0 0
        %2077 = vmatprep.subr.bf16.mxu0 0
        %2078 = vmatpush1.bf16.msra.mxu0 0
        %2079 = vmatprep.subr.bf16.mxu0 0
        %2080 = vmatpush1.bf16.msra.mxu0 0
        %2081 = vmatprep.subr.bf16.mxu0 0
        %2082 = vmatpush1.bf16.msra.mxu0 0
        %2083 = vmatprep.mubr.bf16.mxu0 0
        %2084 = vmatmul.mubr.bf16.gmra.mrb[0].mxu0 %v849
        %v2085 = vpop.f32.mrb[0].mxu0
        %v2086 = vadd.f32 0.0, %v2085
        %v2087 = vpop.f32.mrb[0].mxu0
        %v2088 = vpop.f32.mrb[0].mxu0
        %v2089 = vadd.f32 0.0, %v2088
        %v2090 = vpop.f32.mrb[0].mxu0
        %2091 = vmatprep.mubr.bf16.mxu0 0
        %2092 = vmatmul.mubr.bf16.gmra.mrb[0].mxu0 %v852
        %v2093 = vpop.f32.mrb[0].mxu0
        %v2094 = vadd.f32 0.0, %v2093
        %v2095 = vpop.f32.mrb[0].mxu0
        %v2096 = vpop.f32.mrb[0].mxu0
        %v2097 = vadd.f32 0.0, %v2096
        %v2098 = vpop.f32.mrb[0].mxu0
        %2099 = vmatprep.mubr.bf16.mxu0 0
        %2100 = vmatmul.mubr.bf16.gmra.mrb[0].mxu0 %v855
        %v2101 = vpop.f32.mrb[0].mxu0
        %v2102 = vadd.f32 0.0, %v2101
        %v2103 = vpop.f32.mrb[0].mxu0
        %v2104 = vpop.f32.mrb[0].mxu0
        %v2105 = vadd.f32 0.0, %v2104
        %v2106 = vpop.f32.mrb[0].mxu0
        %2107 = vmatprep.mubr.bf16.mxu0 0
        %2108 = vmatmul.mubr.bf16.gmra.mrb[0].mxu0 %v858
        %v2109 = vpop.f32.mrb[0].mxu0
        %v2110 = vadd.f32 0.0, %v2109
        %v2111 = vpop.f32.mrb[0].mxu0
        %v2112 = vpop.f32.mrb[0].mxu0
        %v2113 = vadd.f32 0.0, %v2112
        %v2114 = vpop.f32.mrb[0].mxu0
        %2115 = vmatprep.mubr.bf16.mxu0 0
        %2116 = vmatmul.mubr.bf16.gmra.mrb[0].mxu0 %v861
        %v2117 = vpop.f32.mrb[0].mxu0
        %v2118 = vadd.f32 0.0, %v2117
        %v2119 = vpop.f32.mrb[0].mxu0
        %v2120 = vpop.f32.mrb[0].mxu0
        %v2121 = vadd.f32 0.0, %v2120
        %v2122 = vpop.f32.mrb[0].mxu0
        %2123 = vmatprep.mubr.bf16.mxu0 0
        %2124 = vmatmul.mubr.bf16.gmra.mrb[0].mxu0 %v864
        %v2125 = vpop.f32.mrb[0].mxu0
        %v2126 = vadd.f32 0.0, %v2125
        %v2127 = vpop.f32.mrb[0].mxu0
        %v2128 = vpop.f32.mrb[0].mxu0
        %v2129 = vadd.f32 0.0, %v2128
        %v2130 = vpop.f32.mrb[0].mxu0
        %2131 = vmatprep.mubr.bf16.mxu0 0
        %2132 = vmatmul.mubr.bf16.gmra.mrb[0].mxu0 %v867
        %v2133 = vpop.f32.mrb[0].mxu0
        %v2134 = vadd.f32 0.0, %v2133
        %v2135 = vpop.f32.mrb[0].mxu0
        %v2136 = vpop.f32.mrb[0].mxu0
        %v2137 = vadd.f32 0.0, %v2136
        %v2138 = vpop.f32.mrb[0].mxu0
        %2139 = vmatprep.mubr.bf16.mxu0 0
        %2140 = vmatmul.mubr.bf16.gmra.mrb[0].mxu0 %v870
        %v2141 = vpop.f32.mrb[0].mxu0
        %v2142 = vadd.f32 0.0, %v2141
        %v2143 = vpop.f32.mrb[0].mxu0
        %v2144 = vpop.f32.mrb[0].mxu0
        %v2145 = vadd.f32 0.0, %v2144
        %v2146 = vpop.f32.mrb[0].mxu0
        %2147 = vmatprep.mubr.bf16.mxu0 0
        %2148 = vmatmul.mubr.bf16.gmra.mrb[0].mxu0 %v873
        %v2149 = vpop.f32.mrb[0].mxu0
        %v2150 = vadd.f32 0.0, %v2149
        %v2151 = vpop.f32.mrb[0].mxu0
        %v2152 = vpop.f32.mrb[0].mxu0
        %v2153 = vadd.f32 0.0, %v2152
        %v2154 = vpop.f32.mrb[0].mxu0
        %2155 = vmatprep.mubr.bf16.mxu0 0
        %2156 = vmatmul.mubr.bf16.gmra.mrb[0].mxu0 %v876
        %v2157 = vpop.f32.mrb[0].mxu0
        %v2158 = vadd.f32 0.0, %v2157
        %v2159 = vpop.f32.mrb[0].mxu0
        %v2160 = vpop.f32.mrb[0].mxu0
        %v2161 = vadd.f32 0.0, %v2160
        %v2162 = vpop.f32.mrb[0].mxu0
        %2163 = vmatprep.mubr.bf16.mxu0 0
        %2164 = vmatmul.mubr.bf16.gmra.mrb[0].mxu0 %v879
        %v2165 = vpop.f32.mrb[0].mxu0
        %v2166 = vadd.f32 0.0, %v2165
        %v2167 = vpop.f32.mrb[0].mxu0
        %v2168 = vpop.f32.mrb[0].mxu0
        %v2169 = vadd.f32 0.0, %v2168
        %v2170 = vpop.f32.mrb[0].mxu0
        %2171 = vmatprep.mubr.bf16.mxu0 0
        %2172 = vmatmul.mubr.bf16.gmra.mrb[0].mxu0 %v882
        %v2173 = vpop.f32.mrb[0].mxu0
        %v2174 = vadd.f32 0.0, %v2173
        %v2175 = vpop.f32.mrb[0].mxu0
        %v2176 = vpop.f32.mrb[0].mxu0
        %v2177 = vadd.f32 0.0, %v2176
        %v2178 = vpop.f32.mrb[0].mxu0
        %2179 = vmatprep.mubr.bf16.mxu0 0
        %2180 = vmatmul.mubr.bf16.gmra.mrb[0].mxu0 %v885
        %v2181 = vpop.f32.mrb[0].mxu0
        %v2182 = vadd.f32 0.0, %v2181
        %v2183 = vpop.f32.mrb[0].mxu0
        %v2184 = vpop.f32.mrb[0].mxu0
        %v2185 = vadd.f32 0.0, %v2184
        %v2186 = vpop.f32.mrb[0].mxu0
        %2187 = vmatprep.mubr.bf16.mxu0 0
        %2188 = vmatmul.mubr.bf16.gmra.mrb[0].mxu0 %v888
        %v2189 = vpop.f32.mrb[0].mxu0
        %v2190 = vadd.f32 0.0, %v2189
        %v2191 = vpop.f32.mrb[0].mxu0
        %v2192 = vpop.f32.mrb[0].mxu0
        %v2193 = vadd.f32 0.0, %v2192
        %v2194 = vpop.f32.mrb[0].mxu0
        %2195 = vmatprep.mubr.bf16.mxu0 0
        %2196 = vmatmul.mubr.bf16.gmra.mrb[0].mxu0 %v1429
        %v2197 = vpop.f32.mrb[0].mxu0
        %v2198 = vadd.f32 0.0, %v2197
        %v2199 = vpop.f32.mrb[0].mxu0
        %v2200 = vpop.f32.mrb[0].mxu0
        %v2201 = vadd.f32 0.0, %v2200
        %v2202 = vpop.f32.mrb[0].mxu0
        %2203 = vmatprep.mubr.bf16.mxu0 0
        %2204 = vmatmul.mubr.bf16.gmra.mrb[0].mxu0 %v2046
        %v2205 = vpop.f32.mrb[0].mxu0
        %v2206 = vadd.f32 0.0, %v2205
        %v2207 = vpop.f32.mrb[0].mxu0
        %v2208 = vpop.f32.mrb[0].mxu0
        %v2209 = vadd.f32 0.0, %v2208
        %v2210 = vpop.f32.mrb[0].mxu0
        %2211 = vdwg.mxu0
        %v2212 = vadd.f32 %v2012, %v2086
        %v2213 = vadd.f32 %v2013, %v2089
        %v2214 = vadd.f32 %v2014, %v2094
        %v2215 = vadd.f32 %v2015, %v2097
        %v2216 = vadd.f32 %v2016, %v2102
        %v2217 = vadd.f32 %v2017, %v2105
        %v2218 = vadd.f32 %v2018, %v2110
        %v2219 = vadd.f32 %v2019, %v2113
        %v2220 = vadd.f32 %v2020, %v2118
        %v2221 = vadd.f32 %v2021, %v2121
        %v2222 = vadd.f32 %v2022, %v2126
        %v2223 = vadd.f32 %v2023, %v2129
        %v2224 = vadd.f32 %v2024, %v2134
        %v2225 = vadd.f32 %v2025, %v2137
        %v2226 = vadd.f32 %v2026, %v2142
        %v2227 = vadd.f32 %v2027, %v2145
        %v2228 = vadd.f32 %v2028, %v2150
        %v2229 = vadd.f32 %v2029, %v2153
        %v2230 = vadd.f32 %v2030, %v2158
        %v2231 = vadd.f32 %v2031, %v2161
        %v2232 = vadd.f32 %v2032, %v2166
        %v2233 = vadd.f32 %v2033, %v2169
        %v2234 = vadd.f32 %v2034, %v2174
        %v2235 = vadd.f32 %v2035, %v2177
        %v2236 = vadd.f32 %v2036, %v2182
        %v2237 = vadd.f32 %v2037, %v2185
        %v2238 = vadd.f32 %v2038, %v2190
        %v2239 = vadd.f32 %v2039, %v2193
        %v2240 = vadd.f32 %v2040, %v2198
        %v2241 = vadd.f32 %v2041, %v2201
        %v2242 = vadd.f32 %v2042, %v2206
        %v2243 = vadd.f32 %v2043, %v2209
        %v2247 = vrot.slane %v424, 1
        %v2248 = vrot.slane %v425, 1
        %v2249 = vsel %vm500, %v2247, %v2248
        %v2250 = vrot.slane %v426, 1
        %v2251 = vsel %vm500, %v2248, %v2250
        %v2254 = vpack.c.bf16 %v2251, %v2249
        %v2256 = vsel %vm219, %v2254, 0
        %v2259 = vsel %vm677, %v434, 0
        %2261 = vmatprep.subr.bf16.mxu0 0
        %2262 = vmatpush1.bf16.msra.mxu0 %v2259
        %2263 = vmatprep.subr.bf16.mxu0 0
        %2264 = vmatpush1.bf16.msra.mxu0 0
        %2265 = vmatprep.subr.bf16.mxu0 0
        %2266 = vmatpush1.bf16.msra.mxu0 0
        %2267 = vmatprep.subr.bf16.mxu0 0
        %2268 = vmatpush1.bf16.msra.mxu0 0
        %2269 = vmatprep.subr.bf16.mxu0 0
        %2270 = vmatpush1.bf16.msra.mxu0 0
        %2271 = vmatprep.subr.bf16.mxu0 0
        %2272 = vmatpush1.bf16.msra.mxu0 0
        %2273 = vmatprep.subr.bf16.mxu0 0
        %2274 = vmatpush1.bf16.msra.mxu0 0
        %2275 = vmatprep.subr.bf16.mxu0 0
        %2276 = vmatpush1.bf16.msra.mxu0 0
        %2277 = vmatprep.subr.bf16.mxu0 0
        %2278 = vmatpush1.bf16.msra.mxu0 0
        %2279 = vmatprep.subr.bf16.mxu0 0
        %2280 = vmatpush1.bf16.msra.mxu0 0
        %2281 = vmatprep.subr.bf16.mxu0 0
        %2282 = vmatpush1.bf16.msra.mxu0 0
        %2283 = vmatprep.subr.bf16.mxu0 0
        %2284 = vmatpush1.bf16.msra.mxu0 0
        %2285 = vmatprep.subr.bf16.mxu0 0
        %2286 = vmatpush1.bf16.msra.mxu0 0
        %2287 = vmatprep.subr.bf16.mxu0 0
        %2288 = vmatpush1.bf16.msra.mxu0 0
        %2289 = vmatprep.subr.bf16.mxu0 0
        %2290 = vmatpush1.bf16.msra.mxu0 0
        %2291 = vmatprep.subr.bf16.mxu0 0
        %2292 = vmatpush1.bf16.msra.mxu0 0
        %2293 = vmatprep.mubr.bf16.mxu0 0
        %2294 = vmatmul.mubr.bf16.gmra.mrb[0].mxu0 %v636
        %v2295 = vpop.f32.mrb[0].mxu0
        %v2296 = vadd.f32 0.0, %v2295
        %v2297 = vpop.f32.mrb[0].mxu0
        %v2298 = vpop.f32.mrb[0].mxu0
        %v2299 = vadd.f32 0.0, %v2298
        %v2300 = vpop.f32.mrb[0].mxu0
        %2301 = vmatprep.mubr.bf16.mxu0 0
        %2302 = vmatmul.mubr.bf16.gmra.mrb[0].mxu0 %v639
        %v2303 = vpop.f32.mrb[0].mxu0
        %v2304 = vadd.f32 0.0, %v2303
        %v2305 = vpop.f32.mrb[0].mxu0
        %v2306 = vpop.f32.mrb[0].mxu0
        %v2307 = vadd.f32 0.0, %v2306
        %v2308 = vpop.f32.mrb[0].mxu0
        %2309 = vmatprep.mubr.bf16.mxu0 0
        %2310 = vmatmul.mubr.bf16.gmra.mrb[0].mxu0 %v642
        %v2311 = vpop.f32.mrb[0].mxu0
        %v2312 = vadd.f32 0.0, %v2311
        %v2313 = vpop.f32.mrb[0].mxu0
        %v2314 = vpop.f32.mrb[0].mxu0
        %v2315 = vadd.f32 0.0, %v2314
        %v2316 = vpop.f32.mrb[0].mxu0
        %2317 = vmatprep.mubr.bf16.mxu0 0
        %2318 = vmatmul.mubr.bf16.gmra.mrb[0].mxu0 %v645
        %v2319 = vpop.f32.mrb[0].mxu0
        %v2320 = vadd.f32 0.0, %v2319
        %v2321 = vpop.f32.mrb[0].mxu0
        %v2322 = vpop.f32.mrb[0].mxu0
        %v2323 = vadd.f32 0.0, %v2322
        %v2324 = vpop.f32.mrb[0].mxu0
        %2325 = vmatprep.mubr.bf16.mxu0 0
        %2326 = vmatmul.mubr.bf16.gmra.mrb[0].mxu0 %v648
        %v2327 = vpop.f32.mrb[0].mxu0
        %v2328 = vadd.f32 0.0, %v2327
        %v2329 = vpop.f32.mrb[0].mxu0
        %v2330 = vpop.f32.mrb[0].mxu0
        %v2331 = vadd.f32 0.0, %v2330
        %v2332 = vpop.f32.mrb[0].mxu0
        %2333 = vmatprep.mubr.bf16.mxu0 0
        %2334 = vmatmul.mubr.bf16.gmra.mrb[0].mxu0 %v651
        %v2335 = vpop.f32.mrb[0].mxu0
        %v2336 = vadd.f32 0.0, %v2335
        %v2337 = vpop.f32.mrb[0].mxu0
        %v2338 = vpop.f32.mrb[0].mxu0
        %v2339 = vadd.f32 0.0, %v2338
        %v2340 = vpop.f32.mrb[0].mxu0
        %2341 = vmatprep.mubr.bf16.mxu0 0
        %2342 = vmatmul.mubr.bf16.gmra.mrb[0].mxu0 %v654
        %v2343 = vpop.f32.mrb[0].mxu0
        %v2344 = vadd.f32 0.0, %v2343
        %v2345 = vpop.f32.mrb[0].mxu0
        %v2346 = vpop.f32.mrb[0].mxu0
        %v2347 = vadd.f32 0.0, %v2346
        %v2348 = vpop.f32.mrb[0].mxu0
        %2349 = vmatprep.mubr.bf16.mxu0 0
        %2350 = vmatmul.mubr.bf16.gmra.mrb[0].mxu0 %v657
        %v2351 = vpop.f32.mrb[0].mxu0
        %v2352 = vadd.f32 0.0, %v2351
        %v2353 = vpop.f32.mrb[0].mxu0
        %v2354 = vpop.f32.mrb[0].mxu0
        %v2355 = vadd.f32 0.0, %v2354
        %v2356 = vpop.f32.mrb[0].mxu0
        %2357 = vmatprep.mubr.bf16.mxu0 0
        %2358 = vmatmul.mubr.bf16.gmra.mrb[0].mxu0 %v660
        %v2359 = vpop.f32.mrb[0].mxu0
        %v2360 = vadd.f32 0.0, %v2359
        %v2361 = vpop.f32.mrb[0].mxu0
        %v2362 = vpop.f32.mrb[0].mxu0
        %v2363 = vadd.f32 0.0, %v2362
        %v2364 = vpop.f32.mrb[0].mxu0
        %2365 = vmatprep.mubr.bf16.mxu0 0
        %2366 = vmatmul.mubr.bf16.gmra.mrb[0].mxu0 %v663
        %v2367 = vpop.f32.mrb[0].mxu0
        %v2368 = vadd.f32 0.0, %v2367
        %v2369 = vpop.f32.mrb[0].mxu0
        %v2370 = vpop.f32.mrb[0].mxu0
        %v2371 = vadd.f32 0.0, %v2370
        %v2372 = vpop.f32.mrb[0].mxu0
        %2373 = vmatprep.mubr.bf16.mxu0 0
        %2374 = vmatmul.mubr.bf16.gmra.mrb[0].mxu0 %v666
        %v2375 = vpop.f32.mrb[0].mxu0
        %v2376 = vadd.f32 0.0, %v2375
        %v2377 = vpop.f32.mrb[0].mxu0
        %v2378 = vpop.f32.mrb[0].mxu0
        %v2379 = vadd.f32 0.0, %v2378
        %v2380 = vpop.f32.mrb[0].mxu0
        %2381 = vmatprep.mubr.bf16.mxu0 0
        %2382 = vmatmul.mubr.bf16.gmra.mrb[0].mxu0 %v669
        %v2383 = vpop.f32.mrb[0].mxu0
        %v2384 = vadd.f32 0.0, %v2383
        %v2385 = vpop.f32.mrb[0].mxu0
        %v2386 = vpop.f32.mrb[0].mxu0
        %v2387 = vadd.f32 0.0, %v2386
        %v2388 = vpop.f32.mrb[0].mxu0
        %2389 = vmatprep.mubr.bf16.mxu0 0
        %2390 = vmatmul.mubr.bf16.gmra.mrb[0].mxu0 %v672
        %v2391 = vpop.f32.mrb[0].mxu0
        %v2392 = vadd.f32 0.0, %v2391
        %v2393 = vpop.f32.mrb[0].mxu0
        %v2394 = vpop.f32.mrb[0].mxu0
        %v2395 = vadd.f32 0.0, %v2394
        %v2396 = vpop.f32.mrb[0].mxu0
        %2397 = vmatprep.mubr.bf16.mxu0 0
        %2398 = vmatmul.mubr.bf16.gmra.mrb[0].mxu0 %v675
        %v2399 = vpop.f32.mrb[0].mxu0
        %v2400 = vadd.f32 0.0, %v2399
        %v2401 = vpop.f32.mrb[0].mxu0
        %v2402 = vpop.f32.mrb[0].mxu0
        %v2403 = vadd.f32 0.0, %v2402
        %v2404 = vpop.f32.mrb[0].mxu0
        %2405 = vmatprep.mubr.bf16.mxu0 0
        %2406 = vmatmul.mubr.bf16.gmra.mrb[0].mxu0 %v1639
        %v2407 = vpop.f32.mrb[0].mxu0
        %v2408 = vadd.f32 0.0, %v2407
        %v2409 = vpop.f32.mrb[0].mxu0
        %v2410 = vpop.f32.mrb[0].mxu0
        %v2411 = vadd.f32 0.0, %v2410
        %v2412 = vpop.f32.mrb[0].mxu0
        %2413 = vmatprep.mubr.bf16.mxu0 0
        %2414 = vmatmul.mubr.bf16.gmra.mrb[0].mxu0 %v2256
        %v2415 = vpop.f32.mrb[0].mxu0
        %v2416 = vadd.f32 0.0, %v2415
        %v2417 = vpop.f32.mrb[0].mxu0
        %v2418 = vpop.f32.mrb[0].mxu0
        %v2419 = vadd.f32 0.0, %v2418
        %v2420 = vpop.f32.mrb[0].mxu0
        %2421 = vdwg.mxu0
        %v2422 = vadd.f32 %v2212, %v2296
        %v2423 = vadd.f32 %v2213, %v2299
        %v2424 = vadd.f32 %v2214, %v2304
        %v2425 = vadd.f32 %v2215, %v2307
        %v2426 = vadd.f32 %v2216, %v2312
        %v2427 = vadd.f32 %v2217, %v2315
        %v2428 = vadd.f32 %v2218, %v2320
        %v2429 = vadd.f32 %v2219, %v2323
        %v2430 = vadd.f32 %v2220, %v2328
        %v2431 = vadd.f32 %v2221, %v2331
        %v2432 = vadd.f32 %v2222, %v2336
        %v2433 = vadd.f32 %v2223, %v2339
        %v2434 = vadd.f32 %v2224, %v2344
        %v2435 = vadd.f32 %v2225, %v2347
        %v2436 = vadd.f32 %v2226, %v2352
        %v2437 = vadd.f32 %v2227, %v2355
        %v2438 = vadd.f32 %v2228, %v2360
        %v2439 = vadd.f32 %v2229, %v2363
        %v2440 = vadd.f32 %v2230, %v2368
        %v2441 = vadd.f32 %v2231, %v2371
        %v2442 = vadd.f32 %v2232, %v2376
        %v2443 = vadd.f32 %v2233, %v2379
        %v2444 = vadd.f32 %v2234, %v2384
        %v2445 = vadd.f32 %v2235, %v2387
        %v2446 = vadd.f32 %v2236, %v2392
        %v2447 = vadd.f32 %v2237, %v2395
        %v2448 = vadd.f32 %v2238, %v2400
        %v2449 = vadd.f32 %v2239, %v2403
        %v2450 = vadd.f32 %v2240, %v2408
        %v2451 = vadd.f32 %v2241, %v2411
        %v2452 = vadd.f32 %v2242, %v2416
        %v2453 = vadd.f32 %v2243, %v2419
        %v2454 = vrot.slane %v424, 2
        %v2455 = vrot.slane %v425, 2
        %v2456 = vsel %vm1054, %v2454, %v2455
        %v2457 = vrot.slane %v426, 2
        %v2458 = vsel %vm1054, %v2455, %v2457
        %v2461 = vpack.c.bf16 %v2458, %v2456
        %v2463 = vsel %vm219, %v2461, 0
        %v2466 = vsel %vm677, %v435, 0
        %2468 = vmatprep.subr.bf16.mxu0 0
        %2469 = vmatpush1.bf16.msra.mxu0 %v2466
        %2470 = vmatprep.subr.bf16.mxu0 0
        %2471 = vmatpush1.bf16.msra.mxu0 0
        %2472 = vmatprep.subr.bf16.mxu0 0
        %2473 = vmatpush1.bf16.msra.mxu0 0
        %2474 = vmatprep.subr.bf16.mxu0 0
        %2475 = vmatpush1.bf16.msra.mxu0 0
        %2476 = vmatprep.subr.bf16.mxu0 0
        %2477 = vmatpush1.bf16.msra.mxu0 0
        %2478 = vmatprep.subr.bf16.mxu0 0
        %2479 = vmatpush1.bf16.msra.mxu0 0
        %2480 = vmatprep.subr.bf16.mxu0 0
        %2481 = vmatpush1.bf16.msra.mxu0 0
        %2482 = vmatprep.subr.bf16.mxu0 0
        %2483 = vmatpush1.bf16.msra.mxu0 0
        %2484 = vmatprep.subr.bf16.mxu0 0
        %2485 = vmatpush1.bf16.msra.mxu0 0
        %2486 = vmatprep.subr.bf16.mxu0 0
        %2487 = vmatpush1.bf16.msra.mxu0 0
        %2488 = vmatprep.subr.bf16.mxu0 0
        %2489 = vmatpush1.bf16.msra.mxu0 0
        %2490 = vmatprep.subr.bf16.mxu0 0
        %2491 = vmatpush1.bf16.msra.mxu0 0
        %2492 = vmatprep.subr.bf16.mxu0 0
        %2493 = vmatpush1.bf16.msra.mxu0 0
        %2494 = vmatprep.subr.bf16.mxu0 0
        %2495 = vmatpush1.bf16.msra.mxu0 0
        %2496 = vmatprep.subr.bf16.mxu0 0
        %2497 = vmatpush1.bf16.msra.mxu0 0
        %2498 = vmatprep.subr.bf16.mxu0 0
        %2499 = vmatpush1.bf16.msra.mxu0 0
        %2500 = vmatprep.mubr.bf16.mxu0 0
        %2501 = vmatmul.mubr.bf16.gmra.mrb[0].mxu0 %v1190
        %v2502 = vpop.f32.mrb[0].mxu0
        %v2503 = vadd.f32 0.0, %v2502
        %v2504 = vpop.f32.mrb[0].mxu0
        %v2505 = vpop.f32.mrb[0].mxu0
        %v2506 = vadd.f32 0.0, %v2505
        %v2507 = vpop.f32.mrb[0].mxu0
        %2508 = vmatprep.mubr.bf16.mxu0 0
        %2509 = vmatmul.mubr.bf16.gmra.mrb[0].mxu0 %v1193
        %v2510 = vpop.f32.mrb[0].mxu0
        %v2511 = vadd.f32 0.0, %v2510
        %v2512 = vpop.f32.mrb[0].mxu0
        %v2513 = vpop.f32.mrb[0].mxu0
        %v2514 = vadd.f32 0.0, %v2513
        %v2515 = vpop.f32.mrb[0].mxu0
        %2516 = vmatprep.mubr.bf16.mxu0 0
        %2517 = vmatmul.mubr.bf16.gmra.mrb[0].mxu0 %v1196
        %v2518 = vpop.f32.mrb[0].mxu0
        %v2519 = vadd.f32 0.0, %v2518
        %v2520 = vpop.f32.mrb[0].mxu0
        %v2521 = vpop.f32.mrb[0].mxu0
        %v2522 = vadd.f32 0.0, %v2521
        %v2523 = vpop.f32.mrb[0].mxu0
        %2524 = vmatprep.mubr.bf16.mxu0 0
        %2525 = vmatmul.mubr.bf16.gmra.mrb[0].mxu0 %v1199
        %v2526 = vpop.f32.mrb[0].mxu0
        %v2527 = vadd.f32 0.0, %v2526
        %v2528 = vpop.f32.mrb[0].mxu0
        %v2529 = vpop.f32.mrb[0].mxu0
        %v2530 = vadd.f32 0.0, %v2529
        %v2531 = vpop.f32.mrb[0].mxu0
        %2532 = vmatprep.mubr.bf16.mxu0 0
        %2533 = vmatmul.mubr.bf16.gmra.mrb[0].mxu0 %v1202
        %v2534 = vpop.f32.mrb[0].mxu0
        %v2535 = vadd.f32 0.0, %v2534
        %v2536 = vpop.f32.mrb[0].mxu0
        %v2537 = vpop.f32.mrb[0].mxu0
        %v2538 = vadd.f32 0.0, %v2537
        %v2539 = vpop.f32.mrb[0].mxu0
        %2540 = vmatprep.mubr.bf16.mxu0 0
        %2541 = vmatmul.mubr.bf16.gmra.mrb[0].mxu0 %v1205
        %v2542 = vpop.f32.mrb[0].mxu0
        %v2543 = vadd.f32 0.0, %v2542
        %v2544 = vpop.f32.mrb[0].mxu0
        %v2545 = vpop.f32.mrb[0].mxu0
        %v2546 = vadd.f32 0.0, %v2545
        %v2547 = vpop.f32.mrb[0].mxu0
        %2548 = vmatprep.mubr.bf16.mxu0 0
        %2549 = vmatmul.mubr.bf16.gmra.mrb[0].mxu0 %v1208
        %v2550 = vpop.f32.mrb[0].mxu0
        %v2551 = vadd.f32 0.0, %v2550
        %v2552 = vpop.f32.mrb[0].mxu0
        %v2553 = vpop.f32.mrb[0].mxu0
        %v2554 = vadd.f32 0.0, %v2553
        %v2555 = vpop.f32.mrb[0].mxu0
        %2556 = vmatprep.mubr.bf16.mxu0 0
        %2557 = vmatmul.mubr.bf16.gmra.mrb[0].mxu0 %v1211
        %v2558 = vpop.f32.mrb[0].mxu0
        %v2559 = vadd.f32 0.0, %v2558
        %v2560 = vpop.f32.mrb[0].mxu0
        %v2561 = vpop.f32.mrb[0].mxu0
        %v2562 = vadd.f32 0.0, %v2561
        %v2563 = vpop.f32.mrb[0].mxu0
        %2564 = vmatprep.mubr.bf16.mxu0 0
        %2565 = vmatmul.mubr.bf16.gmra.mrb[0].mxu0 %v1214
        %v2566 = vpop.f32.mrb[0].mxu0
        %v2567 = vadd.f32 0.0, %v2566
        %v2568 = vpop.f32.mrb[0].mxu0
        %v2569 = vpop.f32.mrb[0].mxu0
        %v2570 = vadd.f32 0.0, %v2569
        %v2571 = vpop.f32.mrb[0].mxu0
        %2572 = vmatprep.mubr.bf16.mxu0 0
        %2573 = vmatmul.mubr.bf16.gmra.mrb[0].mxu0 %v1217
        %v2574 = vpop.f32.mrb[0].mxu0
        %v2575 = vadd.f32 0.0, %v2574
        %v2576 = vpop.f32.mrb[0].mxu0
        %v2577 = vpop.f32.mrb[0].mxu0
        %v2578 = vadd.f32 0.0, %v2577
        %v2579 = vpop.f32.mrb[0].mxu0
        %2580 = vmatprep.mubr.bf16.mxu0 0
        %2581 = vmatmul.mubr.bf16.gmra.mrb[0].mxu0 %v1220
        %v2582 = vpop.f32.mrb[0].mxu0
        %v2583 = vadd.f32 0.0, %v2582
        %v2584 = vpop.f32.mrb[0].mxu0
        %v2585 = vpop.f32.mrb[0].mxu0
        %v2586 = vadd.f32 0.0, %v2585
        %v2587 = vpop.f32.mrb[0].mxu0
        %2588 = vmatprep.mubr.bf16.mxu0 0
        %2589 = vmatmul.mubr.bf16.gmra.mrb[0].mxu0 %v1223
        %v2590 = vpop.f32.mrb[0].mxu0
        %v2591 = vadd.f32 0.0, %v2590
        %v2592 = vpop.f32.mrb[0].mxu0
        %v2593 = vpop.f32.mrb[0].mxu0
        %v2594 = vadd.f32 0.0, %v2593
        %v2595 = vpop.f32.mrb[0].mxu0
        %2596 = vmatprep.mubr.bf16.mxu0 0
        %2597 = vmatmul.mubr.bf16.gmra.mrb[0].mxu0 %v1226
        %v2598 = vpop.f32.mrb[0].mxu0
        %v2599 = vadd.f32 0.0, %v2598
        %v2600 = vpop.f32.mrb[0].mxu0
        %v2601 = vpop.f32.mrb[0].mxu0
        %v2602 = vadd.f32 0.0, %v2601
        %v2603 = vpop.f32.mrb[0].mxu0
        %2604 = vmatprep.mubr.bf16.mxu0 0
        %2605 = vmatmul.mubr.bf16.gmra.mrb[0].mxu0 %v1229
        %v2606 = vpop.f32.mrb[0].mxu0
        %v2607 = vadd.f32 0.0, %v2606
        %v2608 = vpop.f32.mrb[0].mxu0
        %v2609 = vpop.f32.mrb[0].mxu0
        %v2610 = vadd.f32 0.0, %v2609
        %v2611 = vpop.f32.mrb[0].mxu0
        %2612 = vmatprep.mubr.bf16.mxu0 0
        %2613 = vmatmul.mubr.bf16.gmra.mrb[0].mxu0 %v1846
        %v2614 = vpop.f32.mrb[0].mxu0
        %v2615 = vadd.f32 0.0, %v2614
        %v2616 = vpop.f32.mrb[0].mxu0
        %v2617 = vpop.f32.mrb[0].mxu0
        %v2618 = vadd.f32 0.0, %v2617
        %v2619 = vpop.f32.mrb[0].mxu0
        %2620 = vmatprep.mubr.bf16.mxu0 0
        %2621 = vmatmul.mubr.bf16.gmra.mrb[0].mxu0 %v2463
        %v2622 = vpop.f32.mrb[0].mxu0
        %v2623 = vadd.f32 0.0, %v2622
        %v2624 = vpop.f32.mrb[0].mxu0
        %v2625 = vpop.f32.mrb[0].mxu0
        %v2626 = vadd.f32 0.0, %v2625
        %v2627 = vpop.f32.mrb[0].mxu0
        %2628 = vdwg.mxu0
        %v2629 = vadd.f32 %v2422, %v2503
        %v2630 = vadd.f32 %v2423, %v2506
        %v2631 = vadd.f32 %v2424, %v2511
        %v2632 = vadd.f32 %v2425, %v2514
        %v2633 = vadd.f32 %v2426, %v2519
        %v2634 = vadd.f32 %v2427, %v2522
        %v2635 = vadd.f32 %v2428, %v2527
        %v2636 = vadd.f32 %v2429, %v2530
        %v2637 = vadd.f32 %v2430, %v2535
        %v2638 = vadd.f32 %v2431, %v2538
        %v2639 = vadd.f32 %v2432, %v2543
        %v2640 = vadd.f32 %v2433, %v2546
        %v2641 = vadd.f32 %v2434, %v2551
        %v2642 = vadd.f32 %v2435, %v2554
        %v2643 = vadd.f32 %v2436, %v2559
        %v2644 = vadd.f32 %v2437, %v2562
        %v2645 = vadd.f32 %v2438, %v2567
        %v2646 = vadd.f32 %v2439, %v2570
        %v2647 = vadd.f32 %v2440, %v2575
        %v2648 = vadd.f32 %v2441, %v2578
        %v2649 = vadd.f32 %v2442, %v2583
        %v2650 = vadd.f32 %v2443, %v2586
        %v2651 = vadd.f32 %v2444, %v2591
        %v2652 = vadd.f32 %v2445, %v2594
        %v2653 = vadd.f32 %v2446, %v2599
        %v2654 = vadd.f32 %v2447, %v2602
        %v2655 = vadd.f32 %v2448, %v2607
        %v2656 = vadd.f32 %v2449, %v2610
        %v2657 = vadd.f32 %v2450, %v2615
        %v2658 = vadd.f32 %v2451, %v2618
        %v2659 = vadd.f32 %v2452, %v2623
        %v2660 = vadd.f32 %v2453, %v2626
        %v2661 = vsel %vm219, %v2629, 0.0
        %v2662 = vsel %vm219, %v2630, 0.0
        %v2663 = vadd.f32 %v2661, %v2662
        %v2664 = vsel %vm219, %v2631, 0.0
        %v2665 = vadd.f32 %v2663, %v2664
        %v2666 = vsel %vm219, %v2632, 0.0
        %v2667 = vadd.f32 %v2665, %v2666
        %v2668 = vsel %vm219, %v2633, 0.0
        %v2669 = vadd.f32 %v2667, %v2668
        %v2670 = vsel %vm219, %v2634, 0.0
        %v2671 = vadd.f32 %v2669, %v2670
        %v2672 = vsel %vm219, %v2635, 0.0
        %v2673 = vadd.f32 %v2671, %v2672
        %v2674 = vsel %vm219, %v2636, 0.0
        %v2675 = vadd.f32 %v2673, %v2674
        %v2676 = vsel %vm219, %v2637, 0.0
        %v2677 = vadd.f32 %v2675, %v2676
        %v2678 = vsel %vm219, %v2638, 0.0
        %v2679 = vadd.f32 %v2677, %v2678
        %v2680 = vsel %vm219, %v2639, 0.0
        %v2681 = vadd.f32 %v2679, %v2680
        %v2682 = vsel %vm219, %v2640, 0.0
        %v2683 = vadd.f32 %v2681, %v2682
        %v2684 = vsel %vm219, %v2641, 0.0
        %v2685 = vadd.f32 %v2683, %v2684
        %v2686 = vsel %vm219, %v2642, 0.0
        %v2687 = vadd.f32 %v2685, %v2686
        %v2688 = vsel %vm219, %v2643, 0.0
        %v2689 = vadd.f32 %v2687, %v2688
        %v2690 = vsel %vm219, %v2644, 0.0
        %v2691 = vadd.f32 %v2689, %v2690
        %v2692 = vsel %vm219, %v2645, 0.0
        %v2693 = vadd.f32 %v2691, %v2692
        %v2694 = vsel %vm219, %v2646, 0.0
        %v2695 = vadd.f32 %v2693, %v2694
        %v2696 = vsel %vm219, %v2647, 0.0
        %v2697 = vadd.f32 %v2695, %v2696
        %v2698 = vsel %vm219, %v2648, 0.0
        %v2699 = vadd.f32 %v2697, %v2698
        %v2700 = vsel %vm219, %v2649, 0.0
        %v2701 = vadd.f32 %v2699, %v2700
        %v2702 = vsel %vm219, %v2650, 0.0
        %v2703 = vadd.f32 %v2701, %v2702
        %v2704 = vsel %vm219, %v2651, 0.0
        %v2705 = vadd.f32 %v2703, %v2704
        %v2706 = vsel %vm219, %v2652, 0.0
        %v2707 = vadd.f32 %v2705, %v2706
        %v2708 = vsel %vm219, %v2653, 0.0
        %v2709 = vadd.f32 %v2707, %v2708
        %v2710 = vsel %vm219, %v2654, 0.0
        %v2711 = vadd.f32 %v2709, %v2710
        %v2712 = vsel %vm219, %v2655, 0.0
        %v2713 = vadd.f32 %v2711, %v2712
        %v2714 = vsel %vm219, %v2656, 0.0
        %v2715 = vadd.f32 %v2713, %v2714
        %v2716 = vsel %vm219, %v2657, 0.0
        %v2717 = vadd.f32 %v2715, %v2716
        %v2718 = vsel %vm219, %v2658, 0.0
        %v2719 = vadd.f32 %v2717, %v2718
        %v2720 = vsel %vm219, %v2659, 0.0
        %v2721 = vadd.f32 %v2719, %v2720
        %v2722 = vsel %vm219, %v2660, 0.0
        %v2723 = vadd.f32 %v2721, %v2722
        %v2724 = vrot.slane %v2723, 4
        %v2725 = vadd.f32 %v2723, %v2724
        %v2726 = vrot.slane %v2725, 2
        %v2727 = vadd.f32 %v2725, %v2726
        %v2728 = vrot.slane %v2727, 1
        %v2729 = vadd.f32 %v2727, %v2728
        %v2730 = vrcp.pop 256.0
        %v2731 = vmul.f32 %v2729, %v2730
        %v2732 = vmul.f32 %v2629, %v2629
        %v2733 = vmul.f32 %v2630, %v2630
        %v2734 = vmul.f32 %v2631, %v2631
        %v2735 = vmul.f32 %v2632, %v2632
        %v2736 = vmul.f32 %v2633, %v2633
        %v2737 = vmul.f32 %v2634, %v2634
        %v2738 = vmul.f32 %v2635, %v2635
        %v2739 = vmul.f32 %v2636, %v2636
        %v2740 = vmul.f32 %v2637, %v2637
        %v2741 = vmul.f32 %v2638, %v2638
        %v2742 = vmul.f32 %v2639, %v2639
        %v2743 = vmul.f32 %v2640, %v2640
        %v2744 = vmul.f32 %v2641, %v2641
        %v2745 = vmul.f32 %v2642, %v2642
        %v2746 = vmul.f32 %v2643, %v2643
        %v2747 = vmul.f32 %v2644, %v2644
        %v2748 = vmul.f32 %v2645, %v2645
        %v2749 = vmul.f32 %v2646, %v2646
        %v2750 = vmul.f32 %v2647, %v2647
        %v2751 = vmul.f32 %v2648, %v2648
        %v2752 = vmul.f32 %v2649, %v2649
        %v2753 = vmul.f32 %v2650, %v2650
        %v2754 = vmul.f32 %v2651, %v2651
        %v2755 = vmul.f32 %v2652, %v2652
        %v2756 = vmul.f32 %v2653, %v2653
        %v2757 = vmul.f32 %v2654, %v2654
        %v2758 = vmul.f32 %v2655, %v2655
        %v2759 = vmul.f32 %v2656, %v2656
        %v2760 = vmul.f32 %v2657, %v2657
        %v2761 = vmul.f32 %v2658, %v2658
        %v2762 = vmul.f32 %v2659, %v2659
        %v2763 = vmul.f32 %v2660, %v2660
        %v2764 = vsel %vm219, %v2732, 0.0
        %v2765 = vsel %vm219, %v2733, 0.0
        %v2766 = vadd.f32 %v2764, %v2765
        %v2767 = vsel %vm219, %v2734, 0.0
        %v2768 = vadd.f32 %v2766, %v2767
        %v2769 = vsel %vm219, %v2735, 0.0
        %v2770 = vadd.f32 %v2768, %v2769
        %v2771 = vsel %vm219, %v2736, 0.0
        %v2772 = vadd.f32 %v2770, %v2771
        %v2773 = vsel %vm219, %v2737, 0.0
        %v2774 = vadd.f32 %v2772, %v2773
        %v2775 = vsel %vm219, %v2738, 0.0
        %v2776 = vadd.f32 %v2774, %v2775
        %v2777 = vsel %vm219, %v2739, 0.0
        %v2778 = vadd.f32 %v2776, %v2777
        %v2779 = vsel %vm219, %v2740, 0.0
        %v2780 = vadd.f32 %v2778, %v2779
        %v2781 = vsel %vm219, %v2741, 0.0
        %v2782 = vadd.f32 %v2780, %v2781
        %v2783 = vsel %vm219, %v2742, 0.0
        %v2784 = vadd.f32 %v2782, %v2783
        %v2785 = vsel %vm219, %v2743, 0.0
        %v2786 = vadd.f32 %v2784, %v2785
        %v2787 = vsel %vm219, %v2744, 0.0
        %v2788 = vadd.f32 %v2786, %v2787
        %v2789 = vsel %vm219, %v2745, 0.0
        %v2790 = vadd.f32 %v2788, %v2789
        %v2791 = vsel %vm219, %v2746, 0.0
        %v2792 = vadd.f32 %v2790, %v2791
        %v2793 = vsel %vm219, %v2747, 0.0
        %v2794 = vadd.f32 %v2792, %v2793
        %v2795 = vsel %vm219, %v2748, 0.0
        %v2796 = vadd.f32 %v2794, %v2795
        %v2797 = vsel %vm219, %v2749, 0.0
        %v2798 = vadd.f32 %v2796, %v2797
        %v2799 = vsel %vm219, %v2750, 0.0
        %v2800 = vadd.f32 %v2798, %v2799
        %v2801 = vsel %vm219, %v2751, 0.0
        %v2802 = vadd.f32 %v2800, %v2801
        %v2803 = vsel %vm219, %v2752, 0.0
        %v2804 = vadd.f32 %v2802, %v2803
        %v2805 = vsel %vm219, %v2753, 0.0
        %v2806 = vadd.f32 %v2804, %v2805
        %v2807 = vsel %vm219, %v2754, 0.0
        %v2808 = vadd.f32 %v2806, %v2807
        %v2809 = vsel %vm219, %v2755, 0.0
        %v2810 = vadd.f32 %v2808, %v2809
        %v2811 = vsel %vm219, %v2756, 0.0
        %v2812 = vadd.f32 %v2810, %v2811
        %v2813 = vsel %vm219, %v2757, 0.0
        %v2814 = vadd.f32 %v2812, %v2813
        %v2815 = vsel %vm219, %v2758, 0.0
        %v2816 = vadd.f32 %v2814, %v2815
        %v2817 = vsel %vm219, %v2759, 0.0
        %v2818 = vadd.f32 %v2816, %v2817
        %v2819 = vsel %vm219, %v2760, 0.0
        %v2820 = vadd.f32 %v2818, %v2819
        %v2821 = vsel %vm219, %v2761, 0.0
        %v2822 = vadd.f32 %v2820, %v2821
        %v2823 = vsel %vm219, %v2762, 0.0
        %v2824 = vadd.f32 %v2822, %v2823
        %v2825 = vsel %vm219, %v2763, 0.0
        %v2826 = vadd.f32 %v2824, %v2825
        %v2827 = vrot.slane %v2826, 4
        %v2828 = vadd.f32 %v2826, %v2827
        %v2829 = vrot.slane %v2828, 2
        %v2830 = vadd.f32 %v2828, %v2829
        %v2831 = vrot.slane %v2830, 1
        %v2832 = vadd.f32 %v2830, %v2831
        %v2833 = vmul.f32 %v2832, %v2730
        %v2834 = vmul.f32 %v2731, %v2731
        %v2835 = vsub.f32 %v2833, %v2834
        %v2836 = vmax.f32 %v2835, 0.0
        %v2837 = vsub.f32 %v2629, %v2731
        %v2838 = vsub.f32 %v2630, %v2731
        %v2839 = vsub.f32 %v2631, %v2731
        %v2840 = vsub.f32 %v2632, %v2731
        %v2841 = vsub.f32 %v2633, %v2731
        %v2842 = vsub.f32 %v2634, %v2731
        %v2843 = vsub.f32 %v2635, %v2731
        %v2844 = vsub.f32 %v2636, %v2731
        %v2845 = vsub.f32 %v2637, %v2731
        %v2846 = vsub.f32 %v2638, %v2731
        %v2847 = vsub.f32 %v2639, %v2731
        %v2848 = vsub.f32 %v2640, %v2731
        %v2849 = vsub.f32 %v2641, %v2731
        %v2850 = vsub.f32 %v2642, %v2731
        %v2851 = vsub.f32 %v2643, %v2731
        %v2852 = vsub.f32 %v2644, %v2731
        %v2853 = vsub.f32 %v2645, %v2731
        %v2854 = vsub.f32 %v2646, %v2731
        %v2855 = vsub.f32 %v2647, %v2731
        %v2856 = vsub.f32 %v2648, %v2731
        %v2857 = vsub.f32 %v2649, %v2731
        %v2858 = vsub.f32 %v2650, %v2731
        %v2859 = vsub.f32 %v2651, %v2731
        %v2860 = vsub.f32 %v2652, %v2731
        %v2861 = vsub.f32 %v2653, %v2731
        %v2862 = vsub.f32 %v2654, %v2731
        %v2863 = vsub.f32 %v2655, %v2731
        %v2864 = vsub.f32 %v2656, %v2731
        %v2865 = vsub.f32 %v2657, %v2731
        %v2866 = vsub.f32 %v2658, %v2731
        %v2867 = vsub.f32 %v2659, %v2731
        %v2868 = vsub.f32 %v2660, %v2731
        %v2869 = vadd.f32 %v2836, 1e-05
        %v2870 = vrsqrt.pop %v2869
        %v2871 = vmul.f32 %v2837, %v2870
        %v2872 = vmul.f32 %v2838, %v2870
        %v2873 = vmul.f32 %v2839, %v2870
        %v2874 = vmul.f32 %v2840, %v2870
        %v2875 = vmul.f32 %v2841, %v2870
        %v2876 = vmul.f32 %v2842, %v2870
        %v2877 = vmul.f32 %v2843, %v2870
        %v2878 = vmul.f32 %v2844, %v2870
        %v2879 = vmul.f32 %v2845, %v2870
        %v2880 = vmul.f32 %v2846, %v2870
        %v2881 = vmul.f32 %v2847, %v2870
        %v2882 = vmul.f32 %v2848, %v2870
        %v2883 = vmul.f32 %v2849, %v2870
        %v2884 = vmul.f32 %v2850, %v2870
        %v2885 = vmul.f32 %v2851, %v2870
        %v2886 = vmul.f32 %v2852, %v2870
        %v2887 = vmul.f32 %v2853, %v2870
        %v2888 = vmul.f32 %v2854, %v2870
        %v2889 = vmul.f32 %v2855, %v2870
        %v2890 = vmul.f32 %v2856, %v2870
        %v2891 = vmul.f32 %v2857, %v2870
        %v2892 = vmul.f32 %v2858, %v2870
        %v2893 = vmul.f32 %v2859, %v2870
        %v2894 = vmul.f32 %v2860, %v2870
        %v2895 = vmul.f32 %v2861, %v2870
        %v2896 = vmul.f32 %v2862, %v2870
        %v2897 = vmul.f32 %v2863, %v2870
        %v2898 = vmul.f32 %v2864, %v2870
        %v2899 = vmul.f32 %v2865, %v2870
        %v2900 = vmul.f32 %v2866, %v2870
        %v2901 = vmul.f32 %v2867, %v2870
        %v2902 = vmul.f32 %v2868, %v2870
        %v2903 = vmax.f32 %v2871, 0.0
        %v2904 = vmax.f32 %v2872, 0.0
        %v2905 = vmax.f32 %v2873, 0.0
        %v2906 = vmax.f32 %v2874, 0.0
        %v2907 = vmax.f32 %v2875, 0.0
        %v2908 = vmax.f32 %v2876, 0.0
        %v2909 = vmax.f32 %v2877, 0.0
        %v2910 = vmax.f32 %v2878, 0.0
        %v2911 = vmax.f32 %v2879, 0.0
        %v2912 = vmax.f32 %v2880, 0.0
        %v2913 = vmax.f32 %v2881, 0.0
        %v2914 = vmax.f32 %v2882, 0.0
        %v2915 = vmax.f32 %v2883, 0.0
        %v2916 = vmax.f32 %v2884, 0.0
        %v2917 = vmax.f32 %v2885, 0.0
        %v2918 = vmax.f32 %v2886, 0.0
        %v2919 = vmax.f32 %v2887, 0.0
        %v2920 = vmax.f32 %v2888, 0.0
        %v2921 = vmax.f32 %v2889, 0.0
        %v2922 = vmax.f32 %v2890, 0.0
        %v2923 = vmax.f32 %v2891, 0.0
        %v2924 = vmax.f32 %v2892, 0.0
        %v2925 = vmax.f32 %v2893, 0.0
        %v2926 = vmax.f32 %v2894, 0.0
        %v2927 = vmax.f32 %v2895, 0.0
        %v2928 = vmax.f32 %v2896, 0.0
        %v2929 = vmax.f32 %v2897, 0.0
        %v2930 = vmax.f32 %v2898, 0.0
        %v2931 = vmax.f32 %v2899, 0.0
        %v2932 = vmax.f32 %v2900, 0.0
        %v2933 = vmax.f32 %v2901, 0.0
        %v2934 = vmax.f32 %v2902, 0.0
        %s2935 = scalar_lea.vmem [#allocation3], 24
        %2936 = vst.msk [vmem:[%s2935 + $0x1] sm:$0xff] %vm219, %v2903
        %2937 = vst.msk [vmem:[%s2935 + $0x9] sm:$0xff] %vm219, %v2904
        %2938 = vst.msk [vmem:[%s2935 + $0x19] sm:$0xff] %vm219, %v2905
        %2939 = vst.msk [vmem:[%s2935 + $0x21] sm:$0xff] %vm219, %v2906
        %2940 = vst.msk [vmem:[%s2935 + $0x31] sm:$0xff] %vm219, %v2907
        %2941 = vst.msk [vmem:[%s2935 + $0x39] sm:$0xff] %vm219, %v2908
        %2942 = vst.msk [vmem:[%s2935 + $0x49] sm:$0xff] %vm219, %v2909
        %2943 = vst.msk [vmem:[%s2935 + $0x51] sm:$0xff] %vm219, %v2910
        %2944 = vst.msk [vmem:[%s2935 + $0x61] sm:$0xff] %vm219, %v2911
        %2945 = vst.msk [vmem:[%s2935 + $0x69] sm:$0xff] %vm219, %v2912
        %2946 = vst.msk [vmem:[%s2935 + $0x79] sm:$0xff] %vm219, %v2913
        %2947 = vst.msk [vmem:[%s2935 + $0x81] sm:$0xff] %vm219, %v2914
        %2948 = vst.msk [vmem:[%s2935 + $0x91] sm:$0xff] %vm219, %v2915
        %2949 = vst.msk [vmem:[%s2935 + $0x99] sm:$0xff] %vm219, %v2916
        %2950 = vst.msk [vmem:[%s2935 + $0xa9] sm:$0xff] %vm219, %v2917
        %2951 = vst.msk [vmem:[%s2935 + $0xb1] sm:$0xff] %vm219, %v2918
        %2952 = vst.msk [vmem:[%s2935 + $0xc1] sm:$0xff] %vm219, %v2919
        %2953 = vst.msk [vmem:[%s2935 + $0xc9] sm:$0xff] %vm219, %v2920
        %2954 = vst.msk [vmem:[%s2935 + $0xd9] sm:$0xff] %vm219, %v2921
        %2955 = vst.msk [vmem:[%s2935 + $0xe1] sm:$0xff] %vm219, %v2922
        %2956 = vst.msk [vmem:[%s2935 + $0xf1] sm:$0xff] %vm219, %v2923
        %2957 = vst.msk [vmem:[%s2935 + $0xf9] sm:$0xff] %vm219, %v2924
        %2958 = vst.msk [vmem:[%s2935 + $0x109] sm:$0xff] %vm219, %v2925
        %2959 = vst.msk [vmem:[%s2935 + $0x111] sm:$0xff] %vm219, %v2926
        %2960 = vst.msk [vmem:[%s2935 + $0x121] sm:$0xff] %vm219, %v2927
        %2961 = vst.msk [vmem:[%s2935 + $0x129] sm:$0xff] %vm219, %v2928
        %2962 = vst.msk [vmem:[%s2935 + $0x139] sm:$0xff] %vm219, %v2929
        %2963 = vst.msk [vmem:[%s2935 + $0x141] sm:$0xff] %vm219, %v2930
        %2964 = vst.msk [vmem:[%s2935 + $0x151] sm:$0xff] %vm219, %v2931
        %2965 = vst.msk [vmem:[%s2935 + $0x159] sm:$0xff] %vm219, %v2932
        %2966 = vst.msk [vmem:[%s2935 + $0x169] sm:$0xff] %vm219, %v2933
        %2967 = vst.msk [vmem:[%s2935 + $0x171] sm:$0xff] %vm219, %v2934
        %v2968 = vld [vmem:[#allocation3] sm:$0xff]
        %v2969 = vld [vmem:[#allocation3 + $0x8] sm:$0xff]
        %v2970 = vld [vmem:[#allocation3 + $0x10] sm:$0x3]
        %v2971 = vld [vmem:[#allocation3 + $0x18] sm:$0xff]
        %v2972 = vld [vmem:[#allocation3 + $0x20] sm:$0xff]
        %v2973 = vld [vmem:[#allocation3 + $0x28] sm:$0x3]
        %v2974 = vld [vmem:[#allocation3 + $0x30] sm:$0xff]
        %v2975 = vld [vmem:[#allocation3 + $0x38] sm:$0xff]
        %v2976 = vld [vmem:[#allocation3 + $0x40] sm:$0x3]
        %v2977 = vld [vmem:[#allocation3 + $0x48] sm:$0xff]
        %v2978 = vld [vmem:[#allocation3 + $0x50] sm:$0xff]
        %v2979 = vld [vmem:[#allocation3 + $0x58] sm:$0x3]
        %v2980 = vld [vmem:[#allocation3 + $0x60] sm:$0xff]
        %v2981 = vld [vmem:[#allocation3 + $0x68] sm:$0xff]
        %v2982 = vld [vmem:[#allocation3 + $0x70] sm:$0x3]
        %v2983 = vld [vmem:[#allocation3 + $0x78] sm:$0xff]
        %v2984 = vld [vmem:[#allocation3 + $0x80] sm:$0xff]
        %v2985 = vld [vmem:[#allocation3 + $0x88] sm:$0x3]
        %v2986 = vld [vmem:[#allocation3 + $0x90] sm:$0xff]
        %v2987 = vld [vmem:[#allocation3 + $0x98] sm:$0xff]
        %v2988 = vld [vmem:[#allocation3 + $0xa0] sm:$0x3]
        %v2989 = vld [vmem:[#allocation3 + $0xa8] sm:$0xff]
        %v2990 = vld [vmem:[#allocation3 + $0xb0] sm:$0xff]
        %v2991 = vld [vmem:[#allocation3 + $0xb8] sm:$0x3]
        %v2992 = vld [vmem:[#allocation3 + $0xc0] sm:$0xff]
        %v2993 = vld [vmem:[#allocation3 + $0xc8] sm:$0xff]
        %v2994 = vld [vmem:[#allocation3 + $0xd0] sm:$0x3]
        %v2995 = vld [vmem:[#allocation3 + $0xd8] sm:$0xff]
        %v2996 = vld [vmem:[#allocation3 + $0xe0] sm:$0xff]
        %v2997 = vld [vmem:[#allocation3 + $0xe8] sm:$0x3]
        %v2998 = vld [vmem:[#allocation3 + $0xf0] sm:$0xff]
        %v2999 = vld [vmem:[#allocation3 + $0xf8] sm:$0xff]
        %v3000 = vld [vmem:[#allocation3 + $0x100] sm:$0x3]
        %v3001 = vld [vmem:[#allocation3 + $0x108] sm:$0xff]
        %v3002 = vld [vmem:[#allocation3 + $0x110] sm:$0xff]
        %v3003 = vld [vmem:[#allocation3 + $0x118] sm:$0x3]
        %v3004 = vld [vmem:[#allocation3 + $0x120] sm:$0xff]
        %v3005 = vld [vmem:[#allocation3 + $0x128] sm:$0xff]
        %v3006 = vld [vmem:[#allocation3 + $0x130] sm:$0x3]
        %v3007 = vld [vmem:[#allocation3 + $0x138] sm:$0xff]
        %v3008 = vld [vmem:[#allocation3 + $0x140] sm:$0xff]
        %v3009 = vld [vmem:[#allocation3 + $0x148] sm:$0x3]
        %v3010 = vld [vmem:[#allocation3 + $0x150] sm:$0xff]
        %v3011 = vld [vmem:[#allocation3 + $0x158] sm:$0xff]
        %v3012 = vld [vmem:[#allocation3 + $0x160] sm:$0x3]
        %v3013 = vld [vmem:[#allocation3 + $0x168] sm:$0xff]
        %v3014 = vld [vmem:[#allocation3 + $0x170] sm:$0xff]
        %v3015 = vld [vmem:[#allocation3 + $0x178] sm:$0x3]
        %v3016 = vld [vmem:[#allocation3 + $0x180] sm:$0xff]
        %v3017 = vld [vmem:[#allocation3 + $0x188] sm:$0xff]
        %v3018 = vld [vmem:[#allocation3 + $0x190] sm:$0x3]
        %v3019 = vld [vmem:[#allocation3 + $0x198] sm:$0xff]
        %v3020 = vld [vmem:[#allocation3 + $0x1a0] sm:$0xff]
        %v3021 = vld [vmem:[#allocation3 + $0x1a8] sm:$0x3]
        %v3022 = vld [vmem:[#allocation9] sm:$0x3]
        %v3023 = vld [vmem:[#allocation9 + $0x2] sm:$0x3]
        %v3024 = vld [vmem:[#allocation9 + $0x4] sm:$0x3]
        %v3025 = vld [vmem:[#allocation9 + $0x6] sm:$0x3]
        %v3026 = vld [vmem:[#allocation9 + $0x8] sm:$0x3]
        %v3027 = vld [vmem:[#allocation9 + $0xa] sm:$0x3]
        %v3028 = vld [vmem:[#allocation9 + $0xc] sm:$0x3]
        %v3029 = vld [vmem:[#allocation9 + $0xe] sm:$0x3]
        %v3030 = vld [vmem:[#allocation9 + $0x10] sm:$0x3]
        %v3031 = vpack.c.bf16 %v2969, %v2968
        %v3032 = vpack.c.bf16 %v2972, %v2971
        %v3033 = vpack.c.bf16 %v2975, %v2974
        %v3034 = vpack.c.bf16 %v2978, %v2977
        %v3035 = vpack.c.bf16 %v2981, %v2980
        %v3036 = vpack.c.bf16 %v2984, %v2983
        %v3037 = vpack.c.bf16 %v2987, %v2986
        %v3038 = vpack.c.bf16 %v2990, %v2989
        %v3039 = vpack.c.bf16 %v2993, %v2992
        %v3040 = vpack.c.bf16 %v2996, %v2995
        %v3041 = vpack.c.bf16 %v2999, %v2998
        %v3042 = vpack.c.bf16 %v3002, %v3001
        %v3043 = vpack.c.bf16 %v3005, %v3004
        %v3044 = vpack.c.bf16 %v3008, %v3007
        %v3045 = vpack.c.bf16 %v3011, %v3010
        %v3046 = vpack.c.bf16 %v3014, %v3013
        %v3095 = vrot.slane %v2968, 1
        %v3096 = vrot.slane %v2969, 1
        %v3097 = vsel %vm500, %v3095, %v3096
        %v3098 = vrot.slane %v2970, 1
        %v3099 = vsel %vm500, %v3096, %v3098
        %v3100 = vrot.slane %v2971, 1
        %v3101 = vrot.slane %v2972, 1
        %v3102 = vsel %vm500, %v3100, %v3101
        %v3103 = vrot.slane %v2973, 1
        %v3104 = vsel %vm500, %v3101, %v3103
        %v3105 = vrot.slane %v2974, 1
        %v3106 = vrot.slane %v2975, 1
        %v3107 = vsel %vm500, %v3105, %v3106
        %v3108 = vrot.slane %v2976, 1
        %v3109 = vsel %vm500, %v3106, %v3108
        %v3110 = vrot.slane %v2977, 1
        %v3111 = vrot.slane %v2978, 1
        %v3112 = vsel %vm500, %v3110, %v3111
        %v3113 = vrot.slane %v2979, 1
        %v3114 = vsel %vm500, %v3111, %v3113
        %v3115 = vrot.slane %v2980, 1
        %v3116 = vrot.slane %v2981, 1
        %v3117 = vsel %vm500, %v3115, %v3116
        %v3118 = vrot.slane %v2982, 1
        %v3119 = vsel %vm500, %v3116, %v3118
        %v3120 = vrot.slane %v2983, 1
        %v3121 = vrot.slane %v2984, 1
        %v3122 = vsel %vm500, %v3120, %v3121
        %v3123 = vrot.slane %v2985, 1
        %v3124 = vsel %vm500, %v3121, %v3123
        %v3125 = vrot.slane %v2986, 1
        %v3126 = vrot.slane %v2987, 1
        %v3127 = vsel %vm500, %v3125, %v3126
        %v3128 = vrot.slane %v2988, 1
        %v3129 = vsel %vm500, %v3126, %v3128
        %v3130 = vrot.slane %v2989, 1
        %v3131 = vrot.slane %v2990, 1
        %v3132 = vsel %vm500, %v3130, %v3131
        %v3133 = vrot.slane %v2991, 1
        %v3134 = vsel %vm500, %v3131, %v3133
        %v3135 = vrot.slane %v2992, 1
        %v3136 = vrot.slane %v2993, 1
        %v3137 = vsel %vm500, %v3135, %v3136
        %v3138 = vrot.slane %v2994, 1
        %v3139 = vsel %vm500, %v3136, %v3138
        %v3140 = vrot.slane %v2995, 1
        %v3141 = vrot.slane %v2996, 1
        %v3142 = vsel %vm500, %v3140, %v3141
        %v3143 = vrot.slane %v2997, 1
        %v3144 = vsel %vm500, %v3141, %v3143
        %v3145 = vrot.slane %v2998, 1
        %v3146 = vrot.slane %v2999, 1
        %v3147 = vsel %vm500, %v3145, %v3146
        %v3148 = vrot.slane %v3000, 1
        %v3149 = vsel %vm500, %v3146, %v3148
        %v3150 = vrot.slane %v3001, 1
        %v3151 = vrot.slane %v3002, 1
        %v3152 = vsel %vm500, %v3150, %v3151
        %v3153 = vrot.slane %v3003, 1
        %v3154 = vsel %vm500, %v3151, %v3153
        %v3155 = vrot.slane %v3004, 1
        %v3156 = vrot.slane %v3005, 1
        %v3157 = vsel %vm500, %v3155, %v3156
        %v3158 = vrot.slane %v3006, 1
        %v3159 = vsel %vm500, %v3156, %v3158
        %v3160 = vrot.slane %v3007, 1
        %v3161 = vrot.slane %v3008, 1
        %v3162 = vsel %vm500, %v3160, %v3161
        %v3163 = vrot.slane %v3009, 1
        %v3164 = vsel %vm500, %v3161, %v3163
        %v3165 = vrot.slane %v3010, 1
        %v3166 = vrot.slane %v3011, 1
        %v3167 = vsel %vm500, %v3165, %v3166
        %v3168 = vrot.slane %v3012, 1
        %v3169 = vsel %vm500, %v3166, %v3168
        %v3170 = vrot.slane %v3013, 1
        %v3171 = vrot.slane %v3014, 1
        %v3172 = vsel %vm500, %v3170, %v3171
        %v3173 = vrot.slane %v3015, 1
        %v3174 = vsel %vm500, %v3171, %v3173
        %v3207 = vpack.c.bf16 %v3099, %v3097
        %v3208 = vpack.c.bf16 %v3104, %v3102
        %v3209 = vpack.c.bf16 %v3109, %v3107
        %v3210 = vpack.c.bf16 %v3114, %v3112
        %v3211 = vpack.c.bf16 %v3119, %v3117
        %v3212 = vpack.c.bf16 %v3124, %v3122
        %v3213 = vpack.c.bf16 %v3129, %v3127
        %v3214 = vpack.c.bf16 %v3134, %v3132
        %v3215 = vpack.c.bf16 %v3139, %v3137
        %v3216 = vpack.c.bf16 %v3144, %v3142
        %v3217 = vpack.c.bf16 %v3149, %v3147
        %v3218 = vpack.c.bf16 %v3154, %v3152
        %v3219 = vpack.c.bf16 %v3159, %v3157
        %v3220 = vpack.c.bf16 %v3164, %v3162
        %v3221 = vpack.c.bf16 %v3169, %v3167
        %v3222 = vpack.c.bf16 %v3174, %v3172
        %v3224 = vsel %vm219, %v3207, 0
        %v3227 = vsel %vm219, %v3208, 0
        %v3230 = vsel %vm219, %v3209, 0
        %v3233 = vsel %vm219, %v3210, 0
        %v3236 = vsel %vm219, %v3211, 0
        %v3239 = vsel %vm219, %v3212, 0
        %v3242 = vsel %vm219, %v3213, 0
        %v3245 = vsel %vm219, %v3214, 0
        %v3248 = vsel %vm219, %v3215, 0
        %v3251 = vsel %vm219, %v3216, 0
        %v3254 = vsel %vm219, %v3217, 0
        %v3257 = vsel %vm219, %v3218, 0
        %v3260 = vsel %vm219, %v3219, 0
        %v3263 = vsel %vm219, %v3220, 0
        %v3266 = vsel %vm219, %v3221, 0
        %v3269 = vsel %vm219, %v3222, 0
        %v3272 = vsel %vm677, %v3023, 0
        %3274 = vmatprep.subr.bf16.mxu0 0
        %3275 = vmatpush1.bf16.msra.mxu0 %v3272
        %3276 = vmatprep.subr.bf16.mxu0 0
        %3277 = vmatpush1.bf16.msra.mxu0 0
        %3278 = vmatprep.subr.bf16.mxu0 0
        %3279 = vmatpush1.bf16.msra.mxu0 0
        %3280 = vmatprep.subr.bf16.mxu0 0
        %3281 = vmatpush1.bf16.msra.mxu0 0
        %3282 = vmatprep.subr.bf16.mxu0 0
        %3283 = vmatpush1.bf16.msra.mxu0 0
        %3284 = vmatprep.subr.bf16.mxu0 0
        %3285 = vmatpush1.bf16.msra.mxu0 0
        %3286 = vmatprep.subr.bf16.mxu0 0
        %3287 = vmatpush1.bf16.msra.mxu0 0
        %3288 = vmatprep.subr.bf16.mxu0 0
        %3289 = vmatpush1.bf16.msra.mxu0 0
        %3290 = vmatprep.subr.bf16.mxu0 0
        %3291 = vmatpush1.bf16.msra.mxu0 0
        %3292 = vmatprep.subr.bf16.mxu0 0
        %3293 = vmatpush1.bf16.msra.mxu0 0
        %3294 = vmatprep.subr.bf16.mxu0 0
        %3295 = vmatpush1.bf16.msra.mxu0 0
        %3296 = vmatprep.subr.bf16.mxu0 0
        %3297 = vmatpush1.bf16.msra.mxu0 0
        %3298 = vmatprep.subr.bf16.mxu0 0
        %3299 = vmatpush1.bf16.msra.mxu0 0
        %3300 = vmatprep.subr.bf16.mxu0 0
        %3301 = vmatpush1.bf16.msra.mxu0 0
        %3302 = vmatprep.subr.bf16.mxu0 0
        %3303 = vmatpush1.bf16.msra.mxu0 0
        %3304 = vmatprep.subr.bf16.mxu0 0
        %3305 = vmatpush1.bf16.msra.mxu0 0
        %3306 = vmatprep.mubr.bf16.mxu0 0
        %3307 = vmatmul.mubr.bf16.gmra.mrb[0].mxu0 %v3224
        %v3308 = vpop.f32.mrb[0].mxu0
        %v3309 = vadd.f32 0.0, %v3308
        %v3310 = vpop.f32.mrb[0].mxu0
        %v3311 = vpop.f32.mrb[0].mxu0
        %v3312 = vadd.f32 0.0, %v3311
        %v3313 = vpop.f32.mrb[0].mxu0
        %3314 = vmatprep.mubr.bf16.mxu0 0
        %3315 = vmatmul.mubr.bf16.gmra.mrb[0].mxu0 %v3227
        %v3316 = vpop.f32.mrb[0].mxu0
        %v3317 = vadd.f32 0.0, %v3316
        %v3318 = vpop.f32.mrb[0].mxu0
        %v3319 = vpop.f32.mrb[0].mxu0
        %v3320 = vadd.f32 0.0, %v3319
        %v3321 = vpop.f32.mrb[0].mxu0
        %3322 = vmatprep.mubr.bf16.mxu0 0
        %3323 = vmatmul.mubr.bf16.gmra.mrb[0].mxu0 %v3230
        %v3324 = vpop.f32.mrb[0].mxu0
        %v3325 = vadd.f32 0.0, %v3324
        %v3326 = vpop.f32.mrb[0].mxu0
        %v3327 = vpop.f32.mrb[0].mxu0
        %v3328 = vadd.f32 0.0, %v3327
        %v3329 = vpop.f32.mrb[0].mxu0
        %3330 = vmatprep.mubr.bf16.mxu0 0
        %3331 = vmatmul.mubr.bf16.gmra.mrb[0].mxu0 %v3233
        %v3332 = vpop.f32.mrb[0].mxu0
        %v3333 = vadd.f32 0.0, %v3332
        %v3334 = vpop.f32.mrb[0].mxu0
        %v3335 = vpop.f32.mrb[0].mxu0
        %v3336 = vadd.f32 0.0, %v3335
        %v3337 = vpop.f32.mrb[0].mxu0
        %3338 = vmatprep.mubr.bf16.mxu0 0
        %3339 = vmatmul.mubr.bf16.gmra.mrb[0].mxu0 %v3236
        %v3340 = vpop.f32.mrb[0].mxu0
        %v3341 = vadd.f32 0.0, %v3340
        %v3342 = vpop.f32.mrb[0].mxu0
        %v3343 = vpop.f32.mrb[0].mxu0
        %v3344 = vadd.f32 0.0, %v3343
        %v3345 = vpop.f32.mrb[0].mxu0
        %3346 = vmatprep.mubr.bf16.mxu0 0
        %3347 = vmatmul.mubr.bf16.gmra.mrb[0].mxu0 %v3239
        %v3348 = vpop.f32.mrb[0].mxu0
        %v3349 = vadd.f32 0.0, %v3348
        %v3350 = vpop.f32.mrb[0].mxu0
        %v3351 = vpop.f32.mrb[0].mxu0
        %v3352 = vadd.f32 0.0, %v3351
        %v3353 = vpop.f32.mrb[0].mxu0
        %3354 = vmatprep.mubr.bf16.mxu0 0
        %3355 = vmatmul.mubr.bf16.gmra.mrb[0].mxu0 %v3242
        %v3356 = vpop.f32.mrb[0].mxu0
        %v3357 = vadd.f32 0.0, %v3356
        %v3358 = vpop.f32.mrb[0].mxu0
        %v3359 = vpop.f32.mrb[0].mxu0
        %v3360 = vadd.f32 0.0, %v3359
        %v3361 = vpop.f32.mrb[0].mxu0
        %3362 = vmatprep.mubr.bf16.mxu0 0
        %3363 = vmatmul.mubr.bf16.gmra.mrb[0].mxu0 %v3245
        %v3364 = vpop.f32.mrb[0].mxu0
        %v3365 = vadd.f32 0.0, %v3364
        %v3366 = vpop.f32.mrb[0].mxu0
        %v3367 = vpop.f32.mrb[0].mxu0
        %v3368 = vadd.f32 0.0, %v3367
        %v3369 = vpop.f32.mrb[0].mxu0
        %3370 = vmatprep.mubr.bf16.mxu0 0
        %3371 = vmatmul.mubr.bf16.gmra.mrb[0].mxu0 %v3248
        %v3372 = vpop.f32.mrb[0].mxu0
        %v3373 = vadd.f32 0.0, %v3372
        %v3374 = vpop.f32.mrb[0].mxu0
        %v3375 = vpop.f32.mrb[0].mxu0
        %v3376 = vadd.f32 0.0, %v3375
        %v3377 = vpop.f32.mrb[0].mxu0
        %3378 = vmatprep.mubr.bf16.mxu0 0
        %3379 = vmatmul.mubr.bf16.gmra.mrb[0].mxu0 %v3251
        %v3380 = vpop.f32.mrb[0].mxu0
        %v3381 = vadd.f32 0.0, %v3380
        %v3382 = vpop.f32.mrb[0].mxu0
        %v3383 = vpop.f32.mrb[0].mxu0
        %v3384 = vadd.f32 0.0, %v3383
        %v3385 = vpop.f32.mrb[0].mxu0
        %3386 = vmatprep.mubr.bf16.mxu0 0
        %3387 = vmatmul.mubr.bf16.gmra.mrb[0].mxu0 %v3254
        %v3388 = vpop.f32.mrb[0].mxu0
        %v3389 = vadd.f32 0.0, %v3388
        %v3390 = vpop.f32.mrb[0].mxu0
        %v3391 = vpop.f32.mrb[0].mxu0
        %v3392 = vadd.f32 0.0, %v3391
        %v3393 = vpop.f32.mrb[0].mxu0
        %3394 = vmatprep.mubr.bf16.mxu0 0
        %3395 = vmatmul.mubr.bf16.gmra.mrb[0].mxu0 %v3257
        %v3396 = vpop.f32.mrb[0].mxu0
        %v3397 = vadd.f32 0.0, %v3396
        %v3398 = vpop.f32.mrb[0].mxu0
        %v3399 = vpop.f32.mrb[0].mxu0
        %v3400 = vadd.f32 0.0, %v3399
        %v3401 = vpop.f32.mrb[0].mxu0
        %3402 = vmatprep.mubr.bf16.mxu0 0
        %3403 = vmatmul.mubr.bf16.gmra.mrb[0].mxu0 %v3260
        %v3404 = vpop.f32.mrb[0].mxu0
        %v3405 = vadd.f32 0.0, %v3404
        %v3406 = vpop.f32.mrb[0].mxu0
        %v3407 = vpop.f32.mrb[0].mxu0
        %v3408 = vadd.f32 0.0, %v3407
        %v3409 = vpop.f32.mrb[0].mxu0
        %3410 = vmatprep.mubr.bf16.mxu0 0
        %3411 = vmatmul.mubr.bf16.gmra.mrb[0].mxu0 %v3263
        %v3412 = vpop.f32.mrb[0].mxu0
        %v3413 = vadd.f32 0.0, %v3412
        %v3414 = vpop.f32.mrb[0].mxu0
        %v3415 = vpop.f32.mrb[0].mxu0
        %v3416 = vadd.f32 0.0, %v3415
        %v3417 = vpop.f32.mrb[0].mxu0
        %3418 = vmatprep.mubr.bf16.mxu0 0
        %3419 = vmatmul.mubr.bf16.gmra.mrb[0].mxu0 %v3266
        %v3420 = vpop.f32.mrb[0].mxu0
        %v3421 = vadd.f32 0.0, %v3420
        %v3422 = vpop.f32.mrb[0].mxu0
        %v3423 = vpop.f32.mrb[0].mxu0
        %v3424 = vadd.f32 0.0, %v3423
        %v3425 = vpop.f32.mrb[0].mxu0
        %3426 = vmatprep.mubr.bf16.mxu0 0
        %3427 = vmatmul.mubr.bf16.gmra.mrb[0].mxu0 %v3269
        %v3428 = vpop.f32.mrb[0].mxu0
        %v3429 = vadd.f32 0.0, %v3428
        %v3430 = vpop.f32.mrb[0].mxu0
        %v3431 = vpop.f32.mrb[0].mxu0
        %v3432 = vadd.f32 0.0, %v3431
        %v3433 = vpop.f32.mrb[0].mxu0
        %3434 = vdwg.mxu0
        %v3436 = vsel %vm219, %v3031, 0
        %v3439 = vsel %vm219, %v3032, 0
        %v3442 = vsel %vm219, %v3033, 0
        %v3445 = vsel %vm219, %v3034, 0
        %v3448 = vsel %vm219, %v3035, 0
        %v3451 = vsel %vm219, %v3036, 0
        %v3454 = vsel %vm219, %v3037, 0
        %v3457 = vsel %vm219, %v3038, 0
        %v3460 = vsel %vm219, %v3039, 0
        %v3463 = vsel %vm219, %v3040, 0
        %v3466 = vsel %vm219, %v3041, 0
        %v3469 = vsel %vm219, %v3042, 0
        %v3472 = vsel %vm219, %v3043, 0
        %v3475 = vsel %vm219, %v3044, 0
        %v3478 = vsel %vm219, %v3045, 0
        %v3481 = vsel %vm219, %v3046, 0
        %v3484 = vsel %vm677, %v3022, 0
        %3486 = vmatprep.subr.bf16.mxu0 0
        %3487 = vmatpush1.bf16.msra.mxu0 %v3484
        %3488 = vmatprep.subr.bf16.mxu0 0
        %3489 = vmatpush1.bf16.msra.mxu0 0
        %3490 = vmatprep.subr.bf16.mxu0 0
        %3491 = vmatpush1.bf16.msra.mxu0 0
        %3492 = vmatprep.subr.bf16.mxu0 0
        %3493 = vmatpush1.bf16.msra.mxu0 0
        %3494 = vmatprep.subr.bf16.mxu0 0
        %3495 = vmatpush1.bf16.msra.mxu0 0
        %3496 = vmatprep.subr.bf16.mxu0 0
        %3497 = vmatpush1.bf16.msra.mxu0 0
        %3498 = vmatprep.subr.bf16.mxu0 0
        %3499 = vmatpush1.bf16.msra.mxu0 0
        %3500 = vmatprep.subr.bf16.mxu0 0
        %3501 = vmatpush1.bf16.msra.mxu0 0
        %3502 = vmatprep.subr.bf16.mxu0 0
        %3503 = vmatpush1.bf16.msra.mxu0 0
        %3504 = vmatprep.subr.bf16.mxu0 0
        %3505 = vmatpush1.bf16.msra.mxu0 0
        %3506 = vmatprep.subr.bf16.mxu0 0
        %3507 = vmatpush1.bf16.msra.mxu0 0
        %3508 = vmatprep.subr.bf16.mxu0 0
        %3509 = vmatpush1.bf16.msra.mxu0 0
        %3510 = vmatprep.subr.bf16.mxu0 0
        %3511 = vmatpush1.bf16.msra.mxu0 0
        %3512 = vmatprep.subr.bf16.mxu0 0
        %3513 = vmatpush1.bf16.msra.mxu0 0
        %3514 = vmatprep.subr.bf16.mxu0 0
        %3515 = vmatpush1.bf16.msra.mxu0 0
        %3516 = vmatprep.subr.bf16.mxu0 0
        %3517 = vmatpush1.bf16.msra.mxu0 0
        %3518 = vmatprep.mubr.bf16.mxu0 0
        %3519 = vmatmul.mubr.bf16.gmra.mrb[0].mxu0 %v3436
        %v3520 = vpop.f32.mrb[0].mxu0
        %v3521 = vadd.f32 %v3309, %v3520
        %v3522 = vpop.f32.mrb[0].mxu0
        %v3523 = vpop.f32.mrb[0].mxu0
        %v3524 = vadd.f32 %v3312, %v3523
        %v3525 = vpop.f32.mrb[0].mxu0
        %3526 = vmatprep.mubr.bf16.mxu0 0
        %3527 = vmatmul.mubr.bf16.gmra.mrb[0].mxu0 %v3439
        %v3528 = vpop.f32.mrb[0].mxu0
        %v3529 = vadd.f32 %v3317, %v3528
        %v3530 = vpop.f32.mrb[0].mxu0
        %v3531 = vpop.f32.mrb[0].mxu0
        %v3532 = vadd.f32 %v3320, %v3531
        %v3533 = vpop.f32.mrb[0].mxu0
        %3534 = vmatprep.mubr.bf16.mxu0 0
        %3535 = vmatmul.mubr.bf16.gmra.mrb[0].mxu0 %v3442
        %v3536 = vpop.f32.mrb[0].mxu0
        %v3537 = vadd.f32 %v3325, %v3536
        %v3538 = vpop.f32.mrb[0].mxu0
        %v3539 = vpop.f32.mrb[0].mxu0
        %v3540 = vadd.f32 %v3328, %v3539
        %v3541 = vpop.f32.mrb[0].mxu0
        %3542 = vmatprep.mubr.bf16.mxu0 0
        %3543 = vmatmul.mubr.bf16.gmra.mrb[0].mxu0 %v3445
        %v3544 = vpop.f32.mrb[0].mxu0
        %v3545 = vadd.f32 %v3333, %v3544
        %v3546 = vpop.f32.mrb[0].mxu0
        %v3547 = vpop.f32.mrb[0].mxu0
        %v3548 = vadd.f32 %v3336, %v3547
        %v3549 = vpop.f32.mrb[0].mxu0
        %3550 = vmatprep.mubr.bf16.mxu0 0
        %3551 = vmatmul.mubr.bf16.gmra.mrb[0].mxu0 %v3448
        %v3552 = vpop.f32.mrb[0].mxu0
        %v3553 = vadd.f32 %v3341, %v3552
        %v3554 = vpop.f32.mrb[0].mxu0
        %v3555 = vpop.f32.mrb[0].mxu0
        %v3556 = vadd.f32 %v3344, %v3555
        %v3557 = vpop.f32.mrb[0].mxu0
        %3558 = vmatprep.mubr.bf16.mxu0 0
        %3559 = vmatmul.mubr.bf16.gmra.mrb[0].mxu0 %v3451
        %v3560 = vpop.f32.mrb[0].mxu0
        %v3561 = vadd.f32 %v3349, %v3560
        %v3562 = vpop.f32.mrb[0].mxu0
        %v3563 = vpop.f32.mrb[0].mxu0
        %v3564 = vadd.f32 %v3352, %v3563
        %v3565 = vpop.f32.mrb[0].mxu0
        %3566 = vmatprep.mubr.bf16.mxu0 0
        %3567 = vmatmul.mubr.bf16.gmra.mrb[0].mxu0 %v3454
        %v3568 = vpop.f32.mrb[0].mxu0
        %v3569 = vadd.f32 %v3357, %v3568
        %v3570 = vpop.f32.mrb[0].mxu0
        %v3571 = vpop.f32.mrb[0].mxu0
        %v3572 = vadd.f32 %v3360, %v3571
        %v3573 = vpop.f32.mrb[0].mxu0
        %3574 = vmatprep.mubr.bf16.mxu0 0
        %3575 = vmatmul.mubr.bf16.gmra.mrb[0].mxu0 %v3457
        %v3576 = vpop.f32.mrb[0].mxu0
        %v3577 = vadd.f32 %v3365, %v3576
        %v3578 = vpop.f32.mrb[0].mxu0
        %v3579 = vpop.f32.mrb[0].mxu0
        %v3580 = vadd.f32 %v3368, %v3579
        %v3581 = vpop.f32.mrb[0].mxu0
        %3582 = vmatprep.mubr.bf16.mxu0 0
        %3583 = vmatmul.mubr.bf16.gmra.mrb[0].mxu0 %v3460
        %v3584 = vpop.f32.mrb[0].mxu0
        %v3585 = vadd.f32 %v3373, %v3584
        %v3586 = vpop.f32.mrb[0].mxu0
        %v3587 = vpop.f32.mrb[0].mxu0
        %v3588 = vadd.f32 %v3376, %v3587
        %v3589 = vpop.f32.mrb[0].mxu0
        %3590 = vmatprep.mubr.bf16.mxu0 0
        %3591 = vmatmul.mubr.bf16.gmra.mrb[0].mxu0 %v3463
        %v3592 = vpop.f32.mrb[0].mxu0
        %v3593 = vadd.f32 %v3381, %v3592
        %v3594 = vpop.f32.mrb[0].mxu0
        %v3595 = vpop.f32.mrb[0].mxu0
        %v3596 = vadd.f32 %v3384, %v3595
        %v3597 = vpop.f32.mrb[0].mxu0
        %3598 = vmatprep.mubr.bf16.mxu0 0
        %3599 = vmatmul.mubr.bf16.gmra.mrb[0].mxu0 %v3466
        %v3600 = vpop.f32.mrb[0].mxu0
        %v3601 = vadd.f32 %v3389, %v3600
        %v3602 = vpop.f32.mrb[0].mxu0
        %v3603 = vpop.f32.mrb[0].mxu0
        %v3604 = vadd.f32 %v3392, %v3603
        %v3605 = vpop.f32.mrb[0].mxu0
        %3606 = vmatprep.mubr.bf16.mxu0 0
        %3607 = vmatmul.mubr.bf16.gmra.mrb[0].mxu0 %v3469
        %v3608 = vpop.f32.mrb[0].mxu0
        %v3609 = vadd.f32 %v3397, %v3608
        %v3610 = vpop.f32.mrb[0].mxu0
        %v3611 = vpop.f32.mrb[0].mxu0
        %v3612 = vadd.f32 %v3400, %v3611
        %v3613 = vpop.f32.mrb[0].mxu0
        %3614 = vmatprep.mubr.bf16.mxu0 0
        %3615 = vmatmul.mubr.bf16.gmra.mrb[0].mxu0 %v3472
        %v3616 = vpop.f32.mrb[0].mxu0
        %v3617 = vadd.f32 %v3405, %v3616
        %v3618 = vpop.f32.mrb[0].mxu0
        %v3619 = vpop.f32.mrb[0].mxu0
        %v3620 = vadd.f32 %v3408, %v3619
        %v3621 = vpop.f32.mrb[0].mxu0
        %3622 = vmatprep.mubr.bf16.mxu0 0
        %3623 = vmatmul.mubr.bf16.gmra.mrb[0].mxu0 %v3475
        %v3624 = vpop.f32.mrb[0].mxu0
        %v3625 = vadd.f32 %v3413, %v3624
        %v3626 = vpop.f32.mrb[0].mxu0
        %v3627 = vpop.f32.mrb[0].mxu0
        %v3628 = vadd.f32 %v3416, %v3627
        %v3629 = vpop.f32.mrb[0].mxu0
        %3630 = vmatprep.mubr.bf16.mxu0 0
        %3631 = vmatmul.mubr.bf16.gmra.mrb[0].mxu0 %v3478
        %v3632 = vpop.f32.mrb[0].mxu0
        %v3633 = vadd.f32 %v3421, %v3632
        %v3634 = vpop.f32.mrb[0].mxu0
        %v3635 = vpop.f32.mrb[0].mxu0
        %v3636 = vadd.f32 %v3424, %v3635
        %v3637 = vpop.f32.mrb[0].mxu0
        %3638 = vmatprep.mubr.bf16.mxu0 0
        %3639 = vmatmul.mubr.bf16.gmra.mrb[0].mxu0 %v3481
        %v3640 = vpop.f32.mrb[0].mxu0
        %v3641 = vadd.f32 %v3429, %v3640
        %v3642 = vpop.f32.mrb[0].mxu0
        %v3643 = vpop.f32.mrb[0].mxu0
        %v3644 = vadd.f32 %v3432, %v3643
        %v3645 = vpop.f32.mrb[0].mxu0
        %3646 = vdwg.mxu0
        %v3647 = vrot.slane %v2968, 2
        %v3648 = vrot.slane %v2969, 2
        %v3649 = vsel %vm1054, %v3647, %v3648
        %v3650 = vrot.slane %v2970, 2
        %v3651 = vsel %vm1054, %v3648, %v3650
        %v3652 = vrot.slane %v2971, 2
        %v3653 = vrot.slane %v2972, 2
        %v3654 = vsel %vm1054, %v3652, %v3653
        %v3655 = vrot.slane %v2973, 2
        %v3656 = vsel %vm1054, %v3653, %v3655
        %v3657 = vrot.slane %v2974, 2
        %v3658 = vrot.slane %v2975, 2
        %v3659 = vsel %vm1054, %v3657, %v3658
        %v3660 = vrot.slane %v2976, 2
        %v3661 = vsel %vm1054, %v3658, %v3660
        %v3662 = vrot.slane %v2977, 2
        %v3663 = vrot.slane %v2978, 2
        %v3664 = vsel %vm1054, %v3662, %v3663
        %v3665 = vrot.slane %v2979, 2
        %v3666 = vsel %vm1054, %v3663, %v3665
        %v3667 = vrot.slane %v2980, 2
        %v3668 = vrot.slane %v2981, 2
        %v3669 = vsel %vm1054, %v3667, %v3668
        %v3670 = vrot.slane %v2982, 2
        %v3671 = vsel %vm1054, %v3668, %v3670
        %v3672 = vrot.slane %v2983, 2
        %v3673 = vrot.slane %v2984, 2
        %v3674 = vsel %vm1054, %v3672, %v3673
        %v3675 = vrot.slane %v2985, 2
        %v3676 = vsel %vm1054, %v3673, %v3675
        %v3677 = vrot.slane %v2986, 2
        %v3678 = vrot.slane %v2987, 2
        %v3679 = vsel %vm1054, %v3677, %v3678
        %v3680 = vrot.slane %v2988, 2
        %v3681 = vsel %vm1054, %v3678, %v3680
        %v3682 = vrot.slane %v2989, 2
        %v3683 = vrot.slane %v2990, 2
        %v3684 = vsel %vm1054, %v3682, %v3683
        %v3685 = vrot.slane %v2991, 2
        %v3686 = vsel %vm1054, %v3683, %v3685
        %v3687 = vrot.slane %v2992, 2
        %v3688 = vrot.slane %v2993, 2
        %v3689 = vsel %vm1054, %v3687, %v3688
        %v3690 = vrot.slane %v2994, 2
        %v3691 = vsel %vm1054, %v3688, %v3690
        %v3692 = vrot.slane %v2995, 2
        %v3693 = vrot.slane %v2996, 2
        %v3694 = vsel %vm1054, %v3692, %v3693
        %v3695 = vrot.slane %v2997, 2
        %v3696 = vsel %vm1054, %v3693, %v3695
        %v3697 = vrot.slane %v2998, 2
        %v3698 = vrot.slane %v2999, 2
        %v3699 = vsel %vm1054, %v3697, %v3698
        %v3700 = vrot.slane %v3000, 2
        %v3701 = vsel %vm1054, %v3698, %v3700
        %v3702 = vrot.slane %v3001, 2
        %v3703 = vrot.slane %v3002, 2
        %v3704 = vsel %vm1054, %v3702, %v3703
        %v3705 = vrot.slane %v3003, 2
        %v3706 = vsel %vm1054, %v3703, %v3705
        %v3707 = vrot.slane %v3004, 2
        %v3708 = vrot.slane %v3005, 2
        %v3709 = vsel %vm1054, %v3707, %v3708
        %v3710 = vrot.slane %v3006, 2
        %v3711 = vsel %vm1054, %v3708, %v3710
        %v3712 = vrot.slane %v3007, 2
        %v3713 = vrot.slane %v3008, 2
        %v3714 = vsel %vm1054, %v3712, %v3713
        %v3715 = vrot.slane %v3009, 2
        %v3716 = vsel %vm1054, %v3713, %v3715
        %v3717 = vrot.slane %v3010, 2
        %v3718 = vrot.slane %v3011, 2
        %v3719 = vsel %vm1054, %v3717, %v3718
        %v3720 = vrot.slane %v3012, 2
        %v3721 = vsel %vm1054, %v3718, %v3720
        %v3722 = vrot.slane %v3013, 2
        %v3723 = vrot.slane %v3014, 2
        %v3724 = vsel %vm1054, %v3722, %v3723
        %v3725 = vrot.slane %v3015, 2
        %v3726 = vsel %vm1054, %v3723, %v3725
        %v3759 = vpack.c.bf16 %v3651, %v3649
        %v3760 = vpack.c.bf16 %v3656, %v3654
        %v3761 = vpack.c.bf16 %v3661, %v3659
        %v3762 = vpack.c.bf16 %v3666, %v3664
        %v3763 = vpack.c.bf16 %v3671, %v3669
        %v3764 = vpack.c.bf16 %v3676, %v3674
        %v3765 = vpack.c.bf16 %v3681, %v3679
        %v3766 = vpack.c.bf16 %v3686, %v3684
        %v3767 = vpack.c.bf16 %v3691, %v3689
        %v3768 = vpack.c.bf16 %v3696, %v3694
        %v3769 = vpack.c.bf16 %v3701, %v3699
        %v3770 = vpack.c.bf16 %v3706, %v3704
        %v3771 = vpack.c.bf16 %v3711, %v3709
        %v3772 = vpack.c.bf16 %v3716, %v3714
        %v3773 = vpack.c.bf16 %v3721, %v3719
        %v3774 = vpack.c.bf16 %v3726, %v3724
        %v3776 = vsel %vm219, %v3759, 0
        %v3779 = vsel %vm219, %v3760, 0
        %v3782 = vsel %vm219, %v3761, 0
        %v3785 = vsel %vm219, %v3762, 0
        %v3788 = vsel %vm219, %v3763, 0
        %v3791 = vsel %vm219, %v3764, 0
        %v3794 = vsel %vm219, %v3765, 0
        %v3797 = vsel %vm219, %v3766, 0
        %v3800 = vsel %vm219, %v3767, 0
        %v3803 = vsel %vm219, %v3768, 0
        %v3806 = vsel %vm219, %v3769, 0
        %v3809 = vsel %vm219, %v3770, 0
        %v3812 = vsel %vm219, %v3771, 0
        %v3815 = vsel %vm219, %v3772, 0
        %v3818 = vsel %vm219, %v3773, 0
        %v3821 = vsel %vm219, %v3774, 0
        %v3824 = vsel %vm677, %v3024, 0
        %3826 = vmatprep.subr.bf16.mxu0 0
        %3827 = vmatpush1.bf16.msra.mxu0 %v3824
        %3828 = vmatprep.subr.bf16.mxu0 0
        %3829 = vmatpush1.bf16.msra.mxu0 0
        %3830 = vmatprep.subr.bf16.mxu0 0
        %3831 = vmatpush1.bf16.msra.mxu0 0
        %3832 = vmatprep.subr.bf16.mxu0 0
        %3833 = vmatpush1.bf16.msra.mxu0 0
        %3834 = vmatprep.subr.bf16.mxu0 0
        %3835 = vmatpush1.bf16.msra.mxu0 0
        %3836 = vmatprep.subr.bf16.mxu0 0
        %3837 = vmatpush1.bf16.msra.mxu0 0
        %3838 = vmatprep.subr.bf16.mxu0 0
        %3839 = vmatpush1.bf16.msra.mxu0 0
        %3840 = vmatprep.subr.bf16.mxu0 0
        %3841 = vmatpush1.bf16.msra.mxu0 0
        %3842 = vmatprep.subr.bf16.mxu0 0
        %3843 = vmatpush1.bf16.msra.mxu0 0
        %3844 = vmatprep.subr.bf16.mxu0 0
        %3845 = vmatpush1.bf16.msra.mxu0 0
        %3846 = vmatprep.subr.bf16.mxu0 0
        %3847 = vmatpush1.bf16.msra.mxu0 0
        %3848 = vmatprep.subr.bf16.mxu0 0
        %3849 = vmatpush1.bf16.msra.mxu0 0
        %3850 = vmatprep.subr.bf16.mxu0 0
        %3851 = vmatpush1.bf16.msra.mxu0 0
        %3852 = vmatprep.subr.bf16.mxu0 0
        %3853 = vmatpush1.bf16.msra.mxu0 0
        %3854 = vmatprep.subr.bf16.mxu0 0
        %3855 = vmatpush1.bf16.msra.mxu0 0
        %3856 = vmatprep.subr.bf16.mxu0 0
        %3857 = vmatpush1.bf16.msra.mxu0 0
        %3858 = vmatprep.mubr.bf16.mxu0 0
        %3859 = vmatmul.mubr.bf16.gmra.mrb[0].mxu0 %v3776
        %v3860 = vpop.f32.mrb[0].mxu0
        %v3861 = vadd.f32 0.0, %v3860
        %v3862 = vpop.f32.mrb[0].mxu0
        %v3863 = vpop.f32.mrb[0].mxu0
        %v3864 = vadd.f32 0.0, %v3863
        %v3865 = vpop.f32.mrb[0].mxu0
        %3866 = vmatprep.mubr.bf16.mxu0 0
        %3867 = vmatmul.mubr.bf16.gmra.mrb[0].mxu0 %v3779
        %v3868 = vpop.f32.mrb[0].mxu0
        %v3869 = vadd.f32 0.0, %v3868
        %v3870 = vpop.f32.mrb[0].mxu0
        %v3871 = vpop.f32.mrb[0].mxu0
        %v3872 = vadd.f32 0.0, %v3871
        %v3873 = vpop.f32.mrb[0].mxu0
        %3874 = vmatprep.mubr.bf16.mxu0 0
        %3875 = vmatmul.mubr.bf16.gmra.mrb[0].mxu0 %v3782
        %v3876 = vpop.f32.mrb[0].mxu0
        %v3877 = vadd.f32 0.0, %v3876
        %v3878 = vpop.f32.mrb[0].mxu0
        %v3879 = vpop.f32.mrb[0].mxu0
        %v3880 = vadd.f32 0.0, %v3879
        %v3881 = vpop.f32.mrb[0].mxu0
        %3882 = vmatprep.mubr.bf16.mxu0 0
        %3883 = vmatmul.mubr.bf16.gmra.mrb[0].mxu0 %v3785
        %v3884 = vpop.f32.mrb[0].mxu0
        %v3885 = vadd.f32 0.0, %v3884
        %v3886 = vpop.f32.mrb[0].mxu0
        %v3887 = vpop.f32.mrb[0].mxu0
        %v3888 = vadd.f32 0.0, %v3887
        %v3889 = vpop.f32.mrb[0].mxu0
        %3890 = vmatprep.mubr.bf16.mxu0 0
        %3891 = vmatmul.mubr.bf16.gmra.mrb[0].mxu0 %v3788
        %v3892 = vpop.f32.mrb[0].mxu0
        %v3893 = vadd.f32 0.0, %v3892
        %v3894 = vpop.f32.mrb[0].mxu0
        %v3895 = vpop.f32.mrb[0].mxu0
        %v3896 = vadd.f32 0.0, %v3895
        %v3897 = vpop.f32.mrb[0].mxu0
        %3898 = vmatprep.mubr.bf16.mxu0 0
        %3899 = vmatmul.mubr.bf16.gmra.mrb[0].mxu0 %v3791
        %v3900 = vpop.f32.mrb[0].mxu0
        %v3901 = vadd.f32 0.0, %v3900
        %v3902 = vpop.f32.mrb[0].mxu0
        %v3903 = vpop.f32.mrb[0].mxu0
        %v3904 = vadd.f32 0.0, %v3903
        %v3905 = vpop.f32.mrb[0].mxu0
        %3906 = vmatprep.mubr.bf16.mxu0 0
        %3907 = vmatmul.mubr.bf16.gmra.mrb[0].mxu0 %v3794
        %v3908 = vpop.f32.mrb[0].mxu0
        %v3909 = vadd.f32 0.0, %v3908
        %v3910 = vpop.f32.mrb[0].mxu0
        %v3911 = vpop.f32.mrb[0].mxu0
        %v3912 = vadd.f32 0.0, %v3911
        %v3913 = vpop.f32.mrb[0].mxu0
        %3914 = vmatprep.mubr.bf16.mxu0 0
        %3915 = vmatmul.mubr.bf16.gmra.mrb[0].mxu0 %v3797
        %v3916 = vpop.f32.mrb[0].mxu0
        %v3917 = vadd.f32 0.0, %v3916
        %v3918 = vpop.f32.mrb[0].mxu0
        %v3919 = vpop.f32.mrb[0].mxu0
        %v3920 = vadd.f32 0.0, %v3919
        %v3921 = vpop.f32.mrb[0].mxu0
        %3922 = vmatprep.mubr.bf16.mxu0 0
        %3923 = vmatmul.mubr.bf16.gmra.mrb[0].mxu0 %v3800
        %v3924 = vpop.f32.mrb[0].mxu0
        %v3925 = vadd.f32 0.0, %v3924
        %v3926 = vpop.f32.mrb[0].mxu0
        %v3927 = vpop.f32.mrb[0].mxu0
        %v3928 = vadd.f32 0.0, %v3927
        %v3929 = vpop.f32.mrb[0].mxu0
        %3930 = vmatprep.mubr.bf16.mxu0 0
        %3931 = vmatmul.mubr.bf16.gmra.mrb[0].mxu0 %v3803
        %v3932 = vpop.f32.mrb[0].mxu0
        %v3933 = vadd.f32 0.0, %v3932
        %v3934 = vpop.f32.mrb[0].mxu0
        %v3935 = vpop.f32.mrb[0].mxu0
        %v3936 = vadd.f32 0.0, %v3935
        %v3937 = vpop.f32.mrb[0].mxu0
        %3938 = vmatprep.mubr.bf16.mxu0 0
        %3939 = vmatmul.mubr.bf16.gmra.mrb[0].mxu0 %v3806
        %v3940 = vpop.f32.mrb[0].mxu0
        %v3941 = vadd.f32 0.0, %v3940
        %v3942 = vpop.f32.mrb[0].mxu0
        %v3943 = vpop.f32.mrb[0].mxu0
        %v3944 = vadd.f32 0.0, %v3943
        %v3945 = vpop.f32.mrb[0].mxu0
        %3946 = vmatprep.mubr.bf16.mxu0 0
        %3947 = vmatmul.mubr.bf16.gmra.mrb[0].mxu0 %v3809
        %v3948 = vpop.f32.mrb[0].mxu0
        %v3949 = vadd.f32 0.0, %v3948
        %v3950 = vpop.f32.mrb[0].mxu0
        %v3951 = vpop.f32.mrb[0].mxu0
        %v3952 = vadd.f32 0.0, %v3951
        %v3953 = vpop.f32.mrb[0].mxu0
        %3954 = vmatprep.mubr.bf16.mxu0 0
        %3955 = vmatmul.mubr.bf16.gmra.mrb[0].mxu0 %v3812
        %v3956 = vpop.f32.mrb[0].mxu0
        %v3957 = vadd.f32 0.0, %v3956
        %v3958 = vpop.f32.mrb[0].mxu0
        %v3959 = vpop.f32.mrb[0].mxu0
        %v3960 = vadd.f32 0.0, %v3959
        %v3961 = vpop.f32.mrb[0].mxu0
        %3962 = vmatprep.mubr.bf16.mxu0 0
        %3963 = vmatmul.mubr.bf16.gmra.mrb[0].mxu0 %v3815
        %v3964 = vpop.f32.mrb[0].mxu0
        %v3965 = vadd.f32 0.0, %v3964
        %v3966 = vpop.f32.mrb[0].mxu0
        %v3967 = vpop.f32.mrb[0].mxu0
        %v3968 = vadd.f32 0.0, %v3967
        %v3969 = vpop.f32.mrb[0].mxu0
        %3970 = vmatprep.mubr.bf16.mxu0 0
        %3971 = vmatmul.mubr.bf16.gmra.mrb[0].mxu0 %v3818
        %v3972 = vpop.f32.mrb[0].mxu0
        %v3973 = vadd.f32 0.0, %v3972
        %v3974 = vpop.f32.mrb[0].mxu0
        %v3975 = vpop.f32.mrb[0].mxu0
        %v3976 = vadd.f32 0.0, %v3975
        %v3977 = vpop.f32.mrb[0].mxu0
        %3978 = vmatprep.mubr.bf16.mxu0 0
        %3979 = vmatmul.mubr.bf16.gmra.mrb[0].mxu0 %v3821
        %v3980 = vpop.f32.mrb[0].mxu0
        %v3981 = vadd.f32 0.0, %v3980
        %v3982 = vpop.f32.mrb[0].mxu0
        %v3983 = vpop.f32.mrb[0].mxu0
        %v3984 = vadd.f32 0.0, %v3983
        %v3985 = vpop.f32.mrb[0].mxu0
        %3986 = vdwg.mxu0
        %v3987 = vadd.f32 %v3521, %v3861
        %v3988 = vadd.f32 %v3524, %v3864
        %v3989 = vadd.f32 %v3529, %v3869
        %v3990 = vadd.f32 %v3532, %v3872
        %v3991 = vadd.f32 %v3537, %v3877
        %v3992 = vadd.f32 %v3540, %v3880
        %v3993 = vadd.f32 %v3545, %v3885
        %v3994 = vadd.f32 %v3548, %v3888
        %v3995 = vadd.f32 %v3553, %v3893
        %v3996 = vadd.f32 %v3556, %v3896
        %v3997 = vadd.f32 %v3561, %v3901
        %v3998 = vadd.f32 %v3564, %v3904
        %v3999 = vadd.f32 %v3569, %v3909
        %v4000 = vadd.f32 %v3572, %v3912
        %v4001 = vadd.f32 %v3577, %v3917
        %v4002 = vadd.f32 %v3580, %v3920
        %v4003 = vadd.f32 %v3585, %v3925
        %v4004 = vadd.f32 %v3588, %v3928
        %v4005 = vadd.f32 %v3593, %v3933
        %v4006 = vadd.f32 %v3596, %v3936
        %v4007 = vadd.f32 %v3601, %v3941
        %v4008 = vadd.f32 %v3604, %v3944
        %v4009 = vadd.f32 %v3609, %v3949
        %v4010 = vadd.f32 %v3612, %v3952
        %v4011 = vadd.f32 %v3617, %v3957
        %v4012 = vadd.f32 %v3620, %v3960
        %v4013 = vadd.f32 %v3625, %v3965
        %v4014 = vadd.f32 %v3628, %v3968
        %v4015 = vadd.f32 %v3633, %v3973
        %v4016 = vadd.f32 %v3636, %v3976
        %v4017 = vadd.f32 %v3641, %v3981
        %v4018 = vadd.f32 %v3644, %v3984
        %v4019 = vpack.c.bf16 %v3017, %v3016
        %v4021 = vsel %vm219, %v4019, 0
        %v4024 = vsel %vm677, %v3025, 0
        %4026 = vmatprep.subr.bf16.mxu0 0
        %4027 = vmatpush1.bf16.msra.mxu0 %v4024
        %4028 = vmatprep.subr.bf16.mxu0 0
        %4029 = vmatpush1.bf16.msra.mxu0 0
        %4030 = vmatprep.subr.bf16.mxu0 0
        %4031 = vmatpush1.bf16.msra.mxu0 0
        %4032 = vmatprep.subr.bf16.mxu0 0
        %4033 = vmatpush1.bf16.msra.mxu0 0
        %4034 = vmatprep.subr.bf16.mxu0 0
        %4035 = vmatpush1.bf16.msra.mxu0 0
        %4036 = vmatprep.subr.bf16.mxu0 0
        %4037 = vmatpush1.bf16.msra.mxu0 0
        %4038 = vmatprep.subr.bf16.mxu0 0
        %4039 = vmatpush1.bf16.msra.mxu0 0
        %4040 = vmatprep.subr.bf16.mxu0 0
        %4041 = vmatpush1.bf16.msra.mxu0 0
        %4042 = vmatprep.subr.bf16.mxu0 0
        %4043 = vmatpush1.bf16.msra.mxu0 0
        %4044 = vmatprep.subr.bf16.mxu0 0
        %4045 = vmatpush1.bf16.msra.mxu0 0
        %4046 = vmatprep.subr.bf16.mxu0 0
        %4047 = vmatpush1.bf16.msra.mxu0 0
        %4048 = vmatprep.subr.bf16.mxu0 0
        %4049 = vmatpush1.bf16.msra.mxu0 0
        %4050 = vmatprep.subr.bf16.mxu0 0
        %4051 = vmatpush1.bf16.msra.mxu0 0
        %4052 = vmatprep.subr.bf16.mxu0 0
        %4053 = vmatpush1.bf16.msra.mxu0 0
        %4054 = vmatprep.subr.bf16.mxu0 0
        %4055 = vmatpush1.bf16.msra.mxu0 0
        %4056 = vmatprep.subr.bf16.mxu0 0
        %4057 = vmatpush1.bf16.msra.mxu0 0
        %4058 = vmatprep.mubr.bf16.mxu0 0
        %4059 = vmatmul.mubr.bf16.gmra.mrb[0].mxu0 %v3439
        %v4060 = vpop.f32.mrb[0].mxu0
        %v4061 = vadd.f32 0.0, %v4060
        %v4062 = vpop.f32.mrb[0].mxu0
        %v4063 = vpop.f32.mrb[0].mxu0
        %v4064 = vadd.f32 0.0, %v4063
        %v4065 = vpop.f32.mrb[0].mxu0
        %4066 = vmatprep.mubr.bf16.mxu0 0
        %4067 = vmatmul.mubr.bf16.gmra.mrb[0].mxu0 %v3442
        %v4068 = vpop.f32.mrb[0].mxu0
        %v4069 = vadd.f32 0.0, %v4068
        %v4070 = vpop.f32.mrb[0].mxu0
        %v4071 = vpop.f32.mrb[0].mxu0
        %v4072 = vadd.f32 0.0, %v4071
        %v4073 = vpop.f32.mrb[0].mxu0
        %4074 = vmatprep.mubr.bf16.mxu0 0
        %4075 = vmatmul.mubr.bf16.gmra.mrb[0].mxu0 %v3445
        %v4076 = vpop.f32.mrb[0].mxu0
        %v4077 = vadd.f32 0.0, %v4076
        %v4078 = vpop.f32.mrb[0].mxu0
        %v4079 = vpop.f32.mrb[0].mxu0
        %v4080 = vadd.f32 0.0, %v4079
        %v4081 = vpop.f32.mrb[0].mxu0
        %4082 = vmatprep.mubr.bf16.mxu0 0
        %4083 = vmatmul.mubr.bf16.gmra.mrb[0].mxu0 %v3448
        %v4084 = vpop.f32.mrb[0].mxu0
        %v4085 = vadd.f32 0.0, %v4084
        %v4086 = vpop.f32.mrb[0].mxu0
        %v4087 = vpop.f32.mrb[0].mxu0
        %v4088 = vadd.f32 0.0, %v4087
        %v4089 = vpop.f32.mrb[0].mxu0
        %4090 = vmatprep.mubr.bf16.mxu0 0
        %4091 = vmatmul.mubr.bf16.gmra.mrb[0].mxu0 %v3451
        %v4092 = vpop.f32.mrb[0].mxu0
        %v4093 = vadd.f32 0.0, %v4092
        %v4094 = vpop.f32.mrb[0].mxu0
        %v4095 = vpop.f32.mrb[0].mxu0
        %v4096 = vadd.f32 0.0, %v4095
        %v4097 = vpop.f32.mrb[0].mxu0
        %4098 = vmatprep.mubr.bf16.mxu0 0
        %4099 = vmatmul.mubr.bf16.gmra.mrb[0].mxu0 %v3454
        %v4100 = vpop.f32.mrb[0].mxu0
        %v4101 = vadd.f32 0.0, %v4100
        %v4102 = vpop.f32.mrb[0].mxu0
        %v4103 = vpop.f32.mrb[0].mxu0
        %v4104 = vadd.f32 0.0, %v4103
        %v4105 = vpop.f32.mrb[0].mxu0
        %4106 = vmatprep.mubr.bf16.mxu0 0
        %4107 = vmatmul.mubr.bf16.gmra.mrb[0].mxu0 %v3457
        %v4108 = vpop.f32.mrb[0].mxu0
        %v4109 = vadd.f32 0.0, %v4108
        %v4110 = vpop.f32.mrb[0].mxu0
        %v4111 = vpop.f32.mrb[0].mxu0
        %v4112 = vadd.f32 0.0, %v4111
        %v4113 = vpop.f32.mrb[0].mxu0
        %4114 = vmatprep.mubr.bf16.mxu0 0
        %4115 = vmatmul.mubr.bf16.gmra.mrb[0].mxu0 %v3460
        %v4116 = vpop.f32.mrb[0].mxu0
        %v4117 = vadd.f32 0.0, %v4116
        %v4118 = vpop.f32.mrb[0].mxu0
        %v4119 = vpop.f32.mrb[0].mxu0
        %v4120 = vadd.f32 0.0, %v4119
        %v4121 = vpop.f32.mrb[0].mxu0
        %4122 = vmatprep.mubr.bf16.mxu0 0
        %4123 = vmatmul.mubr.bf16.gmra.mrb[0].mxu0 %v3463
        %v4124 = vpop.f32.mrb[0].mxu0
        %v4125 = vadd.f32 0.0, %v4124
        %v4126 = vpop.f32.mrb[0].mxu0
        %v4127 = vpop.f32.mrb[0].mxu0
        %v4128 = vadd.f32 0.0, %v4127
        %v4129 = vpop.f32.mrb[0].mxu0
        %4130 = vmatprep.mubr.bf16.mxu0 0
        %4131 = vmatmul.mubr.bf16.gmra.mrb[0].mxu0 %v3466
        %v4132 = vpop.f32.mrb[0].mxu0
        %v4133 = vadd.f32 0.0, %v4132
        %v4134 = vpop.f32.mrb[0].mxu0
        %v4135 = vpop.f32.mrb[0].mxu0
        %v4136 = vadd.f32 0.0, %v4135
        %v4137 = vpop.f32.mrb[0].mxu0
        %4138 = vmatprep.mubr.bf16.mxu0 0
        %4139 = vmatmul.mubr.bf16.gmra.mrb[0].mxu0 %v3469
        %v4140 = vpop.f32.mrb[0].mxu0
        %v4141 = vadd.f32 0.0, %v4140
        %v4142 = vpop.f32.mrb[0].mxu0
        %v4143 = vpop.f32.mrb[0].mxu0
        %v4144 = vadd.f32 0.0, %v4143
        %v4145 = vpop.f32.mrb[0].mxu0
        %4146 = vmatprep.mubr.bf16.mxu0 0
        %4147 = vmatmul.mubr.bf16.gmra.mrb[0].mxu0 %v3472
        %v4148 = vpop.f32.mrb[0].mxu0
        %v4149 = vadd.f32 0.0, %v4148
        %v4150 = vpop.f32.mrb[0].mxu0
        %v4151 = vpop.f32.mrb[0].mxu0
        %v4152 = vadd.f32 0.0, %v4151
        %v4153 = vpop.f32.mrb[0].mxu0
        %4154 = vmatprep.mubr.bf16.mxu0 0
        %4155 = vmatmul.mubr.bf16.gmra.mrb[0].mxu0 %v3475
        %v4156 = vpop.f32.mrb[0].mxu0
        %v4157 = vadd.f32 0.0, %v4156
        %v4158 = vpop.f32.mrb[0].mxu0
        %v4159 = vpop.f32.mrb[0].mxu0
        %v4160 = vadd.f32 0.0, %v4159
        %v4161 = vpop.f32.mrb[0].mxu0
        %4162 = vmatprep.mubr.bf16.mxu0 0
        %4163 = vmatmul.mubr.bf16.gmra.mrb[0].mxu0 %v3478
        %v4164 = vpop.f32.mrb[0].mxu0
        %v4165 = vadd.f32 0.0, %v4164
        %v4166 = vpop.f32.mrb[0].mxu0
        %v4167 = vpop.f32.mrb[0].mxu0
        %v4168 = vadd.f32 0.0, %v4167
        %v4169 = vpop.f32.mrb[0].mxu0
        %4170 = vmatprep.mubr.bf16.mxu0 0
        %4171 = vmatmul.mubr.bf16.gmra.mrb[0].mxu0 %v3481
        %v4172 = vpop.f32.mrb[0].mxu0
        %v4173 = vadd.f32 0.0, %v4172
        %v4174 = vpop.f32.mrb[0].mxu0
        %v4175 = vpop.f32.mrb[0].mxu0
        %v4176 = vadd.f32 0.0, %v4175
        %v4177 = vpop.f32.mrb[0].mxu0
        %4178 = vmatprep.mubr.bf16.mxu0 0
        %4179 = vmatmul.mubr.bf16.gmra.mrb[0].mxu0 %v4021
        %v4180 = vpop.f32.mrb[0].mxu0
        %v4181 = vadd.f32 0.0, %v4180
        %v4182 = vpop.f32.mrb[0].mxu0
        %v4183 = vpop.f32.mrb[0].mxu0
        %v4184 = vadd.f32 0.0, %v4183
        %v4185 = vpop.f32.mrb[0].mxu0
        %4186 = vdwg.mxu0
        %v4187 = vadd.f32 %v3987, %v4061
        %v4188 = vadd.f32 %v3988, %v4064
        %v4189 = vadd.f32 %v3989, %v4069
        %v4190 = vadd.f32 %v3990, %v4072
        %v4191 = vadd.f32 %v3991, %v4077
        %v4192 = vadd.f32 %v3992, %v4080
        %v4193 = vadd.f32 %v3993, %v4085
        %v4194 = vadd.f32 %v3994, %v4088
        %v4195 = vadd.f32 %v3995, %v4093
        %v4196 = vadd.f32 %v3996, %v4096
        %v4197 = vadd.f32 %v3997, %v4101
        %v4198 = vadd.f32 %v3998, %v4104
        %v4199 = vadd.f32 %v3999, %v4109
        %v4200 = vadd.f32 %v4000, %v4112
        %v4201 = vadd.f32 %v4001, %v4117
        %v4202 = vadd.f32 %v4002, %v4120
        %v4203 = vadd.f32 %v4003, %v4125
        %v4204 = vadd.f32 %v4004, %v4128
        %v4205 = vadd.f32 %v4005, %v4133
        %v4206 = vadd.f32 %v4006, %v4136
        %v4207 = vadd.f32 %v4007, %v4141
        %v4208 = vadd.f32 %v4008, %v4144
        %v4209 = vadd.f32 %v4009, %v4149
        %v4210 = vadd.f32 %v4010, %v4152
        %v4211 = vadd.f32 %v4011, %v4157
        %v4212 = vadd.f32 %v4012, %v4160
        %v4213 = vadd.f32 %v4013, %v4165
        %v4214 = vadd.f32 %v4014, %v4168
        %v4215 = vadd.f32 %v4015, %v4173
        %v4216 = vadd.f32 %v4016, %v4176
        %v4217 = vadd.f32 %v4017, %v4181
        %v4218 = vadd.f32 %v4018, %v4184
        %v4222 = vrot.slane %v3016, 1
        %v4223 = vrot.slane %v3017, 1
        %v4224 = vsel %vm500, %v4222, %v4223
        %v4225 = vrot.slane %v3018, 1
        %v4226 = vsel %vm500, %v4223, %v4225
        %v4229 = vpack.c.bf16 %v4226, %v4224
        %v4231 = vsel %vm219, %v4229, 0
        %v4234 = vsel %vm677, %v3026, 0
        %4236 = vmatprep.subr.bf16.mxu0 0
        %4237 = vmatpush1.bf16.msra.mxu0 %v4234
        %4238 = vmatprep.subr.bf16.mxu0 0
        %4239 = vmatpush1.bf16.msra.mxu0 0
        %4240 = vmatprep.subr.bf16.mxu0 0
        %4241 = vmatpush1.bf16.msra.mxu0 0
        %4242 = vmatprep.subr.bf16.mxu0 0
        %4243 = vmatpush1.bf16.msra.mxu0 0
        %4244 = vmatprep.subr.bf16.mxu0 0
        %4245 = vmatpush1.bf16.msra.mxu0 0
        %4246 = vmatprep.subr.bf16.mxu0 0
        %4247 = vmatpush1.bf16.msra.mxu0 0
        %4248 = vmatprep.subr.bf16.mxu0 0
        %4249 = vmatpush1.bf16.msra.mxu0 0
        %4250 = vmatprep.subr.bf16.mxu0 0
        %4251 = vmatpush1.bf16.msra.mxu0 0
        %4252 = vmatprep.subr.bf16.mxu0 0
        %4253 = vmatpush1.bf16.msra.mxu0 0
        %4254 = vmatprep.subr.bf16.mxu0 0
        %4255 = vmatpush1.bf16.msra.mxu0 0
        %4256 = vmatprep.subr.bf16.mxu0 0
        %4257 = vmatpush1.bf16.msra.mxu0 0
        %4258 = vmatprep.subr.bf16.mxu0 0
        %4259 = vmatpush1.bf16.msra.mxu0 0
        %4260 = vmatprep.subr.bf16.mxu0 0
        %4261 = vmatpush1.bf16.msra.mxu0 0
        %4262 = vmatprep.subr.bf16.mxu0 0
        %4263 = vmatpush1.bf16.msra.mxu0 0
        %4264 = vmatprep.subr.bf16.mxu0 0
        %4265 = vmatpush1.bf16.msra.mxu0 0
        %4266 = vmatprep.subr.bf16.mxu0 0
        %4267 = vmatpush1.bf16.msra.mxu0 0
        %4268 = vmatprep.mubr.bf16.mxu0 0
        %4269 = vmatmul.mubr.bf16.gmra.mrb[0].mxu0 %v3227
        %v4270 = vpop.f32.mrb[0].mxu0
        %v4271 = vadd.f32 0.0, %v4270
        %v4272 = vpop.f32.mrb[0].mxu0
        %v4273 = vpop.f32.mrb[0].mxu0
        %v4274 = vadd.f32 0.0, %v4273
        %v4275 = vpop.f32.mrb[0].mxu0
        %4276 = vmatprep.mubr.bf16.mxu0 0
        %4277 = vmatmul.mubr.bf16.gmra.mrb[0].mxu0 %v3230
        %v4278 = vpop.f32.mrb[0].mxu0
        %v4279 = vadd.f32 0.0, %v4278
        %v4280 = vpop.f32.mrb[0].mxu0
        %v4281 = vpop.f32.mrb[0].mxu0
        %v4282 = vadd.f32 0.0, %v4281
        %v4283 = vpop.f32.mrb[0].mxu0
        %4284 = vmatprep.mubr.bf16.mxu0 0
        %4285 = vmatmul.mubr.bf16.gmra.mrb[0].mxu0 %v3233
        %v4286 = vpop.f32.mrb[0].mxu0
        %v4287 = vadd.f32 0.0, %v4286
        %v4288 = vpop.f32.mrb[0].mxu0
        %v4289 = vpop.f32.mrb[0].mxu0
        %v4290 = vadd.f32 0.0, %v4289
        %v4291 = vpop.f32.mrb[0].mxu0
        %4292 = vmatprep.mubr.bf16.mxu0 0
        %4293 = vmatmul.mubr.bf16.gmra.mrb[0].mxu0 %v3236
        %v4294 = vpop.f32.mrb[0].mxu0
        %v4295 = vadd.f32 0.0, %v4294
        %v4296 = vpop.f32.mrb[0].mxu0
        %v4297 = vpop.f32.mrb[0].mxu0
        %v4298 = vadd.f32 0.0, %v4297
        %v4299 = vpop.f32.mrb[0].mxu0
        %4300 = vmatprep.mubr.bf16.mxu0 0
        %4301 = vmatmul.mubr.bf16.gmra.mrb[0].mxu0 %v3239
        %v4302 = vpop.f32.mrb[0].mxu0
        %v4303 = vadd.f32 0.0, %v4302
        %v4304 = vpop.f32.mrb[0].mxu0
        %v4305 = vpop.f32.mrb[0].mxu0
        %v4306 = vadd.f32 0.0, %v4305
        %v4307 = vpop.f32.mrb[0].mxu0
        %4308 = vmatprep.mubr.bf16.mxu0 0
        %4309 = vmatmul.mubr.bf16.gmra.mrb[0].mxu0 %v3242
        %v4310 = vpop.f32.mrb[0].mxu0
        %v4311 = vadd.f32 0.0, %v4310
        %v4312 = vpop.f32.mrb[0].mxu0
        %v4313 = vpop.f32.mrb[0].mxu0
        %v4314 = vadd.f32 0.0, %v4313
        %v4315 = vpop.f32.mrb[0].mxu0
        %4316 = vmatprep.mubr.bf16.mxu0 0
        %4317 = vmatmul.mubr.bf16.gmra.mrb[0].mxu0 %v3245
        %v4318 = vpop.f32.mrb[0].mxu0
        %v4319 = vadd.f32 0.0, %v4318
        %v4320 = vpop.f32.mrb[0].mxu0
        %v4321 = vpop.f32.mrb[0].mxu0
        %v4322 = vadd.f32 0.0, %v4321
        %v4323 = vpop.f32.mrb[0].mxu0
        %4324 = vmatprep.mubr.bf16.mxu0 0
        %4325 = vmatmul.mubr.bf16.gmra.mrb[0].mxu0 %v3248
        %v4326 = vpop.f32.mrb[0].mxu0
        %v4327 = vadd.f32 0.0, %v4326
        %v4328 = vpop.f32.mrb[0].mxu0
        %v4329 = vpop.f32.mrb[0].mxu0
        %v4330 = vadd.f32 0.0, %v4329
        %v4331 = vpop.f32.mrb[0].mxu0
        %4332 = vmatprep.mubr.bf16.mxu0 0
        %4333 = vmatmul.mubr.bf16.gmra.mrb[0].mxu0 %v3251
        %v4334 = vpop.f32.mrb[0].mxu0
        %v4335 = vadd.f32 0.0, %v4334
        %v4336 = vpop.f32.mrb[0].mxu0
        %v4337 = vpop.f32.mrb[0].mxu0
        %v4338 = vadd.f32 0.0, %v4337
        %v4339 = vpop.f32.mrb[0].mxu0
        %4340 = vmatprep.mubr.bf16.mxu0 0
        %4341 = vmatmul.mubr.bf16.gmra.mrb[0].mxu0 %v3254
        %v4342 = vpop.f32.mrb[0].mxu0
        %v4343 = vadd.f32 0.0, %v4342
        %v4344 = vpop.f32.mrb[0].mxu0
        %v4345 = vpop.f32.mrb[0].mxu0
        %v4346 = vadd.f32 0.0, %v4345
        %v4347 = vpop.f32.mrb[0].mxu0
        %4348 = vmatprep.mubr.bf16.mxu0 0
        %4349 = vmatmul.mubr.bf16.gmra.mrb[0].mxu0 %v3257
        %v4350 = vpop.f32.mrb[0].mxu0
        %v4351 = vadd.f32 0.0, %v4350
        %v4352 = vpop.f32.mrb[0].mxu0
        %v4353 = vpop.f32.mrb[0].mxu0
        %v4354 = vadd.f32 0.0, %v4353
        %v4355 = vpop.f32.mrb[0].mxu0
        %4356 = vmatprep.mubr.bf16.mxu0 0
        %4357 = vmatmul.mubr.bf16.gmra.mrb[0].mxu0 %v3260
        %v4358 = vpop.f32.mrb[0].mxu0
        %v4359 = vadd.f32 0.0, %v4358
        %v4360 = vpop.f32.mrb[0].mxu0
        %v4361 = vpop.f32.mrb[0].mxu0
        %v4362 = vadd.f32 0.0, %v4361
        %v4363 = vpop.f32.mrb[0].mxu0
        %4364 = vmatprep.mubr.bf16.mxu0 0
        %4365 = vmatmul.mubr.bf16.gmra.mrb[0].mxu0 %v3263
        %v4366 = vpop.f32.mrb[0].mxu0
        %v4367 = vadd.f32 0.0, %v4366
        %v4368 = vpop.f32.mrb[0].mxu0
        %v4369 = vpop.f32.mrb[0].mxu0
        %v4370 = vadd.f32 0.0, %v4369
        %v4371 = vpop.f32.mrb[0].mxu0
        %4372 = vmatprep.mubr.bf16.mxu0 0
        %4373 = vmatmul.mubr.bf16.gmra.mrb[0].mxu0 %v3266
        %v4374 = vpop.f32.mrb[0].mxu0
        %v4375 = vadd.f32 0.0, %v4374
        %v4376 = vpop.f32.mrb[0].mxu0
        %v4377 = vpop.f32.mrb[0].mxu0
        %v4378 = vadd.f32 0.0, %v4377
        %v4379 = vpop.f32.mrb[0].mxu0
        %4380 = vmatprep.mubr.bf16.mxu0 0
        %4381 = vmatmul.mubr.bf16.gmra.mrb[0].mxu0 %v3269
        %v4382 = vpop.f32.mrb[0].mxu0
        %v4383 = vadd.f32 0.0, %v4382
        %v4384 = vpop.f32.mrb[0].mxu0
        %v4385 = vpop.f32.mrb[0].mxu0
        %v4386 = vadd.f32 0.0, %v4385
        %v4387 = vpop.f32.mrb[0].mxu0
        %4388 = vmatprep.mubr.bf16.mxu0 0
        %4389 = vmatmul.mubr.bf16.gmra.mrb[0].mxu0 %v4231
        %v4390 = vpop.f32.mrb[0].mxu0
        %v4391 = vadd.f32 0.0, %v4390
        %v4392 = vpop.f32.mrb[0].mxu0
        %v4393 = vpop.f32.mrb[0].mxu0
        %v4394 = vadd.f32 0.0, %v4393
        %v4395 = vpop.f32.mrb[0].mxu0
        %4396 = vdwg.mxu0
        %v4397 = vadd.f32 %v4187, %v4271
        %v4398 = vadd.f32 %v4188, %v4274
        %v4399 = vadd.f32 %v4189, %v4279
        %v4400 = vadd.f32 %v4190, %v4282
        %v4401 = vadd.f32 %v4191, %v4287
        %v4402 = vadd.f32 %v4192, %v4290
        %v4403 = vadd.f32 %v4193, %v4295
        %v4404 = vadd.f32 %v4194, %v4298
        %v4405 = vadd.f32 %v4195, %v4303
        %v4406 = vadd.f32 %v4196, %v4306
        %v4407 = vadd.f32 %v4197, %v4311
        %v4408 = vadd.f32 %v4198, %v4314
        %v4409 = vadd.f32 %v4199, %v4319
        %v4410 = vadd.f32 %v4200, %v4322
        %v4411 = vadd.f32 %v4201, %v4327
        %v4412 = vadd.f32 %v4202, %v4330
        %v4413 = vadd.f32 %v4203, %v4335
        %v4414 = vadd.f32 %v4204, %v4338
        %v4415 = vadd.f32 %v4205, %v4343
        %v4416 = vadd.f32 %v4206, %v4346
        %v4417 = vadd.f32 %v4207, %v4351
        %v4418 = vadd.f32 %v4208, %v4354
        %v4419 = vadd.f32 %v4209, %v4359
        %v4420 = vadd.f32 %v4210, %v4362
        %v4421 = vadd.f32 %v4211, %v4367
        %v4422 = vadd.f32 %v4212, %v4370
        %v4423 = vadd.f32 %v4213, %v4375
        %v4424 = vadd.f32 %v4214, %v4378
        %v4425 = vadd.f32 %v4215, %v4383
        %v4426 = vadd.f32 %v4216, %v4386
        %v4427 = vadd.f32 %v4217, %v4391
        %v4428 = vadd.f32 %v4218, %v4394
        %v4429 = vrot.slane %v3016, 2
        %v4430 = vrot.slane %v3017, 2
        %v4431 = vsel %vm1054, %v4429, %v4430
        %v4432 = vrot.slane %v3018, 2
        %v4433 = vsel %vm1054, %v4430, %v4432
        %v4436 = vpack.c.bf16 %v4433, %v4431
        %v4438 = vsel %vm219, %v4436, 0
        %v4441 = vsel %vm677, %v3027, 0
        %4443 = vmatprep.subr.bf16.mxu0 0
        %4444 = vmatpush1.bf16.msra.mxu0 %v4441
        %4445 = vmatprep.subr.bf16.mxu0 0
        %4446 = vmatpush1.bf16.msra.mxu0 0
        %4447 = vmatprep.subr.bf16.mxu0 0
        %4448 = vmatpush1.bf16.msra.mxu0 0
        %4449 = vmatprep.subr.bf16.mxu0 0
        %4450 = vmatpush1.bf16.msra.mxu0 0
        %4451 = vmatprep.subr.bf16.mxu0 0
        %4452 = vmatpush1.bf16.msra.mxu0 0
        %4453 = vmatprep.subr.bf16.mxu0 0
        %4454 = vmatpush1.bf16.msra.mxu0 0
        %4455 = vmatprep.subr.bf16.mxu0 0
        %4456 = vmatpush1.bf16.msra.mxu0 0
        %4457 = vmatprep.subr.bf16.mxu0 0
        %4458 = vmatpush1.bf16.msra.mxu0 0
        %4459 = vmatprep.subr.bf16.mxu0 0
        %4460 = vmatpush1.bf16.msra.mxu0 0
        %4461 = vmatprep.subr.bf16.mxu0 0
        %4462 = vmatpush1.bf16.msra.mxu0 0
        %4463 = vmatprep.subr.bf16.mxu0 0
        %4464 = vmatpush1.bf16.msra.mxu0 0
        %4465 = vmatprep.subr.bf16.mxu0 0
        %4466 = vmatpush1.bf16.msra.mxu0 0
        %4467 = vmatprep.subr.bf16.mxu0 0
        %4468 = vmatpush1.bf16.msra.mxu0 0
        %4469 = vmatprep.subr.bf16.mxu0 0
        %4470 = vmatpush1.bf16.msra.mxu0 0
        %4471 = vmatprep.subr.bf16.mxu0 0
        %4472 = vmatpush1.bf16.msra.mxu0 0
        %4473 = vmatprep.subr.bf16.mxu0 0
        %4474 = vmatpush1.bf16.msra.mxu0 0
        %4475 = vmatprep.mubr.bf16.mxu0 0
        %4476 = vmatmul.mubr.bf16.gmra.mrb[0].mxu0 %v3779
        %v4477 = vpop.f32.mrb[0].mxu0
        %v4478 = vadd.f32 0.0, %v4477
        %v4479 = vpop.f32.mrb[0].mxu0
        %v4480 = vpop.f32.mrb[0].mxu0
        %v4481 = vadd.f32 0.0, %v4480
        %v4482 = vpop.f32.mrb[0].mxu0
        %4483 = vmatprep.mubr.bf16.mxu0 0
        %4484 = vmatmul.mubr.bf16.gmra.mrb[0].mxu0 %v3782
        %v4485 = vpop.f32.mrb[0].mxu0
        %v4486 = vadd.f32 0.0, %v4485
        %v4487 = vpop.f32.mrb[0].mxu0
        %v4488 = vpop.f32.mrb[0].mxu0
        %v4489 = vadd.f32 0.0, %v4488
        %v4490 = vpop.f32.mrb[0].mxu0
        %4491 = vmatprep.mubr.bf16.mxu0 0
        %4492 = vmatmul.mubr.bf16.gmra.mrb[0].mxu0 %v3785
        %v4493 = vpop.f32.mrb[0].mxu0
        %v4494 = vadd.f32 0.0, %v4493
        %v4495 = vpop.f32.mrb[0].mxu0
        %v4496 = vpop.f32.mrb[0].mxu0
        %v4497 = vadd.f32 0.0, %v4496
        %v4498 = vpop.f32.mrb[0].mxu0
        %4499 = vmatprep.mubr.bf16.mxu0 0
        %4500 = vmatmul.mubr.bf16.gmra.mrb[0].mxu0 %v3788
        %v4501 = vpop.f32.mrb[0].mxu0
        %v4502 = vadd.f32 0.0, %v4501
        %v4503 = vpop.f32.mrb[0].mxu0
        %v4504 = vpop.f32.mrb[0].mxu0
        %v4505 = vadd.f32 0.0, %v4504
        %v4506 = vpop.f32.mrb[0].mxu0
        %4507 = vmatprep.mubr.bf16.mxu0 0
        %4508 = vmatmul.mubr.bf16.gmra.mrb[0].mxu0 %v3791
        %v4509 = vpop.f32.mrb[0].mxu0
        %v4510 = vadd.f32 0.0, %v4509
        %v4511 = vpop.f32.mrb[0].mxu0
        %v4512 = vpop.f32.mrb[0].mxu0
        %v4513 = vadd.f32 0.0, %v4512
        %v4514 = vpop.f32.mrb[0].mxu0
        %4515 = vmatprep.mubr.bf16.mxu0 0
        %4516 = vmatmul.mubr.bf16.gmra.mrb[0].mxu0 %v3794
        %v4517 = vpop.f32.mrb[0].mxu0
        %v4518 = vadd.f32 0.0, %v4517
        %v4519 = vpop.f32.mrb[0].mxu0
        %v4520 = vpop.f32.mrb[0].mxu0
        %v4521 = vadd.f32 0.0, %v4520
        %v4522 = vpop.f32.mrb[0].mxu0
        %4523 = vmatprep.mubr.bf16.mxu0 0
        %4524 = vmatmul.mubr.bf16.gmra.mrb[0].mxu0 %v3797
        %v4525 = vpop.f32.mrb[0].mxu0
        %v4526 = vadd.f32 0.0, %v4525
        %v4527 = vpop.f32.mrb[0].mxu0
        %v4528 = vpop.f32.mrb[0].mxu0
        %v4529 = vadd.f32 0.0, %v4528
        %v4530 = vpop.f32.mrb[0].mxu0
        %4531 = vmatprep.mubr.bf16.mxu0 0
        %4532 = vmatmul.mubr.bf16.gmra.mrb[0].mxu0 %v3800
        %v4533 = vpop.f32.mrb[0].mxu0
        %v4534 = vadd.f32 0.0, %v4533
        %v4535 = vpop.f32.mrb[0].mxu0
        %v4536 = vpop.f32.mrb[0].mxu0
        %v4537 = vadd.f32 0.0, %v4536
        %v4538 = vpop.f32.mrb[0].mxu0
        %4539 = vmatprep.mubr.bf16.mxu0 0
        %4540 = vmatmul.mubr.bf16.gmra.mrb[0].mxu0 %v3803
        %v4541 = vpop.f32.mrb[0].mxu0
        %v4542 = vadd.f32 0.0, %v4541
        %v4543 = vpop.f32.mrb[0].mxu0
        %v4544 = vpop.f32.mrb[0].mxu0
        %v4545 = vadd.f32 0.0, %v4544
        %v4546 = vpop.f32.mrb[0].mxu0
        %4547 = vmatprep.mubr.bf16.mxu0 0
        %4548 = vmatmul.mubr.bf16.gmra.mrb[0].mxu0 %v3806
        %v4549 = vpop.f32.mrb[0].mxu0
        %v4550 = vadd.f32 0.0, %v4549
        %v4551 = vpop.f32.mrb[0].mxu0
        %v4552 = vpop.f32.mrb[0].mxu0
        %v4553 = vadd.f32 0.0, %v4552
        %v4554 = vpop.f32.mrb[0].mxu0
        %4555 = vmatprep.mubr.bf16.mxu0 0
        %4556 = vmatmul.mubr.bf16.gmra.mrb[0].mxu0 %v3809
        %v4557 = vpop.f32.mrb[0].mxu0
        %v4558 = vadd.f32 0.0, %v4557
        %v4559 = vpop.f32.mrb[0].mxu0
        %v4560 = vpop.f32.mrb[0].mxu0
        %v4561 = vadd.f32 0.0, %v4560
        %v4562 = vpop.f32.mrb[0].mxu0
        %4563 = vmatprep.mubr.bf16.mxu0 0
        %4564 = vmatmul.mubr.bf16.gmra.mrb[0].mxu0 %v3812
        %v4565 = vpop.f32.mrb[0].mxu0
        %v4566 = vadd.f32 0.0, %v4565
        %v4567 = vpop.f32.mrb[0].mxu0
        %v4568 = vpop.f32.mrb[0].mxu0
        %v4569 = vadd.f32 0.0, %v4568
        %v4570 = vpop.f32.mrb[0].mxu0
        %4571 = vmatprep.mubr.bf16.mxu0 0
        %4572 = vmatmul.mubr.bf16.gmra.mrb[0].mxu0 %v3815
        %v4573 = vpop.f32.mrb[0].mxu0
        %v4574 = vadd.f32 0.0, %v4573
        %v4575 = vpop.f32.mrb[0].mxu0
        %v4576 = vpop.f32.mrb[0].mxu0
        %v4577 = vadd.f32 0.0, %v4576
        %v4578 = vpop.f32.mrb[0].mxu0
        %4579 = vmatprep.mubr.bf16.mxu0 0
        %4580 = vmatmul.mubr.bf16.gmra.mrb[0].mxu0 %v3818
        %v4581 = vpop.f32.mrb[0].mxu0
        %v4582 = vadd.f32 0.0, %v4581
        %v4583 = vpop.f32.mrb[0].mxu0
        %v4584 = vpop.f32.mrb[0].mxu0
        %v4585 = vadd.f32 0.0, %v4584
        %v4586 = vpop.f32.mrb[0].mxu0
        %4587 = vmatprep.mubr.bf16.mxu0 0
        %4588 = vmatmul.mubr.bf16.gmra.mrb[0].mxu0 %v3821
        %v4589 = vpop.f32.mrb[0].mxu0
        %v4590 = vadd.f32 0.0, %v4589
        %v4591 = vpop.f32.mrb[0].mxu0
        %v4592 = vpop.f32.mrb[0].mxu0
        %v4593 = vadd.f32 0.0, %v4592
        %v4594 = vpop.f32.mrb[0].mxu0
        %4595 = vmatprep.mubr.bf16.mxu0 0
        %4596 = vmatmul.mubr.bf16.gmra.mrb[0].mxu0 %v4438
        %v4597 = vpop.f32.mrb[0].mxu0
        %v4598 = vadd.f32 0.0, %v4597
        %v4599 = vpop.f32.mrb[0].mxu0
        %v4600 = vpop.f32.mrb[0].mxu0
        %v4601 = vadd.f32 0.0, %v4600
        %v4602 = vpop.f32.mrb[0].mxu0
        %4603 = vdwg.mxu0
        %v4604 = vadd.f32 %v4397, %v4478
        %v4605 = vadd.f32 %v4398, %v4481
        %v4606 = vadd.f32 %v4399, %v4486
        %v4607 = vadd.f32 %v4400, %v4489
        %v4608 = vadd.f32 %v4401, %v4494
        %v4609 = vadd.f32 %v4402, %v4497
        %v4610 = vadd.f32 %v4403, %v4502
        %v4611 = vadd.f32 %v4404, %v4505
        %v4612 = vadd.f32 %v4405, %v4510
        %v4613 = vadd.f32 %v4406, %v4513
        %v4614 = vadd.f32 %v4407, %v4518
        %v4615 = vadd.f32 %v4408, %v4521
        %v4616 = vadd.f32 %v4409, %v4526
        %v4617 = vadd.f32 %v4410, %v4529
        %v4618 = vadd.f32 %v4411, %v4534
        %v4619 = vadd.f32 %v4412, %v4537
        %v4620 = vadd.f32 %v4413, %v4542
        %v4621 = vadd.f32 %v4414, %v4545
        %v4622 = vadd.f32 %v4415, %v4550
        %v4623 = vadd.f32 %v4416, %v4553
        %v4624 = vadd.f32 %v4417, %v4558
        %v4625 = vadd.f32 %v4418, %v4561
        %v4626 = vadd.f32 %v4419, %v4566
        %v4627 = vadd.f32 %v4420, %v4569
        %v4628 = vadd.f32 %v4421, %v4574
        %v4629 = vadd.f32 %v4422, %v4577
        %v4630 = vadd.f32 %v4423, %v4582
        %v4631 = vadd.f32 %v4424, %v4585
        %v4632 = vadd.f32 %v4425, %v4590
        %v4633 = vadd.f32 %v4426, %v4593
        %v4634 = vadd.f32 %v4427, %v4598
        %v4635 = vadd.f32 %v4428, %v4601
        %v4636 = vpack.c.bf16 %v3020, %v3019
        %v4638 = vsel %vm219, %v4636, 0
        %v4641 = vsel %vm677, %v3028, 0
        %4643 = vmatprep.subr.bf16.mxu0 0
        %4644 = vmatpush1.bf16.msra.mxu0 %v4641
        %4645 = vmatprep.subr.bf16.mxu0 0
        %4646 = vmatpush1.bf16.msra.mxu0 0
        %4647 = vmatprep.subr.bf16.mxu0 0
        %4648 = vmatpush1.bf16.msra.mxu0 0
        %4649 = vmatprep.subr.bf16.mxu0 0
        %4650 = vmatpush1.bf16.msra.mxu0 0
        %4651 = vmatprep.subr.bf16.mxu0 0
        %4652 = vmatpush1.bf16.msra.mxu0 0
        %4653 = vmatprep.subr.bf16.mxu0 0
        %4654 = vmatpush1.bf16.msra.mxu0 0
        %4655 = vmatprep.subr.bf16.mxu0 0
        %4656 = vmatpush1.bf16.msra.mxu0 0
        %4657 = vmatprep.subr.bf16.mxu0 0
        %4658 = vmatpush1.bf16.msra.mxu0 0
        %4659 = vmatprep.subr.bf16.mxu0 0
        %4660 = vmatpush1.bf16.msra.mxu0 0
        %4661 = vmatprep.subr.bf16.mxu0 0
        %4662 = vmatpush1.bf16.msra.mxu0 0
        %4663 = vmatprep.subr.bf16.mxu0 0
        %4664 = vmatpush1.bf16.msra.mxu0 0
        %4665 = vmatprep.subr.bf16.mxu0 0
        %4666 = vmatpush1.bf16.msra.mxu0 0
        %4667 = vmatprep.subr.bf16.mxu0 0
        %4668 = vmatpush1.bf16.msra.mxu0 0
        %4669 = vmatprep.subr.bf16.mxu0 0
        %4670 = vmatpush1.bf16.msra.mxu0 0
        %4671 = vmatprep.subr.bf16.mxu0 0
        %4672 = vmatpush1.bf16.msra.mxu0 0
        %4673 = vmatprep.subr.bf16.mxu0 0
        %4674 = vmatpush1.bf16.msra.mxu0 0
        %4675 = vmatprep.mubr.bf16.mxu0 0
        %4676 = vmatmul.mubr.bf16.gmra.mrb[0].mxu0 %v3442
        %v4677 = vpop.f32.mrb[0].mxu0
        %v4678 = vadd.f32 0.0, %v4677
        %v4679 = vpop.f32.mrb[0].mxu0
        %v4680 = vpop.f32.mrb[0].mxu0
        %v4681 = vadd.f32 0.0, %v4680
        %v4682 = vpop.f32.mrb[0].mxu0
        %4683 = vmatprep.mubr.bf16.mxu0 0
        %4684 = vmatmul.mubr.bf16.gmra.mrb[0].mxu0 %v3445
        %v4685 = vpop.f32.mrb[0].mxu0
        %v4686 = vadd.f32 0.0, %v4685
        %v4687 = vpop.f32.mrb[0].mxu0
        %v4688 = vpop.f32.mrb[0].mxu0
        %v4689 = vadd.f32 0.0, %v4688
        %v4690 = vpop.f32.mrb[0].mxu0
        %4691 = vmatprep.mubr.bf16.mxu0 0
        %4692 = vmatmul.mubr.bf16.gmra.mrb[0].mxu0 %v3448
        %v4693 = vpop.f32.mrb[0].mxu0
        %v4694 = vadd.f32 0.0, %v4693
        %v4695 = vpop.f32.mrb[0].mxu0
        %v4696 = vpop.f32.mrb[0].mxu0
        %v4697 = vadd.f32 0.0, %v4696
        %v4698 = vpop.f32.mrb[0].mxu0
        %4699 = vmatprep.mubr.bf16.mxu0 0
        %4700 = vmatmul.mubr.bf16.gmra.mrb[0].mxu0 %v3451
        %v4701 = vpop.f32.mrb[0].mxu0
        %v4702 = vadd.f32 0.0, %v4701
        %v4703 = vpop.f32.mrb[0].mxu0
        %v4704 = vpop.f32.mrb[0].mxu0
        %v4705 = vadd.f32 0.0, %v4704
        %v4706 = vpop.f32.mrb[0].mxu0
        %4707 = vmatprep.mubr.bf16.mxu0 0
        %4708 = vmatmul.mubr.bf16.gmra.mrb[0].mxu0 %v3454
        %v4709 = vpop.f32.mrb[0].mxu0
        %v4710 = vadd.f32 0.0, %v4709
        %v4711 = vpop.f32.mrb[0].mxu0
        %v4712 = vpop.f32.mrb[0].mxu0
        %v4713 = vadd.f32 0.0, %v4712
        %v4714 = vpop.f32.mrb[0].mxu0
        %4715 = vmatprep.mubr.bf16.mxu0 0
        %4716 = vmatmul.mubr.bf16.gmra.mrb[0].mxu0 %v3457
        %v4717 = vpop.f32.mrb[0].mxu0
        %v4718 = vadd.f32 0.0, %v4717
        %v4719 = vpop.f32.mrb[0].mxu0
        %v4720 = vpop.f32.mrb[0].mxu0
        %v4721 = vadd.f32 0.0, %v4720
        %v4722 = vpop.f32.mrb[0].mxu0
        %4723 = vmatprep.mubr.bf16.mxu0 0
        %4724 = vmatmul.mubr.bf16.gmra.mrb[0].mxu0 %v3460
        %v4725 = vpop.f32.mrb[0].mxu0
        %v4726 = vadd.f32 0.0, %v4725
        %v4727 = vpop.f32.mrb[0].mxu0
        %v4728 = vpop.f32.mrb[0].mxu0
        %v4729 = vadd.f32 0.0, %v4728
        %v4730 = vpop.f32.mrb[0].mxu0
        %4731 = vmatprep.mubr.bf16.mxu0 0
        %4732 = vmatmul.mubr.bf16.gmra.mrb[0].mxu0 %v3463
        %v4733 = vpop.f32.mrb[0].mxu0
        %v4734 = vadd.f32 0.0, %v4733
        %v4735 = vpop.f32.mrb[0].mxu0
        %v4736 = vpop.f32.mrb[0].mxu0
        %v4737 = vadd.f32 0.0, %v4736
        %v4738 = vpop.f32.mrb[0].mxu0
        %4739 = vmatprep.mubr.bf16.mxu0 0
        %4740 = vmatmul.mubr.bf16.gmra.mrb[0].mxu0 %v3466
        %v4741 = vpop.f32.mrb[0].mxu0
        %v4742 = vadd.f32 0.0, %v4741
        %v4743 = vpop.f32.mrb[0].mxu0
        %v4744 = vpop.f32.mrb[0].mxu0
        %v4745 = vadd.f32 0.0, %v4744
        %v4746 = vpop.f32.mrb[0].mxu0
        %4747 = vmatprep.mubr.bf16.mxu0 0
        %4748 = vmatmul.mubr.bf16.gmra.mrb[0].mxu0 %v3469
        %v4749 = vpop.f32.mrb[0].mxu0
        %v4750 = vadd.f32 0.0, %v4749
        %v4751 = vpop.f32.mrb[0].mxu0
        %v4752 = vpop.f32.mrb[0].mxu0
        %v4753 = vadd.f32 0.0, %v4752
        %v4754 = vpop.f32.mrb[0].mxu0
        %4755 = vmatprep.mubr.bf16.mxu0 0
        %4756 = vmatmul.mubr.bf16.gmra.mrb[0].mxu0 %v3472
        %v4757 = vpop.f32.mrb[0].mxu0
        %v4758 = vadd.f32 0.0, %v4757
        %v4759 = vpop.f32.mrb[0].mxu0
        %v4760 = vpop.f32.mrb[0].mxu0
        %v4761 = vadd.f32 0.0, %v4760
        %v4762 = vpop.f32.mrb[0].mxu0
        %4763 = vmatprep.mubr.bf16.mxu0 0
        %4764 = vmatmul.mubr.bf16.gmra.mrb[0].mxu0 %v3475
        %v4765 = vpop.f32.mrb[0].mxu0
        %v4766 = vadd.f32 0.0, %v4765
        %v4767 = vpop.f32.mrb[0].mxu0
        %v4768 = vpop.f32.mrb[0].mxu0
        %v4769 = vadd.f32 0.0, %v4768
        %v4770 = vpop.f32.mrb[0].mxu0
        %4771 = vmatprep.mubr.bf16.mxu0 0
        %4772 = vmatmul.mubr.bf16.gmra.mrb[0].mxu0 %v3478
        %v4773 = vpop.f32.mrb[0].mxu0
        %v4774 = vadd.f32 0.0, %v4773
        %v4775 = vpop.f32.mrb[0].mxu0
        %v4776 = vpop.f32.mrb[0].mxu0
        %v4777 = vadd.f32 0.0, %v4776
        %v4778 = vpop.f32.mrb[0].mxu0
        %4779 = vmatprep.mubr.bf16.mxu0 0
        %4780 = vmatmul.mubr.bf16.gmra.mrb[0].mxu0 %v3481
        %v4781 = vpop.f32.mrb[0].mxu0
        %v4782 = vadd.f32 0.0, %v4781
        %v4783 = vpop.f32.mrb[0].mxu0
        %v4784 = vpop.f32.mrb[0].mxu0
        %v4785 = vadd.f32 0.0, %v4784
        %v4786 = vpop.f32.mrb[0].mxu0
        %4787 = vmatprep.mubr.bf16.mxu0 0
        %4788 = vmatmul.mubr.bf16.gmra.mrb[0].mxu0 %v4021
        %v4789 = vpop.f32.mrb[0].mxu0
        %v4790 = vadd.f32 0.0, %v4789
        %v4791 = vpop.f32.mrb[0].mxu0
        %v4792 = vpop.f32.mrb[0].mxu0
        %v4793 = vadd.f32 0.0, %v4792
        %v4794 = vpop.f32.mrb[0].mxu0
        %4795 = vmatprep.mubr.bf16.mxu0 0
        %4796 = vmatmul.mubr.bf16.gmra.mrb[0].mxu0 %v4638
        %v4797 = vpop.f32.mrb[0].mxu0
        %v4798 = vadd.f32 0.0, %v4797
        %v4799 = vpop.f32.mrb[0].mxu0
        %v4800 = vpop.f32.mrb[0].mxu0
        %v4801 = vadd.f32 0.0, %v4800
        %v4802 = vpop.f32.mrb[0].mxu0
        %4803 = vdwg.mxu0
        %v4804 = vadd.f32 %v4604, %v4678
        %v4805 = vadd.f32 %v4605, %v4681
        %v4806 = vadd.f32 %v4606, %v4686
        %v4807 = vadd.f32 %v4607, %v4689
        %v4808 = vadd.f32 %v4608, %v4694
        %v4809 = vadd.f32 %v4609, %v4697
        %v4810 = vadd.f32 %v4610, %v4702
        %v4811 = vadd.f32 %v4611, %v4705
        %v4812 = vadd.f32 %v4612, %v4710
        %v4813 = vadd.f32 %v4613, %v4713
        %v4814 = vadd.f32 %v4614, %v4718
        %v4815 = vadd.f32 %v4615, %v4721
        %v4816 = vadd.f32 %v4616, %v4726
        %v4817 = vadd.f32 %v4617, %v4729
        %v4818 = vadd.f32 %v4618, %v4734
        %v4819 = vadd.f32 %v4619, %v4737
        %v4820 = vadd.f32 %v4620, %v4742
        %v4821 = vadd.f32 %v4621, %v4745
        %v4822 = vadd.f32 %v4622, %v4750
        %v4823 = vadd.f32 %v4623, %v4753
        %v4824 = vadd.f32 %v4624, %v4758
        %v4825 = vadd.f32 %v4625, %v4761
        %v4826 = vadd.f32 %v4626, %v4766
        %v4827 = vadd.f32 %v4627, %v4769
        %v4828 = vadd.f32 %v4628, %v4774
        %v4829 = vadd.f32 %v4629, %v4777
        %v4830 = vadd.f32 %v4630, %v4782
        %v4831 = vadd.f32 %v4631, %v4785
        %v4832 = vadd.f32 %v4632, %v4790
        %v4833 = vadd.f32 %v4633, %v4793
        %v4834 = vadd.f32 %v4634, %v4798
        %v4835 = vadd.f32 %v4635, %v4801
        %v4839 = vrot.slane %v3019, 1
        %v4840 = vrot.slane %v3020, 1
        %v4841 = vsel %vm500, %v4839, %v4840
        %v4842 = vrot.slane %v3021, 1
        %v4843 = vsel %vm500, %v4840, %v4842
        %v4846 = vpack.c.bf16 %v4843, %v4841
        %v4848 = vsel %vm219, %v4846, 0
        %v4851 = vsel %vm677, %v3029, 0
        %4853 = vmatprep.subr.bf16.mxu0 0
        %4854 = vmatpush1.bf16.msra.mxu0 %v4851
        %4855 = vmatprep.subr.bf16.mxu0 0
        %4856 = vmatpush1.bf16.msra.mxu0 0
        %4857 = vmatprep.subr.bf16.mxu0 0
        %4858 = vmatpush1.bf16.msra.mxu0 0
        %4859 = vmatprep.subr.bf16.mxu0 0
        %4860 = vmatpush1.bf16.msra.mxu0 0
        %4861 = vmatprep.subr.bf16.mxu0 0
        %4862 = vmatpush1.bf16.msra.mxu0 0
        %4863 = vmatprep.subr.bf16.mxu0 0
        %4864 = vmatpush1.bf16.msra.mxu0 0
        %4865 = vmatprep.subr.bf16.mxu0 0
        %4866 = vmatpush1.bf16.msra.mxu0 0
        %4867 = vmatprep.subr.bf16.mxu0 0
        %4868 = vmatpush1.bf16.msra.mxu0 0
        %4869 = vmatprep.subr.bf16.mxu0 0
        %4870 = vmatpush1.bf16.msra.mxu0 0
        %4871 = vmatprep.subr.bf16.mxu0 0
        %4872 = vmatpush1.bf16.msra.mxu0 0
        %4873 = vmatprep.subr.bf16.mxu0 0
        %4874 = vmatpush1.bf16.msra.mxu0 0
        %4875 = vmatprep.subr.bf16.mxu0 0
        %4876 = vmatpush1.bf16.msra.mxu0 0
        %4877 = vmatprep.subr.bf16.mxu0 0
        %4878 = vmatpush1.bf16.msra.mxu0 0
        %4879 = vmatprep.subr.bf16.mxu0 0
        %4880 = vmatpush1.bf16.msra.mxu0 0
        %4881 = vmatprep.subr.bf16.mxu0 0
        %4882 = vmatpush1.bf16.msra.mxu0 0
        %4883 = vmatprep.subr.bf16.mxu0 0
        %4884 = vmatpush1.bf16.msra.mxu0 0
        %4885 = vmatprep.mubr.bf16.mxu0 0
        %4886 = vmatmul.mubr.bf16.gmra.mrb[0].mxu0 %v3230
        %v4887 = vpop.f32.mrb[0].mxu0
        %v4888 = vadd.f32 0.0, %v4887
        %v4889 = vpop.f32.mrb[0].mxu0
        %v4890 = vpop.f32.mrb[0].mxu0
        %v4891 = vadd.f32 0.0, %v4890
        %v4892 = vpop.f32.mrb[0].mxu0
        %4893 = vmatprep.mubr.bf16.mxu0 0
        %4894 = vmatmul.mubr.bf16.gmra.mrb[0].mxu0 %v3233
        %v4895 = vpop.f32.mrb[0].mxu0
        %v4896 = vadd.f32 0.0, %v4895
        %v4897 = vpop.f32.mrb[0].mxu0
        %v4898 = vpop.f32.mrb[0].mxu0
        %v4899 = vadd.f32 0.0, %v4898
        %v4900 = vpop.f32.mrb[0].mxu0
        %4901 = vmatprep.mubr.bf16.mxu0 0
        %4902 = vmatmul.mubr.bf16.gmra.mrb[0].mxu0 %v3236
        %v4903 = vpop.f32.mrb[0].mxu0
        %v4904 = vadd.f32 0.0, %v4903
        %v4905 = vpop.f32.mrb[0].mxu0
        %v4906 = vpop.f32.mrb[0].mxu0
        %v4907 = vadd.f32 0.0, %v4906
        %v4908 = vpop.f32.mrb[0].mxu0
        %4909 = vmatprep.mubr.bf16.mxu0 0
        %4910 = vmatmul.mubr.bf16.gmra.mrb[0].mxu0 %v3239
        %v4911 = vpop.f32.mrb[0].mxu0
        %v4912 = vadd.f32 0.0, %v4911
        %v4913 = vpop.f32.mrb[0].mxu0
        %v4914 = vpop.f32.mrb[0].mxu0
        %v4915 = vadd.f32 0.0, %v4914
        %v4916 = vpop.f32.mrb[0].mxu0
        %4917 = vmatprep.mubr.bf16.mxu0 0
        %4918 = vmatmul.mubr.bf16.gmra.mrb[0].mxu0 %v3242
        %v4919 = vpop.f32.mrb[0].mxu0
        %v4920 = vadd.f32 0.0, %v4919
        %v4921 = vpop.f32.mrb[0].mxu0
        %v4922 = vpop.f32.mrb[0].mxu0
        %v4923 = vadd.f32 0.0, %v4922
        %v4924 = vpop.f32.mrb[0].mxu0
        %4925 = vmatprep.mubr.bf16.mxu0 0
        %4926 = vmatmul.mubr.bf16.gmra.mrb[0].mxu0 %v3245
        %v4927 = vpop.f32.mrb[0].mxu0
        %v4928 = vadd.f32 0.0, %v4927
        %v4929 = vpop.f32.mrb[0].mxu0
        %v4930 = vpop.f32.mrb[0].mxu0
        %v4931 = vadd.f32 0.0, %v4930
        %v4932 = vpop.f32.mrb[0].mxu0
        %4933 = vmatprep.mubr.bf16.mxu0 0
        %4934 = vmatmul.mubr.bf16.gmra.mrb[0].mxu0 %v3248
        %v4935 = vpop.f32.mrb[0].mxu0
        %v4936 = vadd.f32 0.0, %v4935
        %v4937 = vpop.f32.mrb[0].mxu0
        %v4938 = vpop.f32.mrb[0].mxu0
        %v4939 = vadd.f32 0.0, %v4938
        %v4940 = vpop.f32.mrb[0].mxu0
        %4941 = vmatprep.mubr.bf16.mxu0 0
        %4942 = vmatmul.mubr.bf16.gmra.mrb[0].mxu0 %v3251
        %v4943 = vpop.f32.mrb[0].mxu0
        %v4944 = vadd.f32 0.0, %v4943
        %v4945 = vpop.f32.mrb[0].mxu0
        %v4946 = vpop.f32.mrb[0].mxu0
        %v4947 = vadd.f32 0.0, %v4946
        %v4948 = vpop.f32.mrb[0].mxu0
        %4949 = vmatprep.mubr.bf16.mxu0 0
        %4950 = vmatmul.mubr.bf16.gmra.mrb[0].mxu0 %v3254
        %v4951 = vpop.f32.mrb[0].mxu0
        %v4952 = vadd.f32 0.0, %v4951
        %v4953 = vpop.f32.mrb[0].mxu0
        %v4954 = vpop.f32.mrb[0].mxu0
        %v4955 = vadd.f32 0.0, %v4954
        %v4956 = vpop.f32.mrb[0].mxu0
        %4957 = vmatprep.mubr.bf16.mxu0 0
        %4958 = vmatmul.mubr.bf16.gmra.mrb[0].mxu0 %v3257
        %v4959 = vpop.f32.mrb[0].mxu0
        %v4960 = vadd.f32 0.0, %v4959
        %v4961 = vpop.f32.mrb[0].mxu0
        %v4962 = vpop.f32.mrb[0].mxu0
        %v4963 = vadd.f32 0.0, %v4962
        %v4964 = vpop.f32.mrb[0].mxu0
        %4965 = vmatprep.mubr.bf16.mxu0 0
        %4966 = vmatmul.mubr.bf16.gmra.mrb[0].mxu0 %v3260
        %v4967 = vpop.f32.mrb[0].mxu0
        %v4968 = vadd.f32 0.0, %v4967
        %v4969 = vpop.f32.mrb[0].mxu0
        %v4970 = vpop.f32.mrb[0].mxu0
        %v4971 = vadd.f32 0.0, %v4970
        %v4972 = vpop.f32.mrb[0].mxu0
        %4973 = vmatprep.mubr.bf16.mxu0 0
        %4974 = vmatmul.mubr.bf16.gmra.mrb[0].mxu0 %v3263
        %v4975 = vpop.f32.mrb[0].mxu0
        %v4976 = vadd.f32 0.0, %v4975
        %v4977 = vpop.f32.mrb[0].mxu0
        %v4978 = vpop.f32.mrb[0].mxu0
        %v4979 = vadd.f32 0.0, %v4978
        %v4980 = vpop.f32.mrb[0].mxu0
        %4981 = vmatprep.mubr.bf16.mxu0 0
        %4982 = vmatmul.mubr.bf16.gmra.mrb[0].mxu0 %v3266
        %v4983 = vpop.f32.mrb[0].mxu0
        %v4984 = vadd.f32 0.0, %v4983
        %v4985 = vpop.f32.mrb[0].mxu0
        %v4986 = vpop.f32.mrb[0].mxu0
        %v4987 = vadd.f32 0.0, %v4986
        %v4988 = vpop.f32.mrb[0].mxu0
        %4989 = vmatprep.mubr.bf16.mxu0 0
        %4990 = vmatmul.mubr.bf16.gmra.mrb[0].mxu0 %v3269
        %v4991 = vpop.f32.mrb[0].mxu0
        %v4992 = vadd.f32 0.0, %v4991
        %v4993 = vpop.f32.mrb[0].mxu0
        %v4994 = vpop.f32.mrb[0].mxu0
        %v4995 = vadd.f32 0.0, %v4994
        %v4996 = vpop.f32.mrb[0].mxu0
        %4997 = vmatprep.mubr.bf16.mxu0 0
        %4998 = vmatmul.mubr.bf16.gmra.mrb[0].mxu0 %v4231
        %v4999 = vpop.f32.mrb[0].mxu0
        %v5000 = vadd.f32 0.0, %v4999
        %v5001 = vpop.f32.mrb[0].mxu0
        %v5002 = vpop.f32.mrb[0].mxu0
        %v5003 = vadd.f32 0.0, %v5002
        %v5004 = vpop.f32.mrb[0].mxu0
        %5005 = vmatprep.mubr.bf16.mxu0 0
        %5006 = vmatmul.mubr.bf16.gmra.mrb[0].mxu0 %v4848
        %v5007 = vpop.f32.mrb[0].mxu0
        %v5008 = vadd.f32 0.0, %v5007
        %v5009 = vpop.f32.mrb[0].mxu0
        %v5010 = vpop.f32.mrb[0].mxu0
        %v5011 = vadd.f32 0.0, %v5010
        %v5012 = vpop.f32.mrb[0].mxu0
        %5013 = vdwg.mxu0
        %v5014 = vadd.f32 %v4804, %v4888
        %v5015 = vadd.f32 %v4805, %v4891
        %v5016 = vadd.f32 %v4806, %v4896
        %v5017 = vadd.f32 %v4807, %v4899
        %v5018 = vadd.f32 %v4808, %v4904
        %v5019 = vadd.f32 %v4809, %v4907
        %v5020 = vadd.f32 %v4810, %v4912
        %v5021 = vadd.f32 %v4811, %v4915
        %v5022 = vadd.f32 %v4812, %v4920
        %v5023 = vadd.f32 %v4813, %v4923
        %v5024 = vadd.f32 %v4814, %v4928
        %v5025 = vadd.f32 %v4815, %v4931
        %v5026 = vadd.f32 %v4816, %v4936
        %v5027 = vadd.f32 %v4817, %v4939
        %v5028 = vadd.f32 %v4818, %v4944
        %v5029 = vadd.f32 %v4819, %v4947
        %v5030 = vadd.f32 %v4820, %v4952
        %v5031 = vadd.f32 %v4821, %v4955
        %v5032 = vadd.f32 %v4822, %v4960
        %v5033 = vadd.f32 %v4823, %v4963
        %v5034 = vadd.f32 %v4824, %v4968
        %v5035 = vadd.f32 %v4825, %v4971
        %v5036 = vadd.f32 %v4826, %v4976
        %v5037 = vadd.f32 %v4827, %v4979
        %v5038 = vadd.f32 %v4828, %v4984
        %v5039 = vadd.f32 %v4829, %v4987
        %v5040 = vadd.f32 %v4830, %v4992
        %v5041 = vadd.f32 %v4831, %v4995
        %v5042 = vadd.f32 %v4832, %v5000
        %v5043 = vadd.f32 %v4833, %v5003
        %v5044 = vadd.f32 %v4834, %v5008
        %v5045 = vadd.f32 %v4835, %v5011
        %v5046 = vrot.slane %v3019, 2
        %v5047 = vrot.slane %v3020, 2
        %v5048 = vsel %vm1054, %v5046, %v5047
        %v5049 = vrot.slane %v3021, 2
        %v5050 = vsel %vm1054, %v5047, %v5049
        %v5053 = vpack.c.bf16 %v5050, %v5048
        %v5055 = vsel %vm219, %v5053, 0
        %v5058 = vsel %vm677, %v3030, 0
        %5060 = vmatprep.subr.bf16.mxu0 0
        %5061 = vmatpush1.bf16.msra.mxu0 %v5058
        %5062 = vmatprep.subr.bf16.mxu0 0
        %5063 = vmatpush1.bf16.msra.mxu0 0
        %5064 = vmatprep.subr.bf16.mxu0 0
        %5065 = vmatpush1.bf16.msra.mxu0 0
        %5066 = vmatprep.subr.bf16.mxu0 0
        %5067 = vmatpush1.bf16.msra.mxu0 0
        %5068 = vmatprep.subr.bf16.mxu0 0
        %5069 = vmatpush1.bf16.msra.mxu0 0
        %5070 = vmatprep.subr.bf16.mxu0 0
        %5071 = vmatpush1.bf16.msra.mxu0 0
        %5072 = vmatprep.subr.bf16.mxu0 0
        %5073 = vmatpush1.bf16.msra.mxu0 0
        %5074 = vmatprep.subr.bf16.mxu0 0
        %5075 = vmatpush1.bf16.msra.mxu0 0
        %5076 = vmatprep.subr.bf16.mxu0 0
        %5077 = vmatpush1.bf16.msra.mxu0 0
        %5078 = vmatprep.subr.bf16.mxu0 0
        %5079 = vmatpush1.bf16.msra.mxu0 0
        %5080 = vmatprep.subr.bf16.mxu0 0
        %5081 = vmatpush1.bf16.msra.mxu0 0
        %5082 = vmatprep.subr.bf16.mxu0 0
        %5083 = vmatpush1.bf16.msra.mxu0 0
        %5084 = vmatprep.subr.bf16.mxu0 0
        %5085 = vmatpush1.bf16.msra.mxu0 0
        %5086 = vmatprep.subr.bf16.mxu0 0
        %5087 = vmatpush1.bf16.msra.mxu0 0
        %5088 = vmatprep.subr.bf16.mxu0 0
        %5089 = vmatpush1.bf16.msra.mxu0 0
        %5090 = vmatprep.subr.bf16.mxu0 0
        %5091 = vmatpush1.bf16.msra.mxu0 0
        %5092 = vmatprep.mubr.bf16.mxu0 0
        %5093 = vmatmul.mubr.bf16.gmra.mrb[0].mxu0 %v3782
        %v5094 = vpop.f32.mrb[0].mxu0
        %v5095 = vadd.f32 0.0, %v5094
        %v5096 = vpop.f32.mrb[0].mxu0
        %v5097 = vpop.f32.mrb[0].mxu0
        %v5098 = vadd.f32 0.0, %v5097
        %v5099 = vpop.f32.mrb[0].mxu0
        %5100 = vmatprep.mubr.bf16.mxu0 0
        %5101 = vmatmul.mubr.bf16.gmra.mrb[0].mxu0 %v3785
        %v5102 = vpop.f32.mrb[0].mxu0
        %v5103 = vadd.f32 0.0, %v5102
        %v5104 = vpop.f32.mrb[0].mxu0
        %v5105 = vpop.f32.mrb[0].mxu0
        %v5106 = vadd.f32 0.0, %v5105
        %v5107 = vpop.f32.mrb[0].mxu0
        %5108 = vmatprep.mubr.bf16.mxu0 0
        %5109 = vmatmul.mubr.bf16.gmra.mrb[0].mxu0 %v3788
        %v5110 = vpop.f32.mrb[0].mxu0
        %v5111 = vadd.f32 0.0, %v5110
        %v5112 = vpop.f32.mrb[0].mxu0
        %v5113 = vpop.f32.mrb[0].mxu0
        %v5114 = vadd.f32 0.0, %v5113
        %v5115 = vpop.f32.mrb[0].mxu0
        %5116 = vmatprep.mubr.bf16.mxu0 0
        %5117 = vmatmul.mubr.bf16.gmra.mrb[0].mxu0 %v3791
        %v5118 = vpop.f32.mrb[0].mxu0
        %v5119 = vadd.f32 0.0, %v5118
        %v5120 = vpop.f32.mrb[0].mxu0
        %v5121 = vpop.f32.mrb[0].mxu0
        %v5122 = vadd.f32 0.0, %v5121
        %v5123 = vpop.f32.mrb[0].mxu0
        %5124 = vmatprep.mubr.bf16.mxu0 0
        %5125 = vmatmul.mubr.bf16.gmra.mrb[0].mxu0 %v3794
        %v5126 = vpop.f32.mrb[0].mxu0
        %v5127 = vadd.f32 0.0, %v5126
        %v5128 = vpop.f32.mrb[0].mxu0
        %v5129 = vpop.f32.mrb[0].mxu0
        %v5130 = vadd.f32 0.0, %v5129
        %v5131 = vpop.f32.mrb[0].mxu0
        %5132 = vmatprep.mubr.bf16.mxu0 0
        %5133 = vmatmul.mubr.bf16.gmra.mrb[0].mxu0 %v3797
        %v5134 = vpop.f32.mrb[0].mxu0
        %v5135 = vadd.f32 0.0, %v5134
        %v5136 = vpop.f32.mrb[0].mxu0
        %v5137 = vpop.f32.mrb[0].mxu0
        %v5138 = vadd.f32 0.0, %v5137
        %v5139 = vpop.f32.mrb[0].mxu0
        %5140 = vmatprep.mubr.bf16.mxu0 0
        %5141 = vmatmul.mubr.bf16.gmra.mrb[0].mxu0 %v3800
        %v5142 = vpop.f32.mrb[0].mxu0
        %v5143 = vadd.f32 0.0, %v5142
        %v5144 = vpop.f32.mrb[0].mxu0
        %v5145 = vpop.f32.mrb[0].mxu0
        %v5146 = vadd.f32 0.0, %v5145
        %v5147 = vpop.f32.mrb[0].mxu0
        %5148 = vmatprep.mubr.bf16.mxu0 0
        %5149 = vmatmul.mubr.bf16.gmra.mrb[0].mxu0 %v3803
        %v5150 = vpop.f32.mrb[0].mxu0
        %v5151 = vadd.f32 0.0, %v5150
        %v5152 = vpop.f32.mrb[0].mxu0
        %v5153 = vpop.f32.mrb[0].mxu0
        %v5154 = vadd.f32 0.0, %v5153
        %v5155 = vpop.f32.mrb[0].mxu0
        %5156 = vmatprep.mubr.bf16.mxu0 0
        %5157 = vmatmul.mubr.bf16.gmra.mrb[0].mxu0 %v3806
        %v5158 = vpop.f32.mrb[0].mxu0
        %v5159 = vadd.f32 0.0, %v5158
        %v5160 = vpop.f32.mrb[0].mxu0
        %v5161 = vpop.f32.mrb[0].mxu0
        %v5162 = vadd.f32 0.0, %v5161
        %v5163 = vpop.f32.mrb[0].mxu0
        %5164 = vmatprep.mubr.bf16.mxu0 0
        %5165 = vmatmul.mubr.bf16.gmra.mrb[0].mxu0 %v3809
        %v5166 = vpop.f32.mrb[0].mxu0
        %v5167 = vadd.f32 0.0, %v5166
        %v5168 = vpop.f32.mrb[0].mxu0
        %v5169 = vpop.f32.mrb[0].mxu0
        %v5170 = vadd.f32 0.0, %v5169
        %v5171 = vpop.f32.mrb[0].mxu0
        %5172 = vmatprep.mubr.bf16.mxu0 0
        %5173 = vmatmul.mubr.bf16.gmra.mrb[0].mxu0 %v3812
        %v5174 = vpop.f32.mrb[0].mxu0
        %v5175 = vadd.f32 0.0, %v5174
        %v5176 = vpop.f32.mrb[0].mxu0
        %v5177 = vpop.f32.mrb[0].mxu0
        %v5178 = vadd.f32 0.0, %v5177
        %v5179 = vpop.f32.mrb[0].mxu0
        %5180 = vmatprep.mubr.bf16.mxu0 0
        %5181 = vmatmul.mubr.bf16.gmra.mrb[0].mxu0 %v3815
        %v5182 = vpop.f32.mrb[0].mxu0
        %v5183 = vadd.f32 0.0, %v5182
        %v5184 = vpop.f32.mrb[0].mxu0
        %v5185 = vpop.f32.mrb[0].mxu0
        %v5186 = vadd.f32 0.0, %v5185
        %v5187 = vpop.f32.mrb[0].mxu0
        %5188 = vmatprep.mubr.bf16.mxu0 0
        %5189 = vmatmul.mubr.bf16.gmra.mrb[0].mxu0 %v3818
        %v5190 = vpop.f32.mrb[0].mxu0
        %v5191 = vadd.f32 0.0, %v5190
        %v5192 = vpop.f32.mrb[0].mxu0
        %v5193 = vpop.f32.mrb[0].mxu0
        %v5194 = vadd.f32 0.0, %v5193
        %v5195 = vpop.f32.mrb[0].mxu0
        %5196 = vmatprep.mubr.bf16.mxu0 0
        %5197 = vmatmul.mubr.bf16.gmra.mrb[0].mxu0 %v3821
        %v5198 = vpop.f32.mrb[0].mxu0
        %v5199 = vadd.f32 0.0, %v5198
        %v5200 = vpop.f32.mrb[0].mxu0
        %v5201 = vpop.f32.mrb[0].mxu0
        %v5202 = vadd.f32 0.0, %v5201
        %v5203 = vpop.f32.mrb[0].mxu0
        %5204 = vmatprep.mubr.bf16.mxu0 0
        %5205 = vmatmul.mubr.bf16.gmra.mrb[0].mxu0 %v4438
        %v5206 = vpop.f32.mrb[0].mxu0
        %v5207 = vadd.f32 0.0, %v5206
        %v5208 = vpop.f32.mrb[0].mxu0
        %v5209 = vpop.f32.mrb[0].mxu0
        %v5210 = vadd.f32 0.0, %v5209
        %v5211 = vpop.f32.mrb[0].mxu0
        %5212 = vmatprep.mubr.bf16.mxu0 0
        %5213 = vmatmul.mubr.bf16.gmra.mrb[0].mxu0 %v5055
        %v5214 = vpop.f32.mrb[0].mxu0
        %v5215 = vadd.f32 0.0, %v5214
        %v5216 = vpop.f32.mrb[0].mxu0
        %v5217 = vpop.f32.mrb[0].mxu0
        %v5218 = vadd.f32 0.0, %v5217
        %v5219 = vpop.f32.mrb[0].mxu0
        %5220 = vdwg.mxu0
        %v5221 = vadd.f32 %v5014, %v5095
        %v5222 = vadd.f32 %v5015, %v5098
        %v5223 = vadd.f32 %v5016, %v5103
        %v5224 = vadd.f32 %v5017, %v5106
        %v5225 = vadd.f32 %v5018, %v5111
        %v5226 = vadd.f32 %v5019, %v5114
        %v5227 = vadd.f32 %v5020, %v5119
        %v5228 = vadd.f32 %v5021, %v5122
        %v5229 = vadd.f32 %v5022, %v5127
        %v5230 = vadd.f32 %v5023, %v5130
        %v5231 = vadd.f32 %v5024, %v5135
        %v5232 = vadd.f32 %v5025, %v5138
        %v5233 = vadd.f32 %v5026, %v5143
        %v5234 = vadd.f32 %v5027, %v5146
        %v5235 = vadd.f32 %v5028, %v5151
        %v5236 = vadd.f32 %v5029, %v5154
        %v5237 = vadd.f32 %v5030, %v5159
        %v5238 = vadd.f32 %v5031, %v5162
        %v5239 = vadd.f32 %v5032, %v5167
        %v5240 = vadd.f32 %v5033, %v5170
        %v5241 = vadd.f32 %v5034, %v5175
        %v5242 = vadd.f32 %v5035, %v5178
        %v5243 = vadd.f32 %v5036, %v5183
        %v5244 = vadd.f32 %v5037, %v5186
        %v5245 = vadd.f32 %v5038, %v5191
        %v5246 = vadd.f32 %v5039, %v5194
        %v5247 = vadd.f32 %v5040, %v5199
        %v5248 = vadd.f32 %v5041, %v5202
        %v5249 = vadd.f32 %v5042, %v5207
        %v5250 = vadd.f32 %v5043, %v5210
        %v5251 = vadd.f32 %v5044, %v5215
        %v5252 = vadd.f32 %v5045, %v5218
        %v5253 = vsel %vm219, %v5221, 0.0
        %v5254 = vsel %vm219, %v5222, 0.0
        %v5255 = vadd.f32 %v5253, %v5254
        %v5256 = vsel %vm219, %v5223, 0.0
        %v5257 = vadd.f32 %v5255, %v5256
        %v5258 = vsel %vm219, %v5224, 0.0
        %v5259 = vadd.f32 %v5257, %v5258
        %v5260 = vsel %vm219, %v5225, 0.0
        %v5261 = vadd.f32 %v5259, %v5260
        %v5262 = vsel %vm219, %v5226, 0.0
        %v5263 = vadd.f32 %v5261, %v5262
        %v5264 = vsel %vm219, %v5227, 0.0
        %v5265 = vadd.f32 %v5263, %v5264
        %v5266 = vsel %vm219, %v5228, 0.0
        %v5267 = vadd.f32 %v5265, %v5266
        %v5268 = vsel %vm219, %v5229, 0.0
        %v5269 = vadd.f32 %v5267, %v5268
        %v5270 = vsel %vm219, %v5230, 0.0
        %v5271 = vadd.f32 %v5269, %v5270
        %v5272 = vsel %vm219, %v5231, 0.0
        %v5273 = vadd.f32 %v5271, %v5272
        %v5274 = vsel %vm219, %v5232, 0.0
        %v5275 = vadd.f32 %v5273, %v5274
        %v5276 = vsel %vm219, %v5233, 0.0
        %v5277 = vadd.f32 %v5275, %v5276
        %v5278 = vsel %vm219, %v5234, 0.0
        %v5279 = vadd.f32 %v5277, %v5278
        %v5280 = vsel %vm219, %v5235, 0.0
        %v5281 = vadd.f32 %v5279, %v5280
        %v5282 = vsel %vm219, %v5236, 0.0
        %v5283 = vadd.f32 %v5281, %v5282
        %v5284 = vsel %vm219, %v5237, 0.0
        %v5285 = vadd.f32 %v5283, %v5284
        %v5286 = vsel %vm219, %v5238, 0.0
        %v5287 = vadd.f32 %v5285, %v5286
        %v5288 = vsel %vm219, %v5239, 0.0
        %v5289 = vadd.f32 %v5287, %v5288
        %v5290 = vsel %vm219, %v5240, 0.0
        %v5291 = vadd.f32 %v5289, %v5290
        %v5292 = vsel %vm219, %v5241, 0.0
        %v5293 = vadd.f32 %v5291, %v5292
        %v5294 = vsel %vm219, %v5242, 0.0
        %v5295 = vadd.f32 %v5293, %v5294
        %v5296 = vsel %vm219, %v5243, 0.0
        %v5297 = vadd.f32 %v5295, %v5296
        %v5298 = vsel %vm219, %v5244, 0.0
        %v5299 = vadd.f32 %v5297, %v5298
        %v5300 = vsel %vm219, %v5245, 0.0
        %v5301 = vadd.f32 %v5299, %v5300
        %v5302 = vsel %vm219, %v5246, 0.0
        %v5303 = vadd.f32 %v5301, %v5302
        %v5304 = vsel %vm219, %v5247, 0.0
        %v5305 = vadd.f32 %v5303, %v5304
        %v5306 = vsel %vm219, %v5248, 0.0
        %v5307 = vadd.f32 %v5305, %v5306
        %v5308 = vsel %vm219, %v5249, 0.0
        %v5309 = vadd.f32 %v5307, %v5308
        %v5310 = vsel %vm219, %v5250, 0.0
        %v5311 = vadd.f32 %v5309, %v5310
        %v5312 = vsel %vm219, %v5251, 0.0
        %v5313 = vadd.f32 %v5311, %v5312
        %v5314 = vsel %vm219, %v5252, 0.0
        %v5315 = vadd.f32 %v5313, %v5314
        %v5316 = vrot.slane %v5315, 4
        %v5317 = vadd.f32 %v5315, %v5316
        %v5318 = vrot.slane %v5317, 2
        %v5319 = vadd.f32 %v5317, %v5318
        %v5320 = vrot.slane %v5319, 1
        %v5321 = vadd.f32 %v5319, %v5320
        %v5322 = vmul.f32 %v5321, %v2730
        %v5323 = vmul.f32 %v5221, %v5221
        %v5324 = vmul.f32 %v5222, %v5222
        %v5325 = vmul.f32 %v5223, %v5223
        %v5326 = vmul.f32 %v5224, %v5224
        %v5327 = vmul.f32 %v5225, %v5225
        %v5328 = vmul.f32 %v5226, %v5226
        %v5329 = vmul.f32 %v5227, %v5227
        %v5330 = vmul.f32 %v5228, %v5228
        %v5331 = vmul.f32 %v5229, %v5229
        %v5332 = vmul.f32 %v5230, %v5230
        %v5333 = vmul.f32 %v5231, %v5231
        %v5334 = vmul.f32 %v5232, %v5232
        %v5335 = vmul.f32 %v5233, %v5233
        %v5336 = vmul.f32 %v5234, %v5234
        %v5337 = vmul.f32 %v5235, %v5235
        %v5338 = vmul.f32 %v5236, %v5236
        %v5339 = vmul.f32 %v5237, %v5237
        %v5340 = vmul.f32 %v5238, %v5238
        %v5341 = vmul.f32 %v5239, %v5239
        %v5342 = vmul.f32 %v5240, %v5240
        %v5343 = vmul.f32 %v5241, %v5241
        %v5344 = vmul.f32 %v5242, %v5242
        %v5345 = vmul.f32 %v5243, %v5243
        %v5346 = vmul.f32 %v5244, %v5244
        %v5347 = vmul.f32 %v5245, %v5245
        %v5348 = vmul.f32 %v5246, %v5246
        %v5349 = vmul.f32 %v5247, %v5247
        %v5350 = vmul.f32 %v5248, %v5248
        %v5351 = vmul.f32 %v5249, %v5249
        %v5352 = vmul.f32 %v5250, %v5250
        %v5353 = vmul.f32 %v5251, %v5251
        %v5354 = vmul.f32 %v5252, %v5252
        %v5355 = vsel %vm219, %v5323, 0.0
        %v5356 = vsel %vm219, %v5324, 0.0
        %v5357 = vadd.f32 %v5355, %v5356
        %v5358 = vsel %vm219, %v5325, 0.0
        %v5359 = vadd.f32 %v5357, %v5358
        %v5360 = vsel %vm219, %v5326, 0.0
        %v5361 = vadd.f32 %v5359, %v5360
        %v5362 = vsel %vm219, %v5327, 0.0
        %v5363 = vadd.f32 %v5361, %v5362
        %v5364 = vsel %vm219, %v5328, 0.0
        %v5365 = vadd.f32 %v5363, %v5364
        %v5366 = vsel %vm219, %v5329, 0.0
        %v5367 = vadd.f32 %v5365, %v5366
        %v5368 = vsel %vm219, %v5330, 0.0
        %v5369 = vadd.f32 %v5367, %v5368
        %v5370 = vsel %vm219, %v5331, 0.0
        %v5371 = vadd.f32 %v5369, %v5370
        %v5372 = vsel %vm219, %v5332, 0.0
        %v5373 = vadd.f32 %v5371, %v5372
        %v5374 = vsel %vm219, %v5333, 0.0
        %v5375 = vadd.f32 %v5373, %v5374
        %v5376 = vsel %vm219, %v5334, 0.0
        %v5377 = vadd.f32 %v5375, %v5376
        %v5378 = vsel %vm219, %v5335, 0.0
        %v5379 = vadd.f32 %v5377, %v5378
        %v5380 = vsel %vm219, %v5336, 0.0
        %v5381 = vadd.f32 %v5379, %v5380
        %v5382 = vsel %vm219, %v5337, 0.0
        %v5383 = vadd.f32 %v5381, %v5382
        %v5384 = vsel %vm219, %v5338, 0.0
        %v5385 = vadd.f32 %v5383, %v5384
        %v5386 = vsel %vm219, %v5339, 0.0
        %v5387 = vadd.f32 %v5385, %v5386
        %v5388 = vsel %vm219, %v5340, 0.0
        %v5389 = vadd.f32 %v5387, %v5388
        %v5390 = vsel %vm219, %v5341, 0.0
        %v5391 = vadd.f32 %v5389, %v5390
        %v5392 = vsel %vm219, %v5342, 0.0
        %v5393 = vadd.f32 %v5391, %v5392
        %v5394 = vsel %vm219, %v5343, 0.0
        %v5395 = vadd.f32 %v5393, %v5394
        %v5396 = vsel %vm219, %v5344, 0.0
        %v5397 = vadd.f32 %v5395, %v5396
        %v5398 = vsel %vm219, %v5345, 0.0
        %v5399 = vadd.f32 %v5397, %v5398
        %v5400 = vsel %vm219, %v5346, 0.0
        %v5401 = vadd.f32 %v5399, %v5400
        %v5402 = vsel %vm219, %v5347, 0.0
        %v5403 = vadd.f32 %v5401, %v5402
        %v5404 = vsel %vm219, %v5348, 0.0
        %v5405 = vadd.f32 %v5403, %v5404
        %v5406 = vsel %vm219, %v5349, 0.0
        %v5407 = vadd.f32 %v5405, %v5406
        %v5408 = vsel %vm219, %v5350, 0.0
        %v5409 = vadd.f32 %v5407, %v5408
        %v5410 = vsel %vm219, %v5351, 0.0
        %v5411 = vadd.f32 %v5409, %v5410
        %v5412 = vsel %vm219, %v5352, 0.0
        %v5413 = vadd.f32 %v5411, %v5412
        %v5414 = vsel %vm219, %v5353, 0.0
        %v5415 = vadd.f32 %v5413, %v5414
        %v5416 = vsel %vm219, %v5354, 0.0
        %v5417 = vadd.f32 %v5415, %v5416
        %v5418 = vrot.slane %v5417, 4
        %v5419 = vadd.f32 %v5417, %v5418
        %v5420 = vrot.slane %v5419, 2
        %v5421 = vadd.f32 %v5419, %v5420
        %v5422 = vrot.slane %v5421, 1
        %v5423 = vadd.f32 %v5421, %v5422
        %v5424 = vmul.f32 %v5423, %v2730
        %v5425 = vmul.f32 %v5322, %v5322
        %v5426 = vsub.f32 %v5424, %v5425
        %v5427 = vmax.f32 %v5426, 0.0
        %v5428 = vsub.f32 %v5221, %v5322
        %v5429 = vsub.f32 %v5222, %v5322
        %v5430 = vsub.f32 %v5223, %v5322
        %v5431 = vsub.f32 %v5224, %v5322
        %v5432 = vsub.f32 %v5225, %v5322
        %v5433 = vsub.f32 %v5226, %v5322
        %v5434 = vsub.f32 %v5227, %v5322
        %v5435 = vsub.f32 %v5228, %v5322
        %v5436 = vsub.f32 %v5229, %v5322
        %v5437 = vsub.f32 %v5230, %v5322
        %v5438 = vsub.f32 %v5231, %v5322
        %v5439 = vsub.f32 %v5232, %v5322
        %v5440 = vsub.f32 %v5233, %v5322
        %v5441 = vsub.f32 %v5234, %v5322
        %v5442 = vsub.f32 %v5235, %v5322
        %v5443 = vsub.f32 %v5236, %v5322
        %v5444 = vsub.f32 %v5237, %v5322
        %v5445 = vsub.f32 %v5238, %v5322
        %v5446 = vsub.f32 %v5239, %v5322
        %v5447 = vsub.f32 %v5240, %v5322
        %v5448 = vsub.f32 %v5241, %v5322
        %v5449 = vsub.f32 %v5242, %v5322
        %v5450 = vsub.f32 %v5243, %v5322
        %v5451 = vsub.f32 %v5244, %v5322
        %v5452 = vsub.f32 %v5245, %v5322
        %v5453 = vsub.f32 %v5246, %v5322
        %v5454 = vsub.f32 %v5247, %v5322
        %v5455 = vsub.f32 %v5248, %v5322
        %v5456 = vsub.f32 %v5249, %v5322
        %v5457 = vsub.f32 %v5250, %v5322
        %v5458 = vsub.f32 %v5251, %v5322
        %v5459 = vsub.f32 %v5252, %v5322
        %v5460 = vadd.f32 %v5427, 1e-05
        %v5461 = vrsqrt.pop %v5460
        %v5462 = vmul.f32 %v5428, %v5461
        %v5463 = vmul.f32 %v5429, %v5461
        %v5464 = vmul.f32 %v5430, %v5461
        %v5465 = vmul.f32 %v5431, %v5461
        %v5466 = vmul.f32 %v5432, %v5461
        %v5467 = vmul.f32 %v5433, %v5461
        %v5468 = vmul.f32 %v5434, %v5461
        %v5469 = vmul.f32 %v5435, %v5461
        %v5470 = vmul.f32 %v5436, %v5461
        %v5471 = vmul.f32 %v5437, %v5461
        %v5472 = vmul.f32 %v5438, %v5461
        %v5473 = vmul.f32 %v5439, %v5461
        %v5474 = vmul.f32 %v5440, %v5461
        %v5475 = vmul.f32 %v5441, %v5461
        %v5476 = vmul.f32 %v5442, %v5461
        %v5477 = vmul.f32 %v5443, %v5461
        %v5478 = vmul.f32 %v5444, %v5461
        %v5479 = vmul.f32 %v5445, %v5461
        %v5480 = vmul.f32 %v5446, %v5461
        %v5481 = vmul.f32 %v5447, %v5461
        %v5482 = vmul.f32 %v5448, %v5461
        %v5483 = vmul.f32 %v5449, %v5461
        %v5484 = vmul.f32 %v5450, %v5461
        %v5485 = vmul.f32 %v5451, %v5461
        %v5486 = vmul.f32 %v5452, %v5461
        %v5487 = vmul.f32 %v5453, %v5461
        %v5488 = vmul.f32 %v5454, %v5461
        %v5489 = vmul.f32 %v5455, %v5461
        %v5490 = vmul.f32 %v5456, %v5461
        %v5491 = vmul.f32 %v5457, %v5461
        %v5492 = vmul.f32 %v5458, %v5461
        %v5493 = vmul.f32 %v5459, %v5461
        %v5494 = vadd.f32 %v308, %v5462
        %v5495 = vadd.f32 %v309, %v5463
        %v5496 = vadd.f32 %v310, %v5464
        %v5497 = vadd.f32 %v311, %v5465
        %v5498 = vadd.f32 %v312, %v5466
        %v5499 = vadd.f32 %v313, %v5467
        %v5500 = vadd.f32 %v314, %v5468
        %v5501 = vadd.f32 %v315, %v5469
        %v5502 = vadd.f32 %v316, %v5470
        %v5503 = vadd.f32 %v317, %v5471
        %v5504 = vadd.f32 %v318, %v5472
        %v5505 = vadd.f32 %v319, %v5473
        %v5506 = vadd.f32 %v320, %v5474
        %v5507 = vadd.f32 %v321, %v5475
        %v5508 = vadd.f32 %v322, %v5476
        %v5509 = vadd.f32 %v323, %v5477
        %v5510 = vadd.f32 %v324, %v5478
        %v5511 = vadd.f32 %v325, %v5479
        %v5512 = vadd.f32 %v326, %v5480
        %v5513 = vadd.f32 %v327, %v5481
        %v5514 = vadd.f32 %v328, %v5482
        %v5515 = vadd.f32 %v329, %v5483
        %v5516 = vadd.f32 %v330, %v5484
        %v5517 = vadd.f32 %v331, %v5485
        %v5518 = vadd.f32 %v332, %v5486
        %v5519 = vadd.f32 %v333, %v5487
        %v5520 = vadd.f32 %v334, %v5488
        %v5521 = vadd.f32 %v335, %v5489
        %v5522 = vadd.f32 %v336, %v5490
        %v5523 = vadd.f32 %v337, %v5491
        %v5524 = vadd.f32 %v338, %v5492
        %v5525 = vadd.f32 %v339, %v5493
        %5526 = vst.msk [vmem:[%s217] sm:$0xff] %vm219, %v5494
        %5527 = vst.msk [vmem:[%s217 + $0x8] sm:$0xff] %vm219, %v5495
        %5528 = vst.msk [vmem:[%s217 + $0x10] sm:$0xff] %vm219, %v5496
        %5529 = vst.msk [vmem:[%s217 + $0x18] sm:$0xff] %vm219, %v5497
        %5530 = vst.msk [vmem:[%s217 + $0x20] sm:$0xff] %vm219, %v5498
        %5531 = vst.msk [vmem:[%s217 + $0x28] sm:$0xff] %vm219, %v5499
        %5532 = vst.msk [vmem:[%s217 + $0x30] sm:$0xff] %vm219, %v5500
        %5533 = vst.msk [vmem:[%s217 + $0x38] sm:$0xff] %vm219, %v5501
        %5534 = vst.msk [vmem:[%s217 + $0x40] sm:$0xff] %vm219, %v5502
        %5535 = vst.msk [vmem:[%s217 + $0x48] sm:$0xff] %vm219, %v5503
        %5536 = vst.msk [vmem:[%s217 + $0x50] sm:$0xff] %vm219, %v5504
        %5537 = vst.msk [vmem:[%s217 + $0x58] sm:$0xff] %vm219, %v5505
        %5538 = vst.msk [vmem:[%s217 + $0x60] sm:$0xff] %vm219, %v5506
        %5539 = vst.msk [vmem:[%s217 + $0x68] sm:$0xff] %vm219, %v5507
        %5540 = vst.msk [vmem:[%s217 + $0x70] sm:$0xff] %vm219, %v5508
        %5541 = vst.msk [vmem:[%s217 + $0x78] sm:$0xff] %vm219, %v5509
        %5542 = vst.msk [vmem:[%s217 + $0x80] sm:$0xff] %vm219, %v5510
        %5543 = vst.msk [vmem:[%s217 + $0x88] sm:$0xff] %vm219, %v5511
        %5544 = vst.msk [vmem:[%s217 + $0x90] sm:$0xff] %vm219, %v5512
        %5545 = vst.msk [vmem:[%s217 + $0x98] sm:$0xff] %vm219, %v5513
        %5546 = vst.msk [vmem:[%s217 + $0xa0] sm:$0xff] %vm219, %v5514
        %5547 = vst.msk [vmem:[%s217 + $0xa8] sm:$0xff] %vm219, %v5515
        %5548 = vst.msk [vmem:[%s217 + $0xb0] sm:$0xff] %vm219, %v5516
        %5549 = vst.msk [vmem:[%s217 + $0xb8] sm:$0xff] %vm219, %v5517
        %5550 = vst.msk [vmem:[%s217 + $0xc0] sm:$0xff] %vm219, %v5518
        %5551 = vst.msk [vmem:[%s217 + $0xc8] sm:$0xff] %vm219, %v5519
        %5552 = vst.msk [vmem:[%s217 + $0xd0] sm:$0xff] %vm219, %v5520
        %5553 = vst.msk [vmem:[%s217 + $0xd8] sm:$0xff] %vm219, %v5521
        %5554 = vst.msk [vmem:[%s217 + $0xe0] sm:$0xff] %vm219, %v5522
        %5555 = vst.msk [vmem:[%s217 + $0xe8] sm:$0xff] %vm219, %v5523
        %5556 = vst.msk [vmem:[%s217 + $0xf0] sm:$0xff] %vm219, %v5524
        %5557 = vst.msk [vmem:[%s217 + $0xf8] sm:$0xff] %vm219, %v5525
        %s5558 = sand.u32 %s97, 1
        %s5559 = scalar_lea.sflag [#allocation6], %s5558
        %s5560 = sand.u32 %s97, 1
        %s5561 = smul.addr %s5560, 256
        %s5562 = scalar_lea.vmem [#allocation10], %s5561
        // Predicated region
        $region45: #{resnet_block.1} parent=31 // pred_check
          %p5563 = pneg %p107
        $region46: #{resnet_block.1} parent=31 // pred_check_branch
          %5565 = sbr.rel (%p5563) target = $region48
        $region47: #{resnet_block.1} parent=31 // pred_region
          %s5567 = ssub.s32 4096, 4096
          %5568 = vsyncadd %s5559, %s5567
          %s5569 = smul.addr %s21, 32
          %s5570 = smul.addr %s5569, 128
          %s5571 = scalar_lea.hbm %s3, %s5570
          %s5572 = sshll.u32 %s5562, 4
          %s5573 = int_to_ptr.vmem [resolvable:$true] %s5572
          %5578 = dma.vmem_to_hbm [thread:$0]  %s5573, 4096, %s5571, %s5559, 128, 128, 8
        $region48: #{resnet_block.1} parent=31 // pred_fallthru
          _
      $region32: #{resnet_block.1} parent=5 // pred_fallthru
        _
      %p5579 = scmp.le.s32.totalorder 2, %s16
      // Predicated region
      $region49: #{resnet_block.1} parent=5 // pred_check
        %p5580 = pneg %p5579
      $region50: #{resnet_block.1} parent=5 // pred_check_branch
        %5582 = sbr.rel (%p5580) target = $region52
      $region51: #{resnet_block.1} parent=5 // pred_region
        %s5583 = ssub.s32 %s16, 2
        // Predicated region
        $region53: #{resnet_block.1} parent=51 // pred_check
          %p5584 = pneg %p113
        $region54: #{resnet_block.1} parent=51 // pred_check_branch
          %5586 = sbr.rel (%p5584) target = $region56
        $region55: #{resnet_block.1} parent=51 // pred_region
          %s5587 = sand.u32 %s98, 1
          %s5588 = scalar_lea.sflag [#allocation6], %s5587
          %s5589 = sand.u32 %s98, 1
          %s5590 = smul.addr %s5589, 256
          %s5591 = scalar_lea.vmem [#allocation10], %s5590
          %5592 = dma.done %s5588, 4096
        $region56: #{resnet_block.1} parent=51 // pred_fallthru
          _
      $region52: #{resnet_block.1} parent=5 // pred_fallthru
        _
    $region6: #{resnet_block.1} parent=1 // loop_footer
      %s20 = sadd.s32 1, %s16
    $region7: #{resnet_block.1} parent=1 // loop_footer_branch
      %15 = sbr.rel target = $region3
    $region8: #{resnet_block.1} parent=1 // loop_exit
      _
    %5593 = vsyncpa [#allocation5], 1
    %s5594 = scalar_lea.sflag [#allocation5], 1
    %5595 = vsyncpa %s5594, 1
    %5596 = vsyncpa [#allocation8], 1
    %5597 = vsyncpa [#allocation6], 1
    %s5598 = scalar_lea.sflag [#allocation6], 1
    %5599 = vsyncpa %s5598, 1

</llo_original>
